<compile_context>
chip_gen: v7x
topology: tpu7x:2x2x1
jax: 0.10.0
libtpu: 0.0.40
codegen_flags: <defaults>
</compile_context>

<pallas_src>
from functools import partial

import jax
import jax.numpy as jnp
from jax.experimental import pallas as pl
from jax.experimental.pallas import tpu as pltpu


# Set to jnp.bfloat16 for ~2x MXU throughput / half the conv HBM traffic (slight precision
# change vs the f32 PyTorch reference); accumulation stays f32 either way.
_CONV_COMPUTE_DTYPE = jnp.float32

_BN_EPS = 1e-5


# ---------------------------------------------------------------------------
# Pallas kernels
# ---------------------------------------------------------------------------

def _conv3d_kernel(x_ref, w_ref, y_ref, st_ref, *, KD, KH, KW, TD, Ho, Wo):
    """Stride-1 VALID 3D conv on a depth tile, single im2col dot + BN-stat side output.

    x_ref : (1, Dv, Hv, Wv, Cs)   full padded per-sample volume (resident across depth tiles)
    w_ref : (KD*KH*KW*Cs, Cout)   weights pre-reshaped in the wrapper
    y_ref : (1, TD, Ho, Wo, Cout) output depth tile
    st_ref: (1, 1, 2, Cout)       per-tile [sum; sum of squares] of the conv output
    """
    Cs = x_ref.shape[-1]
    Cout = w_ref.shape[-1]
    M = TD * Ho * Wo
    d0 = pl.program_id(1) * TD

    cols = []
    for kd in range(KD):
        for kh in range(KH):
            for kw in range(KW):
                xs = x_ref[0, pl.ds(d0 + kd, TD), pl.ds(kh, Ho), pl.ds(kw, Wo), :]
                cols.append(xs.reshape(M, Cs))
    patches = cols[0] if len(cols) == 1 else jnp.concatenate(cols, axis=1)

    acc = jnp.dot(patches, w_ref[...], preferred_element_type=jnp.float32)   # (M, Cout) f32
    y_ref[0] = acc.reshape(TD, Ho, Wo, Cout).astype(y_ref.dtype)

    ssum = jnp.sum(acc, axis=0, keepdims=True)            # (1, Cout)
    ssq = jnp.sum(acc * acc, axis=0, keepdims=True)       # (1, Cout)
    st_ref[0, 0] = jnp.concatenate([ssum, ssq], axis=0)   # (2, Cout)


def _stats_affine_relu_kernel(x_ref, p_ref, st_ref):
    """Partial per-lane sum / sumsq of u = relu(x*scale + shift) (no activation written)."""
    p = p_ref[...]                                           # (2, L)
    u = jnp.maximum(x_ref[...] * p[0:1, :] + p[1:2, :], 0.0)
    st_ref[0] = jnp.concatenate(
        [jnp.sum(u, axis=0, keepdims=True),
         jnp.sum(u * u, axis=0, keepdims=True)], axis=0)     # (2, L)


def _double_affine_relu_kernel(x_ref, p_ref, o_ref):
    """o = relu(relu(x*s1 + t1)*s2 + t2)  — two fused BN+ReLU applications."""
    p = p_ref[...]                                           # (4, L)
    u = jnp.maximum(x_ref[...] * p[0:1, :] + p[1:2, :], 0.0)
    o_ref[...] = jnp.maximum(u * p[2:3, :] + p[3:4, :], 0.0)


def _residual_merge_kernel(y_ref, sc_ref, p_ref, o_ref, *, ds_affine):
    """out = relu( shortcut' + (relu(y*sA + tA)*sB + tB) ).

    shortcut' = sc                                  (plain residual block)
              = relu(sc*sD1 + tD1)*sD2 + tD2        (downsample block: BN_ds(ReLU(BN_ind(.))))
    """
    p = p_ref[...]                                           # (4 or 8, L)
    r = jnp.maximum(y_ref[...] * p[0:1, :] + p[1:2, :], 0.0) * p[2:3, :] + p[3:4, :]
    sc = sc_ref[...]
    if ds_affine:
        sc = jnp.maximum(sc * p[4:5, :] + p[5:6, :], 0.0) * p[6:7, :] + p[7:8, :]
    o_ref[...] = jnp.maximum(sc + r, 0.0)


# ---------------------------------------------------------------------------
# Convolution wrapper (phase decomposition for stride + tiled pallas_call)
# ---------------------------------------------------------------------------

def _phase_stack(x, w, stride, padding):
    """Rewrite a (possibly strided) padded conv as a stride-1 VALID conv.

    For stride > 1 the padded input is decomposed into its stride^3 phase sub-volumes, which
    are stacked along the channel axis; the weights are regrouped per phase (zero-filled where
    a phase has fewer taps).  The resulting stride-1 valid conv computes exactly the strided
    conv outputs (zero taps only ever touch padded rows).
    """
    N, D, H, W, Cin = x.shape
    KD, KH, KW, _, Cout = w.shape
    s = stride
    xp = jnp.pad(x, ((0, 0), (padding,) * 2, (padding,) * 2, (padding,) * 2, (0, 0)))
    if s == 1:
        return xp, w

    Dp, Hp, Wp = D + 2 * padding, H + 2 * padding, W + 2 * padding
    Do, Ho, Wo = (Dp - KD) // s + 1, (Hp - KH) // s + 1, (Wp - KW) // s + 1
    jD, jH, jW = -(-KD // s), -(-KH // s), -(-KW // s)          # taps per phase (ceil)
    need = (Do + jD - 1, Ho + jH - 1, Wo + jW - 1)

    vols, taps = [], []
    for pd in range(min(s, KD)):
        for ph in range(min(s, KH)):
            for pw in range(min(s, KW)):
                v = xp[:, pd::s, ph::s, pw::s, :]
                v = v[:, :need[0], :need[1], :need[2], :]
                pad_amt = [(0, 0)] + [(0, need[i] - v.shape[1 + i]) for i in range(3)] + [(0, 0)]
                if any(p[1] for p in pad_amt):
                    v = jnp.pad(v, pad_amt)
                vols.append(v)

                wc = jnp.zeros((jD, jH, jW, Cin, Cout), w.dtype)
                for jd in range(jD):
                    for jh in range(jH):
                        for jw in range(jW):
                            kd, kh, kw = s * jd + pd, s * jh + ph, s * jw + pw
                            if kd < KD and kh < KH and kw < KW:
                                wc = wc.at[jd, jh, jw].set(w[kd, kh, kw])
                taps.append(wc)

    xv = jnp.concatenate(vols, axis=-1)     # (N, need, n_phase*Cin)
    wv = jnp.concatenate(taps, axis=3)      # (jD, jH, jW, n_phase*Cin, Cout)
    return xv, wv


def _conv3d_valid(xv, w):
    """Stride-1 VALID conv.  Returns (y, stats) with stats = per (n, depth-tile) sum/sumsq."""
    N, Dv, Hv, Wv, Cs = xv.shape
    KD, KH, KW, _, Cout = w.shape
    Do, Ho, Wo = Dv - KD + 1, Hv - KH + 1, Wv - KW + 1

    # Smallest depth tile keeping the per-step matmul M = TD*Ho*Wo reasonably sized; more
    # depth tiles -> better pipelining and megacore split.
    # TODO(synk): for very large H*W the per-sample input block should also be halo-tiled over
    # H to stay inside the v7x 64 MiB VMEM budget.
    TD = Do
    for cand in range(1, Do + 1):
        if Do % cand == 0 and cand * Ho * Wo >= 128:
            TD = cand
            break
    n_do = Do // TD

    keff = KD * KH * KW * Cs
    w2 = w.reshape(keff, Cout).astype(_CONV_COMPUTE_DTYPE)
    xv = xv.astype(_CONV_COMPUTE_DTYPE)

    kernel = partial(_conv3d_kernel, KD=KD, KH=KH, KW=KW, TD=TD, Ho=Ho, Wo=Wo)
    flops = 2 * N * Do * Ho * Wo * keff * Cout
    bytes_acc = 4 * (xv.size + w2.size + N * Do * Ho * Wo * Cout + N * n_do * 2 * Cout)

    y, stats = pl.pallas_call(
        kernel,
        out_shape=(
            jax.ShapeDtypeStruct((N, Do, Ho, Wo, Cout), jnp.float32),
            jax.ShapeDtypeStruct((N, n_do, 2, Cout), jnp.float32),
        ),
        grid=(N, n_do),
        in_specs=[
            pl.BlockSpec((1, Dv, Hv, Wv, Cs), lambda n, j: (n, 0, 0, 0, 0)),
            pl.BlockSpec((keff, Cout), lambda n, j: (0, 0)),
        ],
        out_specs=(
            pl.BlockSpec((1, TD, Ho, Wo, Cout), lambda n, j: (n, j, 0, 0, 0)),
            pl.BlockSpec((1, 1, 2, Cout), lambda n, j: (n, j, 0, 0)),
        ),
        compiler_params=pltpu.CompilerParams(
            dimension_semantics=("parallel", "parallel"),
            vmem_limit_bytes=48 * 1024 * 1024,
        ),
        cost_estimate=pl.CostEstimate(
            flops=int(flops), transcendentals=0, bytes_accessed=int(bytes_acc)),
    )(xv, w2)
    return y, stats


def conv3d_pallas(x, w, *, stride, padding):
    """x: (N, D, H, W, Cin) NDHWC; w: (KD, KH, KW, Cin, Cout).  Any stride, symmetric pad."""
    xv, wv = _phase_stack(x, w, stride, padding)
    return _conv3d_valid(xv, wv)


# ---------------------------------------------------------------------------
# Lane-dense tiled elementwise (BN / ReLU / residual) wrappers
# ---------------------------------------------------------------------------

def _lane_view(x):
    """Reshape a (..., C) activation to a lane-dense (R, L) view, L a multiple of C (~512)."""
    C = x.shape[-1]
    total = x.size
    rows = total // C
    f = max(1, 512 // C)
    while f > 1 and rows % f:
        f //= 2
    L = C * f
    R = total // L
    return x.reshape(R, L), C, f, L, R


def _row_tile(R, max_rows=1024):
    if R <= max_rows:
        return R
    t = max_rows - max_rows % 8
    while t >= 8:
        if R % t == 0:
            return t
        t -= 8
    return R


def _lane_params(f, *vecs):
    """Tile per-channel vectors to per-lane vectors and stack into a (P, L) array."""
    return jnp.stack([jnp.tile(v.astype(jnp.float32), f) for v in vecs])


def _bn_coeffs(s, sq, count, gamma, beta, eps=_BN_EPS):
    """Training-mode BN -> per-channel (scale, shift).  Biased variance, clamped at 0."""
    mean = s / count
    var = jnp.maximum(sq / count - mean * mean, 0.0)
    scale = gamma * jax.lax.rsqrt(var + eps)
    shift = beta - mean * scale
    return scale, shift


def _fold_conv_stats(stats, count, gamma, beta):
    s = jnp.sum(stats[:, :, 0, :], axis=(0, 1))
    sq = jnp.sum(stats[:, :, 1, :], axis=(0, 1))
    return _bn_coeffs(s, sq, count, gamma, beta)


def stats_after_affine_relu(x5, scale, shift):
    """Per-channel (sum, sumsq, count) of relu(x*scale + shift) without writing it."""
    x2, C, f, L, R = _lane_view(x5)
    TR = _row_tile(R)
    nt = R // TR
    p = _lane_params(f, scale, shift)
    part = pl.pallas_call(
        _stats_affine_relu_kernel,
        out_shape=jax.ShapeDtypeStruct((nt, 2, L), jnp.float32),
        grid=(nt,),
        in_specs=[pl.BlockSpec((TR, L), lambda i: (i, 0)),
                  pl.BlockSpec((2, L), lambda i: (0, 0))],
        out_specs=pl.BlockSpec((1, 2, L), lambda i: (i, 0, 0)),
        compiler_params=pltpu.CompilerParams(dimension_semantics=("parallel",)),
        cost_estimate=pl.CostEstimate(flops=int(4 * R * L), transcendentals=0,
                                      bytes_accessed=int(4 * (R * L + nt * 2 * L))),
    )(x2, p)
    s = jnp.sum(part[:, 0, :].reshape(nt * f, C), axis=0)
    sq = jnp.sum(part[:, 1, :].reshape(nt * f, C), axis=0)
    return s, sq, R * f


def double_affine_relu(x5, s1, t1, s2, t2):
    """relu(relu(x*s1 + t1)*s2 + t2)  (two fused BN+ReLU stages)."""
    x2, C, f, L, R = _lane_view(x5)
    TR = _row_tile(R)
    nt = R // TR
    p = _lane_params(f, s1, t1, s2, t2)
    y2 = pl.pallas_call(
        _double_affine_relu_kernel,
        out_shape=jax.ShapeDtypeStruct((R, L), jnp.float32),
        grid=(nt,),
        in_specs=[pl.BlockSpec((TR, L), lambda i: (i, 0)),
                  pl.BlockSpec((4, L), lambda i: (0, 0))],
        out_specs=pl.BlockSpec((TR, L), lambda i: (i, 0)),
        compiler_params=pltpu.CompilerParams(dimension_semantics=("parallel",)),
        cost_estimate=pl.CostEstimate(flops=int(6 * R * L), transcendentals=0,
                                      bytes_accessed=int(4 * 2 * R * L)),
    )(x2, p)
    return y2.reshape(x5.shape)


def residual_merge(y5, sc5, res_params, sc_params=None):
    """relu( shortcut' + (relu(y*sA+tA)*sB + tB) ); optional BN chain on the shortcut."""
    y2, C, f, L, R = _lane_view(y5)
    sc2 = sc5.reshape(R, L)
    TR = _row_tile(R)
    nt = R // TR
    ds = sc_params is not None
    vecs = list(res_params) + (list(sc_params) if ds else [])
    p = _lane_params(f, *vecs)
    P = p.shape[0]
    kernel = partial(_residual_merge_kernel, ds_affine=ds)
    out2 = pl.pallas_call(
        kernel,
        out_shape=jax.ShapeDtypeStruct((R, L), jnp.float32),
        grid=(nt,),
        in_specs=[pl.BlockSpec((TR, L), lambda i: (i, 0)),
                  pl.BlockSpec((TR, L), lambda i: (i, 0)),
                  pl.BlockSpec((P, L), lambda i: (0, 0))],
        out_specs=pl.BlockSpec((TR, L), lambda i: (i, 0)),
        compiler_params=pltpu.CompilerParams(dimension_semantics=("parallel",)),
        cost_estimate=pl.CostEstimate(flops=int(10 * R * L), transcendentals=0,
                                      bytes_accessed=int(4 * 3 * R * L)),
    )(y2, sc2, p)
    return out2.reshape(y5.shape)


# ---------------------------------------------------------------------------
# Module composition
# ---------------------------------------------------------------------------

def res_block(x, p, *, k, downsample):
    stride = 2 if downsample else 1
    pad = k // 2

    # conv1 -> BN_in1 -> ReLU -> BN1 -> ReLU   (stats fused into conv; applies fused pairwise)
    y1, st1 = conv3d_pallas(x, p["w1"], stride=stride, padding=pad)
    cnt1 = y1.size // y1.shape[-1]
    s_in1, t_in1 = _fold_conv_stats(st1, cnt1, p["g_in1"], p["b_in1"])
    a1s, a1q, a1n = stats_after_affine_relu(y1, s_in1, t_in1)
    s1, t1 = _bn_coeffs(a1s, a1q, a1n, p["g1"], p["b1"])
    a2 = double_affine_relu(y1, s_in1, t_in1, s1, t1)

    # conv2 -> BN_in2 -> ReLU -> BN2           (applied inside the fused residual-merge pass)
    y2, st2 = conv3d_pallas(a2, p["w2"], stride=1, padding=pad)
    cnt2 = y2.size // y2.shape[-1]
    s_in2, t_in2 = _fold_conv_stats(st2, cnt2, p["g_in2"], p["b_in2"])
    a3s, a3q, a3n = stats_after_affine_relu(y2, s_in2, t_in2)
    s2, t2 = _bn_coeffs(a3s, a3q, a3n, p["g2"], p["b2"])

    if downsample:
        # shortcut: 1x1x1 stride-2 conv -> BN_ind -> ReLU -> BN_ds  (applied in the merge pass)
        yd, std = conv3d_pallas(x, p["wd"], stride=2, padding=0)
        cntd = yd.size // yd.shape[-1]
        s_ind, t_ind = _fold_conv_stats(std, cntd, p["g_ind"], p["b_ind"])
        ads, adq, adn = stats_after_affine_relu(yd, s_ind, t_ind)
        sd, td = _bn_coeffs(ads, adq, adn, p["gd"], p["bd"])
        return residual_merge(y2, yd, (s_in2, t_in2, s2, t2), (s_ind, t_ind, sd, td))

    return residual_merge(y2, x, (s_in2, t_in2, s2, t2))


def res_layer(x_ncdhw, params, *, k, downsample):
    x = jnp.transpose(x_ncdhw, (0, 2, 3, 4, 1))            # NCDHW -> NDHWC
    x = res_block(x, params[0], k=k, downsample=downsample)
    for p in params[1:]:
        x = res_block(x, p, k=k, downsample=False)
    return jnp.transpose(x, (0, 4, 1, 2, 3))               # NDHWC -> NCDHW


# ---------------------------------------------------------------------------
# Deterministic synthetic parameters
# ---------------------------------------------------------------------------

def _conv_w(key, cin, cout, k):
    fan_in = cin * k * k * k
    return jax.random.normal(key, (k, k, k, cin, cout), jnp.float32) / jnp.sqrt(fan_in)


def _bn_p(key, c):
    k1, k2 = jax.random.split(key)
    gamma = 1.0 + 0.1 * jax.random.normal(k1, (c,), jnp.float32)
    beta = 0.1 * jax.random.normal(k2, (c,), jnp.float32)
    return gamma, beta


def init_block_params(key, cin, cout, k, downsample):
    keys = jax.random.split(key, 9)
    p = {}
    p["w1"] = _conv_w(keys[0], cin, cout, k)
    p["g_in1"], p["b_in1"] = _bn_p(keys[1], cout)
    p["g1"], p["b1"] = _bn_p(keys[2], cout)
    p["w2"] = _conv_w(keys[3], cout, cout, k)
    p["g_in2"], p["b_in2"] = _bn_p(keys[4], cout)
    p["g2"], p["b2"] = _bn_p(keys[5], cout)
    if downsample:
        p["wd"] = _conv_w(keys[6], cin, cout, 1)
        p["g_ind"], p["b_ind"] = _bn_p(keys[7], cout)
        p["gd"], p["bd"] = _bn_p(keys[8], cout)
    return p


def init_layer_params(key, cin, cout, k, layer_size, downsample):
    keys = jax.random.split(key, layer_size)
    params = [init_block_params(keys[0], cin, cout, k, downsample)]
    for i in range(1, layer_size):
        params.append(init_block_params(keys[i], cout, cout, k, False))
    return params


# ---------------------------------------------------------------------------

if __name__ == "__main__":
    key = jax.random.PRNGKey(0)
    kx, kp = jax.random.split(key)

    # Small shapes consistent with the module: NCDHW input.
    N, Cin, D, H, W = 2, 4, 8, 16, 16
    Cout, K, LAYER_SIZE, DOWNSAMPLE = 8, 3, 2, True

    x = jax.random.normal(kx, (N, Cin, D, H, W), jnp.float32)
    params = init_layer_params(kp, Cin, Cout, K, LAYER_SIZE, DOWNSAMPLE)

    fwd = jax.jit(partial(res_layer, k=K, downsample=DOWNSAMPLE))
    out = fwd(x, params)
    out = jax.block_until_ready(out)

    assert out.shape == (N, Cout, D // 2, H // 2, W // 2), out.shape
    assert jnp.all(jnp.isfinite(out))
    assert jnp.all(out >= 0.0)   # final ReLU
    print("KERNEL_OK")
</pallas_src>

<mosaic_0001>
module attributes {stable_mosaic.version = 11 : i64} {
  func.func @_conv3d_kernel(%arg0: i32, %arg1: i32, %arg2: memref<1x4x8x8x4xf32, #tpu.memory_space<vmem>>, %arg3: memref<4x8xf32, #tpu.memory_space<vmem>>, %arg4: memref<1x2x8x8x8xf32, #tpu.memory_space<vmem>>, %arg5: memref<1x1x2x8xf32, #tpu.memory_space<vmem>>) attributes {dimension_semantics = [#tpu.dimension_semantics<parallel>, #tpu.dimension_semantics<parallel>], iteration_bounds = array<i64: 2, 2>, scalar_prefetch = 0 : i64, scratch_operands = 0 : i64, tpu.core_type = #tpu.core_type<tc>, window_params = [{transform_indices = @transform_0, window_bounds = array<i64: 1, 4, 8, 8, 4>}, {pipeline_mode = #tpu.pipeline_mode<synchronous>, transform_indices = @transform_1, window_bounds = array<i64: 4, 8>}, {transform_indices = @transform_2, window_bounds = array<i64: 1, 2, 8, 8, 8>}, {transform_indices = @transform_3, window_bounds = array<i64: 1, 1, 2, 8>}]} {
    %c2_i32 = arith.constant 2 : i32
    %0 = arith.muli %arg1, %c2_i32 : i32
    %c0_i32 = arith.constant 0 : i32
    %1 = arith.addi %0, %c0_i32 : i32
    %c0 = arith.constant 0 : index
    %2 = arith.index_cast %1 : i32 to index
    %c0_0 = arith.constant 0 : index
    %c0_1 = arith.constant 0 : index
    %c0_2 = arith.constant 0 : index
    %3 = vector.load %arg2[%c0, %2, %c0_0, %c0_1, %c0_2] : memref<1x4x8x8x4xf32, #tpu.memory_space<vmem>>, vector<1x2x8x8x4xf32>
    %4 = vector.shape_cast %3 : vector<1x2x8x8x4xf32> to vector<2x8x8x4xf32>
    %5 = vector.shape_cast %4 : vector<2x8x8x4xf32> to vector<128x4xf32>
    %c0_3 = arith.constant 0 : index
    %c0_4 = arith.constant 0 : index
    %6 = vector.load %arg3[%c0_3, %c0_4] : memref<4x8xf32, #tpu.memory_space<vmem>>, vector<4x8xf32>
    %cst = arith.constant dense<0.000000e+00> : vector<128x8xf32>
    %7 = tpu.matmul %5, %6, %cst {dimension_numbers = #tpu.dot_dimension_numbers<[1], [0], [0], [1], [0, 0, 1, 1], [], []>} : vector<128x4xf32>, vector<4x8xf32>, vector<128x8xf32> -> vector<128x8xf32>
    %8 = vector.shape_cast %7 : vector<128x8xf32> to vector<2x8x8x8xf32>
    %c0_5 = arith.constant 0 : index
    %c0_6 = arith.constant 0 : index
    %c0_7 = arith.constant 0 : index
    %c0_8 = arith.constant 0 : index
    %c0_9 = arith.constant 0 : index
    %9 = vector.load %arg4[%c0_5, %c0_6, %c0_7, %c0_8, %c0_9] : memref<1x2x8x8x8xf32, #tpu.memory_space<vmem>>, vector<1x2x8x8x8xf32>
    %10 = vector.shape_cast %9 : vector<1x2x8x8x8xf32> to vector<2x8x8x8xf32>
    %11 = vector.shape_cast %8 : vector<2x8x8x8xf32> to vector<1x2x8x8x8xf32>
    tpu.vector_store %arg4[%c0_5, %c0_6, %c0_7, %c0_8, %c0_9], %11 {strides = array<i32>} : memref<1x2x8x8x8xf32, #tpu.memory_space<vmem>>, vector<1x2x8x8x8xf32>,
    %cst_10 = arith.constant dense<0.000000e+00> : vector<8xf32>
    %12 = vector.multi_reduction <add>, %7, %cst_10 [0] : vector<128x8xf32> to vector<8xf32>
    %13 = vector.shape_cast %12 : vector<8xf32> to vector<1x8xf32>
    %14 = arith.mulf %7, %7 : vector<128x8xf32>
    %cst_11 = arith.constant dense<0.000000e+00> : vector<8xf32>
    %15 = vector.multi_reduction <add>, %14, %cst_11 [0] : vector<128x8xf32> to vector<8xf32>
    %16 = vector.shape_cast %15 : vector<8xf32> to vector<1x8xf32>
    %17 = tpu.concatenate %13, %16 in 0 : vector<1x8xf32>, vector<1x8xf32> -> vector<2x8xf32>
    %c0_12 = arith.constant 0 : index
    %c0_13 = arith.constant 0 : index
    %c0_14 = arith.constant 0 : index
    %c0_15 = arith.constant 0 : index
    %18 = vector.load %arg5[%c0_12, %c0_13, %c0_14, %c0_15] : memref<1x1x2x8xf32, #tpu.memory_space<vmem>>, vector<1x1x2x8xf32>
    %19 = vector.shape_cast %18 : vector<1x1x2x8xf32> to vector<2x8xf32>
    %20 = vector.shape_cast %17 : vector<2x8xf32> to vector<1x1x2x8xf32>
    tpu.vector_store %arg5[%c0_12, %c0_13, %c0_14, %c0_15], %20 {strides = array<i32>} : memref<1x1x2x8xf32, #tpu.memory_space<vmem>>, vector<1x1x2x8xf32>,
    return
  }
  func.func @transform_0(%arg0: i32, %arg1: i32) -> (i32, i32, i32, i32, i32) {
    %c0_i32 = arith.constant 0 : i32
    %c0_i32_0 = arith.constant 0 : i32
    %c0_i32_1 = arith.constant 0 : i32
    %c0_i32_2 = arith.constant 0 : i32
    %c0_i32_3 = arith.constant 0 : i32
    return %arg0, %c0_i32, %c0_i32_0, %c0_i32_1, %c0_i32_2 : i32, i32, i32, i32, i32
  }
  func.func @transform_1(%arg0: i32, %arg1: i32) -> (i32, i32) {
    %c0_i32 = arith.constant 0 : i32
    %c0_i32_0 = arith.constant 0 : i32
    %c0_i32_1 = arith.constant 0 : i32
    return %c0_i32, %c0_i32_0 : i32, i32
  }
  func.func @transform_2(%arg0: i32, %arg1: i32) -> (i32, i32, i32, i32, i32) {
    %c0_i32 = arith.constant 0 : i32
    %c0_i32_0 = arith.constant 0 : i32
    %c0_i32_1 = arith.constant 0 : i32
    %c0_i32_2 = arith.constant 0 : i32
    return %arg0, %arg1, %c0_i32, %c0_i32_0, %c0_i32_1 : i32, i32, i32, i32, i32
  }
  func.func @transform_3(%arg0: i32, %arg1: i32) -> (i32, i32, i32, i32) {
    %c0_i32 = arith.constant 0 : i32
    %c0_i32_0 = arith.constant 0 : i32
    %c0_i32_1 = arith.constant 0 : i32
    return %arg0, %arg1, %c0_i32, %c0_i32_0 : i32, i32, i32, i32
  }
}

module attributes {stable_mosaic.version = 11 : i64} {
  func.func @_stats_affine_relu_kernel(%arg0: i32, %arg1: memref<8x512xf32, #tpu.memory_space<vmem>>, %arg2: memref<2x512xf32, #tpu.memory_space<vmem>>, %arg3: memref<1x2x512xf32, #tpu.memory_space<vmem>>) attributes {dimension_semantics = [#tpu.dimension_semantics<parallel>], iteration_bounds = array<i64: 1>, scalar_prefetch = 0 : i64, scratch_operands = 0 : i64, tpu.core_type = #tpu.core_type<tc>, window_params = [{transform_indices = @transform_0, window_bounds = array<i64: 8, 512>}, {pipeline_mode = #tpu.pipeline_mode<synchronous>, transform_indices = @transform_1, window_bounds = array<i64: 2, 512>}, {transform_indices = @transform_2, window_bounds = array<i64: 1, 2, 512>}]} {
    %c0 = arith.constant 0 : index
    %c0_0 = arith.constant 0 : index
    %0 = vector.load %arg2[%c0, %c0_0] : memref<2x512xf32, #tpu.memory_space<vmem>>, vector<2x512xf32>
    %c0_1 = arith.constant 0 : index
    %c0_2 = arith.constant 0 : index
    %1 = vector.load %arg1[%c0_1, %c0_2] : memref<8x512xf32, #tpu.memory_space<vmem>>, vector<8x512xf32>
    %2 = vector.extract_strided_slice %0 {offsets = [0, 0], sizes = [1, 512], strides = [1, 1]} : vector<2x512xf32> to vector<1x512xf32>
    %3 = vector.broadcast %2 : vector<1x512xf32> to vector<8x512xf32>
    %4 = arith.mulf %1, %3 : vector<8x512xf32>
    %5 = vector.extract_strided_slice %0 {offsets = [1, 0], sizes = [1, 512], strides = [1, 1]} : vector<2x512xf32> to vector<1x512xf32>
    %6 = vector.broadcast %5 : vector<1x512xf32> to vector<8x512xf32>
    %7 = arith.addf %4, %6 : vector<8x512xf32>
    %cst = arith.constant 0.000000e+00 : f32
    %8 = vector.broadcast %cst : f32 to vector<8x512xf32>
    %9 = arith.maximumf %7, %8 : vector<8x512xf32>
    %cst_3 = arith.constant dense<0.000000e+00> : vector<512xf32>
    %10 = vector.multi_reduction <add>, %9, %cst_3 [0] : vector<8x512xf32> to vector<512xf32>
    %11 = vector.shape_cast %10 : vector<512xf32> to vector<1x512xf32>
    %12 = arith.mulf %9, %9 : vector<8x512xf32>
    %cst_4 = arith.constant dense<0.000000e+00> : vector<512xf32>
    %13 = vector.multi_reduction <add>, %12, %cst_4 [0] : vector<8x512xf32> to vector<512xf32>
    %14 = vector.shape_cast %13 : vector<512xf32> to vector<1x512xf32>
    %15 = tpu.concatenate %11, %14 in 0 : vector<1x512xf32>, vector<1x512xf32> -> vector<2x512xf32>
    %c0_5 = arith.constant 0 : index
    %c0_6 = arith.constant 0 : index
    %c0_7 = arith.constant 0 : index
    %16 = vector.load %arg3[%c0_5, %c0_6, %c0_7] : memref<1x2x512xf32, #tpu.memory_space<vmem>>, vector<1x2x512xf32>
    %17 = vector.shape_cast %16 : vector<1x2x512xf32> to vector<2x512xf32>
    %18 = vector.shape_cast %15 : vector<2x512xf32> to vector<1x2x512xf32>
    tpu.vector_store %arg3[%c0_5, %c0_6, %c0_7], %18 {strides = array<i32>} : memref<1x2x512xf32, #tpu.memory_space<vmem>>, vector<1x2x512xf32>,
    return
  }
  func.func @transform_0(%arg0: i32) -> (i32, i32) {
    %c0_i32 = arith.constant 0 : i32
    %c0_i32_0 = arith.constant 0 : i32
    return %arg0, %c0_i32 : i32, i32
  }
  func.func @transform_1(%arg0: i32) -> (i32, i32) {
    %c0_i32 = arith.constant 0 : i32
    %c0_i32_0 = arith.constant 0 : i32
    %c0_i32_1 = arith.constant 0 : i32
    return %c0_i32, %c0_i32_0 : i32, i32
  }
  func.func @transform_2(%arg0: i32) -> (i32, i32, i32) {
    %c0_i32 = arith.constant 0 : i32
    %c0_i32_0 = arith.constant 0 : i32
    %c0_i32_1 = arith.constant 0 : i32
    return %arg0, %c0_i32, %c0_i32_0 : i32, i32, i32
  }
}

module attributes {stable_mosaic.version = 11 : i64} {
  func.func @_conv3d_kernel(%arg0: i32, %arg1: i32, %arg2: memref<1x5x9x9x32xf32, #tpu.memory_space<vmem>>, %arg3: memref<256x8xf32, #tpu.memory_space<vmem>>, %arg4: memref<1x2x8x8x8xf32, #tpu.memory_space<vmem>>, %arg5: memref<1x1x2x8xf32, #tpu.memory_space<vmem>>) attributes {dimension_semantics = [#tpu.dimension_semantics<parallel>, #tpu.dimension_semantics<parallel>], iteration_bounds = array<i64: 2, 2>, scalar_prefetch = 0 : i64, scratch_operands = 0 : i64, tpu.core_type = #tpu.core_type<tc>, window_params = [{transform_indices = @transform_0, window_bounds = array<i64: 1, 5, 9, 9, 32>}, {pipeline_mode = #tpu.pipeline_mode<synchronous>, transform_indices = @transform_1, window_bounds = array<i64: 256, 8>}, {transform_indices = @transform_2, window_bounds = array<i64: 1, 2, 8, 8, 8>}, {transform_indices = @transform_3, window_bounds = array<i64: 1, 1, 2, 8>}]} {
    %c2_i32 = arith.constant 2 : i32
    %0 = arith.muli %arg1, %c2_i32 : i32
    %c0_i32 = arith.constant 0 : i32
    %1 = arith.addi %0, %c0_i32 : i32
    %c0 = arith.constant 0 : index
    %2 = arith.index_cast %1 : i32 to index
    %c0_0 = arith.constant 0 : index
    %c0_1 = arith.constant 0 : index
    %c0_2 = arith.constant 0 : index
    %3 = vector.load %arg2[%c0, %2, %c0_0, %c0_1, %c0_2] : memref<1x5x9x9x32xf32, #tpu.memory_space<vmem>>, vector<1x2x8x8x32xf32>
    %4 = vector.shape_cast %3 : vector<1x2x8x8x32xf32> to vector<2x8x8x32xf32>
    %5 = vector.shape_cast %4 : vector<2x8x8x32xf32> to vector<128x32xf32>
    %c0_i32_3 = arith.constant 0 : i32
    %6 = arith.addi %0, %c0_i32_3 : i32
    %c0_4 = arith.constant 0 : index
    %7 = arith.index_cast %6 : i32 to index
    %c0_5 = arith.constant 0 : index
    %c1 = arith.constant 1 : index
    %c0_6 = arith.constant 0 : index
    %8 = vector.load %arg2[%c0_4, %7, %c0_5, %c1, %c0_6] : memref<1x5x9x9x32xf32, #tpu.memory_space<vmem>>, vector<1x2x8x8x32xf32>
    %9 = vector.shape_cast %8 : vector<1x2x8x8x32xf32> to vector<2x8x8x32xf32>
    %10 = vector.shape_cast %9 : vector<2x8x8x32xf32> to vector<128x32xf32>
    %c0_i32_7 = arith.constant 0 : i32
    %11 = arith.addi %0, %c0_i32_7 : i32
    %c0_8 = arith.constant 0 : index
    %12 = arith.index_cast %11 : i32 to index
    %c1_9 = arith.constant 1 : index
    %c0_10 = arith.constant 0 : index
    %c0_11 = arith.constant 0 : index
    %13 = vector.load %arg2[%c0_8, %12, %c1_9, %c0_10, %c0_11] : memref<1x5x9x9x32xf32, #tpu.memory_space<vmem>>, vector<1x2x8x8x32xf32>
    %14 = vector.shape_cast %13 : vector<1x2x8x8x32xf32> to vector<2x8x8x32xf32>
    %15 = vector.shape_cast %14 : vector<2x8x8x32xf32> to vector<128x32xf32>
    %c0_i32_12 = arith.constant 0 : i32
    %16 = arith.addi %0, %c0_i32_12 : i32
    %c0_13 = arith.constant 0 : index
    %17 = arith.index_cast %16 : i32 to index
    %c1_14 = arith.constant 1 : index
    %c1_15 = arith.constant 1 : index
    %c0_16 = arith.constant 0 : index
    %18 = vector.load %arg2[%c0_13, %17, %c1_14, %c1_15, %c0_16] : memref<1x5x9x9x32xf32, #tpu.memory_space<vmem>>, vector<1x2x8x8x32xf32>
    %19 = vector.shape_cast %18 : vector<1x2x8x8x32xf32> to vector<2x8x8x32xf32>
    %20 = vector.shape_cast %19 : vector<2x8x8x32xf32> to vector<128x32xf32>
    %c1_i32 = arith.constant 1 : i32
    %21 = arith.addi %0, %c1_i32 : i32
    %c0_17 = arith.constant 0 : index
    %22 = arith.index_cast %21 : i32 to index
    %c0_18 = arith.constant 0 : index
    %c0_19 = arith.constant 0 : index
    %c0_20 = arith.constant 0 : index
    %23 = vector.load %arg2[%c0_17, %22, %c0_18, %c0_19, %c0_20] : memref<1x5x9x9x32xf32, #tpu.memory_space<vmem>>, vector<1x2x8x8x32xf32>
    %24 = vector.shape_cast %23 : vector<1x2x8x8x32xf32> to vector<2x8x8x32xf32>
    %25 = vector.shape_cast %24 : vector<2x8x8x32xf32> to vector<128x32xf32>
    %c1_i32_21 = arith.constant 1 : i32
    %26 = arith.addi %0, %c1_i32_21 : i32
    %c0_22 = arith.constant 0 : index
    %27 = arith.index_cast %26 : i32 to index
    %c0_23 = arith.constant 0 : index
    %c1_24 = arith.constant 1 : index
    %c0_25 = arith.constant 0 : index
    %28 = vector.load %arg2[%c0_22, %27, %c0_23, %c1_24, %c0_25] : memref<1x5x9x9x32xf32, #tpu.memory_space<vmem>>, vector<1x2x8x8x32xf32>
    %29 = vector.shape_cast %28 : vector<1x2x8x8x32xf32> to vector<2x8x8x32xf32>
    %30 = vector.shape_cast %29 : vector<2x8x8x32xf32> to vector<128x32xf32>
    %c1_i32_26 = arith.constant 1 : i32
    %31 = arith.addi %0, %c1_i32_26 : i32
    %c0_27 = arith.constant 0 : index
    %32 = arith.index_cast %31 : i32 to index
    %c1_28 = arith.constant 1 : index
    %c0_29 = arith.constant 0 : index
    %c0_30 = arith.constant 0 : index
    %33 = vector.load %arg2[%c0_27, %32, %c1_28, %c0_29, %c0_30] : memref<1x5x9x9x32xf32, #tpu.memory_space<vmem>>, vector<1x2x8x8x32xf32>
    %34 = vector.shape_cast %33 : vector<1x2x8x8x32xf32> to vector<2x8x8x32xf32>
    %35 = vector.shape_cast %34 : vector<2x8x8x32xf32> to vector<128x32xf32>
    %c1_i32_31 = arith.constant 1 : i32
    %36 = arith.addi %0, %c1_i32_31 : i32
    %c0_32 = arith.constant 0 : index
    %37 = arith.index_cast %36 : i32 to index
    %c1_33 = arith.constant 1 : index
    %c1_34 = arith.constant 1 : index
    %c0_35 = arith.constant 0 : index
    %38 = vector.load %arg2[%c0_32, %37, %c1_33, %c1_34, %c0_35] : memref<1x5x9x9x32xf32, #tpu.memory_space<vmem>>, vector<1x2x8x8x32xf32>
    %39 = vector.shape_cast %38 : vector<1x2x8x8x32xf32> to vector<2x8x8x32xf32>
    %40 = vector.shape_cast %39 : vector<2x8x8x32xf32> to vector<128x32xf32>
    %41 = tpu.concatenate %5, %10, %15, %20, %25, %30, %35, %40 in 1 : vector<128x32xf32>, vector<128x32xf32>, vector<128x32xf32>, vector<128x32xf32>, vector<128x32xf32>, vector<128x32xf32>, vector<128x32xf32>, vector<128x32xf32> -> vector<128x256xf32>
    %c0_36 = arith.constant 0 : index
    %c0_37 = arith.constant 0 : index
    %42 = vector.load %arg3[%c0_36, %c0_37] : memref<256x8xf32, #tpu.memory_space<vmem>>, vector<256x8xf32>
    %cst = arith.constant dense<0.000000e+00> : vector<128x8xf32>
    %43 = tpu.matmul %41, %42, %cst {dimension_numbers = #tpu.dot_dimension_numbers<[1], [0], [0], [1], [0, 0, 1, 1], [], []>} : vector<128x256xf32>, vector<256x8xf32>, vector<128x8xf32> -> vector<128x8xf32>
    %44 = vector.shape_cast %43 : vector<128x8xf32> to vector<2x8x8x8xf32>
    %c0_38 = arith.constant 0 : index
    %c0_39 = arith.constant 0 : index
    %c0_40 = arith.constant 0 : index
    %c0_41 = arith.constant 0 : index
    %c0_42 = arith.constant 0 : index
    %45 = vector.load %arg4[%c0_38, %c0_39, %c0_40, %c0_41, %c0_42] : memref<1x2x8x8x8xf32, #tpu.memory_space<vmem>>, vector<1x2x8x8x8xf32>
    %46 = vector.shape_cast %45 : vector<1x2x8x8x8xf32> to vector<2x8x8x8xf32>
    %47 = vector.shape_cast %44 : vector<2x8x8x8xf32> to vector<1x2x8x8x8xf32>
    tpu.vector_store %arg4[%c0_38, %c0_39, %c0_40, %c0_41, %c0_42], %47 {strides = array<i32>} : memref<1x2x8x8x8xf32, #tpu.memory_space<vmem>>, vector<1x2x8x8x8xf32>,
    %cst_43 = arith.constant dense<0.000000e+00> : vector<8xf32>
    %48 = vector.multi_reduction <add>, %43, %cst_43 [0] : vector<128x8xf32> to vector<8xf32>
    %49 = vector.shape_cast %48 : vector<8xf32> to vector<1x8xf32>
    %50 = arith.mulf %43, %43 : vector<128x8xf32>
    %cst_44 = arith.constant dense<0.000000e+00> : vector<8xf32>
    %51 = vector.multi_reduction <add>, %50, %cst_44 [0] : vector<128x8xf32> to vector<8xf32>
    %52 = vector.shape_cast %51 : vector<8xf32> to vector<1x8xf32>
    %53 = tpu.concatenate %49, %52 in 0 : vector<1x8xf32>, vector<1x8xf32> -> vector<2x8xf32>
    %c0_45 = arith.constant 0 : index
    %c0_46 = arith.constant 0 : index
    %c0_47 = arith.constant 0 : index
    %c0_48 = arith.constant 0 : index
    %54 = vector.load %arg5[%c0_45, %c0_46, %c0_47, %c0_48] : memref<1x1x2x8xf32, #tpu.memory_space<vmem>>, vector<1x1x2x8xf32>
    %55 = vector.shape_cast %54 : vector<1x1x2x8xf32> to vector<2x8xf32>
    %56 = vector.shape_cast %53 : vector<2x8xf32> to vector<1x1x2x8xf32>
    tpu.vector_store %arg5[%c0_45, %c0_46, %c0_47, %c0_48], %56 {strides = array<i32>} : memref<1x1x2x8xf32, #tpu.memory_space<vmem>>, vector<1x1x2x8xf32>,
    return
  }
  func.func @transform_0(%arg0: i32, %arg1: i32) -> (i32, i32, i32, i32, i32) {
    %c0_i32 = arith.constant 0 : i32
    %c0_i32_0 = arith.constant 0 : i32
    %c0_i32_1 = arith.constant 0 : i32
    %c0_i32_2 = arith.constant 0 : i32
    %c0_i32_3 = arith.constant 0 : i32
    return %arg0, %c0_i32, %c0_i32_0, %c0_i32_1, %c0_i32_2 : i32, i32, i32, i32, i32
  }
  func.func @transform_1(%arg0: i32, %arg1: i32) -> (i32, i32) {
    %c0_i32 = arith.constant 0 : i32
    %c0_i32_0 = arith.constant 0 : i32
    %c0_i32_1 = arith.constant 0 : i32
    return %c0_i32, %c0_i32_0 : i32, i32
  }
  func.func @transform_2(%arg0: i32, %arg1: i32) -> (i32, i32, i32, i32, i32) {
    %c0_i32 = arith.constant 0 : i32
    %c0_i32_0 = arith.constant 0 : i32
    %c0_i32_1 = arith.constant 0 : i32
    %c0_i32_2 = arith.constant 0 : i32
    return %arg0, %arg1, %c0_i32, %c0_i32_0, %c0_i32_1 : i32, i32, i32, i32, i32
  }
  func.func @transform_3(%arg0: i32, %arg1: i32) -> (i32, i32, i32, i32) {
    %c0_i32 = arith.constant 0 : i32
    %c0_i32_0 = arith.constant 0 : i32
    %c0_i32_1 = arith.constant 0 : i32
    return %arg0, %arg1, %c0_i32, %c0_i32_0 : i32, i32, i32, i32
  }
}

module attributes {stable_mosaic.version = 11 : i64} {
  func.func @_double_affine_relu_kernel(%arg0: i32, %arg1: memref<8x512xf32, #tpu.memory_space<vmem>>, %arg2: memref<4x512xf32, #tpu.memory_space<vmem>>, %arg3: memref<8x512xf32, #tpu.memory_space<vmem>>) attributes {dimension_semantics = [#tpu.dimension_semantics<parallel>], iteration_bounds = array<i64: 1>, scalar_prefetch = 0 : i64, scratch_operands = 0 : i64, tpu.core_type = #tpu.core_type<tc>, window_params = [{transform_indices = @transform_0, window_bounds = array<i64: 8, 512>}, {pipeline_mode = #tpu.pipeline_mode<synchronous>, transform_indices = @transform_1, window_bounds = array<i64: 4, 512>}, {transform_indices = @transform_2, window_bounds = array<i64: 8, 512>}]} {
    %c0 = arith.constant 0 : index
    %c0_0 = arith.constant 0 : index
    %0 = vector.load %arg2[%c0, %c0_0] : memref<4x512xf32, #tpu.memory_space<vmem>>, vector<4x512xf32>
    %c0_1 = arith.constant 0 : index
    %c0_2 = arith.constant 0 : index
    %1 = vector.load %arg1[%c0_1, %c0_2] : memref<8x512xf32, #tpu.memory_space<vmem>>, vector<8x512xf32>
    %2 = vector.extract_strided_slice %0 {offsets = [0, 0], sizes = [1, 512], strides = [1, 1]} : vector<4x512xf32> to vector<1x512xf32>
    %3 = vector.broadcast %2 : vector<1x512xf32> to vector<8x512xf32>
    %4 = arith.mulf %1, %3 : vector<8x512xf32>
    %5 = vector.extract_strided_slice %0 {offsets = [1, 0], sizes = [1, 512], strides = [1, 1]} : vector<4x512xf32> to vector<1x512xf32>
    %6 = vector.broadcast %5 : vector<1x512xf32> to vector<8x512xf32>
    %7 = arith.addf %4, %6 : vector<8x512xf32>
    %cst = arith.constant 0.000000e+00 : f32
    %8 = vector.broadcast %cst : f32 to vector<8x512xf32>
    %9 = arith.maximumf %7, %8 : vector<8x512xf32>
    %10 = vector.extract_strided_slice %0 {offsets = [2, 0], sizes = [1, 512], strides = [1, 1]} : vector<4x512xf32> to vector<1x512xf32>
    %11 = vector.broadcast %10 : vector<1x512xf32> to vector<8x512xf32>
    %12 = arith.mulf %9, %11 : vector<8x512xf32>
    %13 = vector.extract_strided_slice %0 {offsets = [3, 0], sizes = [1, 512], strides = [1, 1]} : vector<4x512xf32> to vector<1x512xf32>
    %14 = vector.broadcast %13 : vector<1x512xf32> to vector<8x512xf32>
    %15 = arith.addf %12, %14 : vector<8x512xf32>
    %cst_3 = arith.constant 0.000000e+00 : f32
    %16 = vector.broadcast %cst_3 : f32 to vector<8x512xf32>
    %17 = arith.maximumf %15, %16 : vector<8x512xf32>
    %c0_4 = arith.constant 0 : index
    %c0_5 = arith.constant 0 : index
    %18 = vector.load %arg3[%c0_4, %c0_5] : memref<8x512xf32, #tpu.memory_space<vmem>>, vector<8x512xf32>
    tpu.vector_store %arg3[%c0_4, %c0_5], %17 {strides = array<i32>} : memref<8x512xf32, #tpu.memory_space<vmem>>, vector<8x512xf32>,
    return
  }
  func.func @transform_0(%arg0: i32) -> (i32, i32) {
    %c0_i32 = arith.constant 0 : i32
    %c0_i32_0 = arith.constant 0 : i32
    return %arg0, %c0_i32 : i32, i32
  }
  func.func @transform_1(%arg0: i32) -> (i32, i32) {
    %c0_i32 = arith.constant 0 : i32
    %c0_i32_0 = arith.constant 0 : i32
    %c0_i32_1 = arith.constant 0 : i32
    return %c0_i32, %c0_i32_0 : i32, i32
  }
  func.func @transform_2(%arg0: i32) -> (i32, i32) {
    %c0_i32 = arith.constant 0 : i32
    %c0_i32_0 = arith.constant 0 : i32
    return %arg0, %c0_i32 : i32, i32
  }
}

module attributes {stable_mosaic.version = 11 : i64} {
  func.func @_conv3d_kernel(%arg0: i32, %arg1: i32, %arg2: memref<1x6x10x10x8xf32, #tpu.memory_space<vmem>>, %arg3: memref<216x8xf32, #tpu.memory_space<vmem>>, %arg4: memref<1x2x8x8x8xf32, #tpu.memory_space<vmem>>, %arg5: memref<1x1x2x8xf32, #tpu.memory_space<vmem>>) attributes {dimension_semantics = [#tpu.dimension_semantics<parallel>, #tpu.dimension_semantics<parallel>], iteration_bounds = array<i64: 2, 2>, scalar_prefetch = 0 : i64, scratch_operands = 0 : i64, tpu.core_type = #tpu.core_type<tc>, window_params = [{transform_indices = @transform_0, window_bounds = array<i64: 1, 6, 10, 10, 8>}, {pipeline_mode = #tpu.pipeline_mode<synchronous>, transform_indices = @transform_1, window_bounds = array<i64: 216, 8>}, {transform_indices = @transform_2, window_bounds = array<i64: 1, 2, 8, 8, 8>}, {transform_indices = @transform_3, window_bounds = array<i64: 1, 1, 2, 8>}]} {
    %c2_i32 = arith.constant 2 : i32
    %0 = arith.muli %arg1, %c2_i32 : i32
    %c0_i32 = arith.constant 0 : i32
    %1 = arith.addi %0, %c0_i32 : i32
    %c0 = arith.constant 0 : index
    %2 = arith.index_cast %1 : i32 to index
    %c0_0 = arith.constant 0 : index
    %c0_1 = arith.constant 0 : index
    %c0_2 = arith.constant 0 : index
    %3 = vector.load %arg2[%c0, %2, %c0_0, %c0_1, %c0_2] : memref<1x6x10x10x8xf32, #tpu.memory_space<vmem>>, vector<1x2x8x8x8xf32>
    %4 = vector.shape_cast %3 : vector<1x2x8x8x8xf32> to vector<2x8x8x8xf32>
    %5 = vector.shape_cast %4 : vector<2x8x8x8xf32> to vector<128x8xf32>
    %c0_i32_3 = arith.constant 0 : i32
    %6 = arith.addi %0, %c0_i32_3 : i32
    %c0_4 = arith.constant 0 : index
    %7 = arith.index_cast %6 : i32 to index
    %c0_5 = arith.constant 0 : index
    %c1 = arith.constant 1 : index
    %c0_6 = arith.constant 0 : index
    %8 = vector.load %arg2[%c0_4, %7, %c0_5, %c1, %c0_6] : memref<1x6x10x10x8xf32, #tpu.memory_space<vmem>>, vector<1x2x8x8x8xf32>
    %9 = vector.shape_cast %8 : vector<1x2x8x8x8xf32> to vector<2x8x8x8xf32>
    %10 = vector.shape_cast %9 : vector<2x8x8x8xf32> to vector<128x8xf32>
    %c0_i32_7 = arith.constant 0 : i32
    %11 = arith.addi %0, %c0_i32_7 : i32
    %c0_8 = arith.constant 0 : index
    %12 = arith.index_cast %11 : i32 to index
    %c0_9 = arith.constant 0 : index
    %c2 = arith.constant 2 : index
    %c0_10 = arith.constant 0 : index
    %13 = vector.load %arg2[%c0_8, %12, %c0_9, %c2, %c0_10] : memref<1x6x10x10x8xf32, #tpu.memory_space<vmem>>, vector<1x2x8x8x8xf32>
    %14 = vector.shape_cast %13 : vector<1x2x8x8x8xf32> to vector<2x8x8x8xf32>
    %15 = vector.shape_cast %14 : vector<2x8x8x8xf32> to vector<128x8xf32>
    %c0_i32_11 = arith.constant 0 : i32
    %16 = arith.addi %0, %c0_i32_11 : i32
    %c0_12 = arith.constant 0 : index
    %17 = arith.index_cast %16 : i32 to index
    %c1_13 = arith.constant 1 : index
    %c0_14 = arith.constant 0 : index
    %c0_15 = arith.constant 0 : index
    %18 = vector.load %arg2[%c0_12, %17, %c1_13, %c0_14, %c0_15] : memref<1x6x10x10x8xf32, #tpu.memory_space<vmem>>, vector<1x2x8x8x8xf32>
    %19 = vector.shape_cast %18 : vector<1x2x8x8x8xf32> to vector<2x8x8x8xf32>
    %20 = vector.shape_cast %19 : vector<2x8x8x8xf32> to vector<128x8xf32>
    %c0_i32_16 = arith.constant 0 : i32
    %21 = arith.addi %0, %c0_i32_16 : i32
    %c0_17 = arith.constant 0 : index
    %22 = arith.index_cast %21 : i32 to index
    %c1_18 = arith.constant 1 : index
    %c1_19 = arith.constant 1 : index
    %c0_20 = arith.constant 0 : index
    %23 = vector.load %arg2[%c0_17, %22, %c1_18, %c1_19, %c0_20] : memref<1x6x10x10x8xf32, #tpu.memory_space<vmem>>, vector<1x2x8x8x8xf32>
    %24 = vector.shape_cast %23 : vector<1x2x8x8x8xf32> to vector<2x8x8x8xf32>
    %25 = vector.shape_cast %24 : vector<2x8x8x8xf32> to vector<128x8xf32>
    %c0_i32_21 = arith.constant 0 : i32
    %26 = arith.addi %0, %c0_i32_21 : i32
    %c0_22 = arith.constant 0 : index
    %27 = arith.index_cast %26 : i32 to index
    %c1_23 = arith.constant 1 : index
    %c2_24 = arith.constant 2 : index
    %c0_25 = arith.constant 0 : index
    %28 = vector.load %arg2[%c0_22, %27, %c1_23, %c2_24, %c0_25] : memref<1x6x10x10x8xf32, #tpu.memory_space<vmem>>, vector<1x2x8x8x8xf32>
    %29 = vector.shape_cast %28 : vector<1x2x8x8x8xf32> to vector<2x8x8x8xf32>
    %30 = vector.shape_cast %29 : vector<2x8x8x8xf32> to vector<128x8xf32>
    %c0_i32_26 = arith.constant 0 : i32
    %31 = arith.addi %0, %c0_i32_26 : i32
    %c0_27 = arith.constant 0 : index
    %32 = arith.index_cast %31 : i32 to index
    %c2_28 = arith.constant 2 : index
    %c0_29 = arith.constant 0 : index
    %c0_30 = arith.constant 0 : index
    %33 = vector.load %arg2[%c0_27, %32, %c2_28, %c0_29, %c0_30] : memref<1x6x10x10x8xf32, #tpu.memory_space<vmem>>, vector<1x2x8x8x8xf32>
    %34 = vector.shape_cast %33 : vector<1x2x8x8x8xf32> to vector<2x8x8x8xf32>
    %35 = vector.shape_cast %34 : vector<2x8x8x8xf32> to vector<128x8xf32>
    %c0_i32_31 = arith.constant 0 : i32
    %36 = arith.addi %0, %c0_i32_31 : i32
    %c0_32 = arith.constant 0 : index
    %37 = arith.index_cast %36 : i32 to index
    %c2_33 = arith.constant 2 : index
    %c1_34 = arith.constant 1 : index
    %c0_35 = arith.constant 0 : index
    %38 = vector.load %arg2[%c0_32, %37, %c2_33, %c1_34, %c0_35] : memref<1x6x10x10x8xf32, #tpu.memory_space<vmem>>, vector<1x2x8x8x8xf32>
    %39 = vector.shape_cast %38 : vector<1x2x8x8x8xf32> to vector<2x8x8x8xf32>
    %40 = vector.shape_cast %39 : vector<2x8x8x8xf32> to vector<128x8xf32>
    %c0_i32_36 = arith.constant 0 : i32
    %41 = arith.addi %0, %c0_i32_36 : i32
    %c0_37 = arith.constant 0 : index
    %42 = arith.index_cast %41 : i32 to index
    %c2_38 = arith.constant 2 : index
    %c2_39 = arith.constant 2 : index
    %c0_40 = arith.constant 0 : index
    %43 = vector.load %arg2[%c0_37, %42, %c2_38, %c2_39, %c0_40] : memref<1x6x10x10x8xf32, #tpu.memory_space<vmem>>, vector<1x2x8x8x8xf32>
    %44 = vector.shape_cast %43 : vector<1x2x8x8x8xf32> to vector<2x8x8x8xf32>
    %45 = vector.shape_cast %44 : vector<2x8x8x8xf32> to vector<128x8xf32>
    %c1_i32 = arith.constant 1 : i32
    %46 = arith.addi %0, %c1_i32 : i32
    %c0_41 = arith.constant 0 : index
    %47 = arith.index_cast %46 : i32 to index
    %c0_42 = arith.constant 0 : index
    %c0_43 = arith.constant 0 : index
    %c0_44 = arith.constant 0 : index
    %48 = vector.load %arg2[%c0_41, %47, %c0_42, %c0_43, %c0_44] : memref<1x6x10x10x8xf32, #tpu.memory_space<vmem>>, vector<1x2x8x8x8xf32>
    %49 = vector.shape_cast %48 : vector<1x2x8x8x8xf32> to vector<2x8x8x8xf32>
    %50 = vector.shape_cast %49 : vector<2x8x8x8xf32> to vector<128x8xf32>
    %c1_i32_45 = arith.constant 1 : i32
    %51 = arith.addi %0, %c1_i32_45 : i32
    %c0_46 = arith.constant 0 : index
    %52 = arith.index_cast %51 : i32 to index
    %c0_47 = arith.constant 0 : index
    %c1_48 = arith.constant 1 : index
    %c0_49 = arith.constant 0 : index
    %53 = vector.load %arg2[%c0_46, %52, %c0_47, %c1_48, %c0_49] : memref<1x6x10x10x8xf32, #tpu.memory_space<vmem>>, vector<1x2x8x8x8xf32>
    %54 = vector.shape_cast %53 : vector<1x2x8x8x8xf32> to vector<2x8x8x8xf32>
    %55 = vector.shape_cast %54 : vector<2x8x8x8xf32> to vector<128x8xf32>
    %c1_i32_50 = arith.constant 1 : i32
    %56 = arith.addi %0, %c1_i32_50 : i32
    %c0_51 = arith.constant 0 : index
    %57 = arith.index_cast %56 : i32 to index
    %c0_52 = arith.constant 0 : index
    %c2_53 = arith.constant 2 : index
    %c0_54 = arith.constant 0 : index
    %58 = vector.load %arg2[%c0_51, %57, %c0_52, %c2_53, %c0_54] : memref<1x6x10x10x8xf32, #tpu.memory_space<vmem>>, vector<1x2x8x8x8xf32>
    %59 = vector.shape_cast %58 : vector<1x2x8x8x8xf32> to vector<2x8x8x8xf32>
    %60 = vector.shape_cast %59 : vector<2x8x8x8xf32> to vector<128x8xf32>
    %c1_i32_55 = arith.constant 1 : i32
    %61 = arith.addi %0, %c1_i32_55 : i32
    %c0_56 = arith.constant 0 : index
    %62 = arith.index_cast %61 : i32 to index
    %c1_57 = arith.constant 1 : index
    %c0_58 = arith.constant 0 : index
    %c0_59 = arith.constant 0 : index
    %63 = vector.load %arg2[%c0_56, %62, %c1_57, %c0_58, %c0_59] : memref<1x6x10x10x8xf32, #tpu.memory_space<vmem>>, vector<1x2x8x8x8xf32>
    %64 = vector.shape_cast %63 : vector<1x2x8x8x8xf32> to vector<2x8x8x8xf32>
    %65 = vector.shape_cast %64 : vector<2x8x8x8xf32> to vector<128x8xf32>
    %c1_i32_60 = arith.constant 1 : i32
    %66 = arith.addi %0, %c1_i32_60 : i32
    %c0_61 = arith.constant 0 : index
    %67 = arith.index_cast %66 : i32 to index
    %c1_62 = arith.constant 1 : index
    %c1_63 = arith.constant 1 : index
    %c0_64 = arith.constant 0 : index
    %68 = vector.load %arg2[%c0_61, %67, %c1_62, %c1_63, %c0_64] : memref<1x6x10x10x8xf32, #tpu.memory_space<vmem>>, vector<1x2x8x8x8xf32>
    %69 = vector.shape_cast %68 : vector<1x2x8x8x8xf32> to vector<2x8x8x8xf32>
    %70 = vector.shape_cast %69 : vector<2x8x8x8xf32> to vector<128x8xf32>
    %c1_i32_65 = arith.constant 1 : i32
    %71 = arith.addi %0, %c1_i32_65 : i32
    %c0_66 = arith.constant 0 : index
    %72 = arith.index_cast %71 : i32 to index
    %c1_67 = arith.constant 1 : index
    %c2_68 = arith.constant 2 : index
    %c0_69 = arith.constant 0 : index
    %73 = vector.load %arg2[%c0_66, %72, %c1_67, %c2_68, %c0_69] : memref<1x6x10x10x8xf32, #tpu.memory_space<vmem>>, vector<1x2x8x8x8xf32>
    %74 = vector.shape_cast %73 : vector<1x2x8x8x8xf32> to vector<2x8x8x8xf32>
    %75 = vector.shape_cast %74 : vector<2x8x8x8xf32> to vector<128x8xf32>
    %c1_i32_70 = arith.constant 1 : i32
    %76 = arith.addi %0, %c1_i32_70 : i32
    %c0_71 = arith.constant 0 : index
    %77 = arith.index_cast %76 : i32 to index
    %c2_72 = arith.constant 2 : index
    %c0_73 = arith.constant 0 : index
    %c0_74 = arith.constant 0 : index
    %78 = vector.load %arg2[%c0_71, %77, %c2_72, %c0_73, %c0_74] : memref<1x6x10x10x8xf32, #tpu.memory_space<vmem>>, vector<1x2x8x8x8xf32>
    %79 = vector.shape_cast %78 : vector<1x2x8x8x8xf32> to vector<2x8x8x8xf32>
    %80 = vector.shape_cast %79 : vector<2x8x8x8xf32> to vector<128x8xf32>
    %c1_i32_75 = arith.constant 1 : i32
    %81 = arith.addi %0, %c1_i32_75 : i32
    %c0_76 = arith.constant 0 : index
    %82 = arith.index_cast %81 : i32 to index
    %c2_77 = arith.constant 2 : index
    %c1_78 = arith.constant 1 : index
    %c0_79 = arith.constant 0 : index
    %83 = vector.load %arg2[%c0_76, %82, %c2_77, %c1_78, %c0_79] : memref<1x6x10x10x8xf32, #tpu.memory_space<vmem>>, vector<1x2x8x8x8xf32>
    %84 = vector.shape_cast %83 : vector<1x2x8x8x8xf32> to vector<2x8x8x8xf32>
    %85 = vector.shape_cast %84 : vector<2x8x8x8xf32> to vector<128x8xf32>
    %c1_i32_80 = arith.constant 1 : i32
    %86 = arith.addi %0, %c1_i32_80 : i32
    %c0_81 = arith.constant 0 : index
    %87 = arith.index_cast %86 : i32 to index
    %c2_82 = arith.constant 2 : index
    %c2_83 = arith.constant 2 : index
    %c0_84 = arith.constant 0 : index
    %88 = vector.load %arg2[%c0_81, %87, %c2_82, %c2_83, %c0_84] : memref<1x6x10x10x8xf32, #tpu.memory_space<vmem>>, vector<1x2x8x8x8xf32>
    %89 = vector.shape_cast %88 : vector<1x2x8x8x8xf32> to vector<2x8x8x8xf32>
    %90 = vector.shape_cast %89 : vector<2x8x8x8xf32> to vector<128x8xf32>
    %c2_i32_85 = arith.constant 2 : i32
    %91 = arith.addi %0, %c2_i32_85 : i32
    %c0_86 = arith.constant 0 : index
    %92 = arith.index_cast %91 : i32 to index
    %c0_87 = arith.constant 0 : index
    %c0_88 = arith.constant 0 : index
    %c0_89 = arith.constant 0 : index
    %93 = vector.load %arg2[%c0_86, %92, %c0_87, %c0_88, %c0_89] : memref<1x6x10x10x8xf32, #tpu.memory_space<vmem>>, vector<1x2x8x8x8xf32>
    %94 = vector.shape_cast %93 : vector<1x2x8x8x8xf32> to vector<2x8x8x8xf32>
    %95 = vector.shape_cast %94 : vector<2x8x8x8xf32> to vector<128x8xf32>
    %c2_i32_90 = arith.constant 2 : i32
    %96 = arith.addi %0, %c2_i32_90 : i32
    %c0_91 = arith.constant 0 : index
    %97 = arith.index_cast %96 : i32 to index
    %c0_92 = arith.constant 0 : index
    %c1_93 = arith.constant 1 : index
    %c0_94 = arith.constant 0 : index
    %98 = vector.load %arg2[%c0_91, %97, %c0_92, %c1_93, %c0_94] : memref<1x6x10x10x8xf32, #tpu.memory_space<vmem>>, vector<1x2x8x8x8xf32>
    %99 = vector.shape_cast %98 : vector<1x2x8x8x8xf32> to vector<2x8x8x8xf32>
    %100 = vector.shape_cast %99 : vector<2x8x8x8xf32> to vector<128x8xf32>
    %c2_i32_95 = arith.constant 2 : i32
    %101 = arith.addi %0, %c2_i32_95 : i32
    %c0_96 = arith.constant 0 : index
    %102 = arith.index_cast %101 : i32 to index
    %c0_97 = arith.constant 0 : index
    %c2_98 = arith.constant 2 : index
    %c0_99 = arith.constant 0 : index
    %103 = vector.load %arg2[%c0_96, %102, %c0_97, %c2_98, %c0_99] : memref<1x6x10x10x8xf32, #tpu.memory_space<vmem>>, vector<1x2x8x8x8xf32>
    %104 = vector.shape_cast %103 : vector<1x2x8x8x8xf32> to vector<2x8x8x8xf32>
    %105 = vector.shape_cast %104 : vector<2x8x8x8xf32> to vector<128x8xf32>
    %c2_i32_100 = arith.constant 2 : i32
    %106 = arith.addi %0, %c2_i32_100 : i32
    %c0_101 = arith.constant 0 : index
    %107 = arith.index_cast %106 : i32 to index
    %c1_102 = arith.constant 1 : index
    %c0_103 = arith.constant 0 : index
    %c0_104 = arith.constant 0 : index
    %108 = vector.load %arg2[%c0_101, %107, %c1_102, %c0_103, %c0_104] : memref<1x6x10x10x8xf32, #tpu.memory_space<vmem>>, vector<1x2x8x8x8xf32>
    %109 = vector.shape_cast %108 : vector<1x2x8x8x8xf32> to vector<2x8x8x8xf32>
    %110 = vector.shape_cast %109 : vector<2x8x8x8xf32> to vector<128x8xf32>
    %c2_i32_105 = arith.constant 2 : i32
    %111 = arith.addi %0, %c2_i32_105 : i32
    %c0_106 = arith.constant 0 : index
    %112 = arith.index_cast %111 : i32 to index
    %c1_107 = arith.constant 1 : index
    %c1_108 = arith.constant 1 : index
    %c0_109 = arith.constant 0 : index
    %113 = vector.load %arg2[%c0_106, %112, %c1_107, %c1_108, %c0_109] : memref<1x6x10x10x8xf32, #tpu.memory_space<vmem>>, vector<1x2x8x8x8xf32>
    %114 = vector.shape_cast %113 : vector<1x2x8x8x8xf32> to vector<2x8x8x8xf32>
    %115 = vector.shape_cast %114 : vector<2x8x8x8xf32> to vector<128x8xf32>
    %c2_i32_110 = arith.constant 2 : i32
    %116 = arith.addi %0, %c2_i32_110 : i32
    %c0_111 = arith.constant 0 : index
    %117 = arith.index_cast %116 : i32 to index
    %c1_112 = arith.constant 1 : index
    %c2_113 = arith.constant 2 : index
    %c0_114 = arith.constant 0 : index
    %118 = vector.load %arg2[%c0_111, %117, %c1_112, %c2_113, %c0_114] : memref<1x6x10x10x8xf32, #tpu.memory_space<vmem>>, vector<1x2x8x8x8xf32>
    %119 = vector.shape_cast %118 : vector<1x2x8x8x8xf32> to vector<2x8x8x8xf32>
    %120 = vector.shape_cast %119 : vector<2x8x8x8xf32> to vector<128x8xf32>
    %c2_i32_115 = arith.constant 2 : i32
    %121 = arith.addi %0, %c2_i32_115 : i32
    %c0_116 = arith.constant 0 : index
    %122 = arith.index_cast %121 : i32 to index
    %c2_117 = arith.constant 2 : index
    %c0_118 = arith.constant 0 : index
    %c0_119 = arith.constant 0 : index
    %123 = vector.load %arg2[%c0_116, %122, %c2_117, %c0_118, %c0_119] : memref<1x6x10x10x8xf32, #tpu.memory_space<vmem>>, vector<1x2x8x8x8xf32>
    %124 = vector.shape_cast %123 : vector<1x2x8x8x8xf32> to vector<2x8x8x8xf32>
    %125 = vector.shape_cast %124 : vector<2x8x8x8xf32> to vector<128x8xf32>
    %c2_i32_120 = arith.constant 2 : i32
    %126 = arith.addi %0, %c2_i32_120 : i32
    %c0_121 = arith.constant 0 : index
    %127 = arith.index_cast %126 : i32 to index
    %c2_122 = arith.constant 2 : index
    %c1_123 = arith.constant 1 : index
    %c0_124 = arith.constant 0 : index
    %128 = vector.load %arg2[%c0_121, %127, %c2_122, %c1_123, %c0_124] : memref<1x6x10x10x8xf32, #tpu.memory_space<vmem>>, vector<1x2x8x8x8xf32>
    %129 = vector.shape_cast %128 : vector<1x2x8x8x8xf32> to vector<2x8x8x8xf32>
    %130 = vector.shape_cast %129 : vector<2x8x8x8xf32> to vector<128x8xf32>
    %c2_i32_125 = arith.constant 2 : i32
    %131 = arith.addi %0, %c2_i32_125 : i32
    %c0_126 = arith.constant 0 : index
    %132 = arith.index_cast %131 : i32 to index
    %c2_127 = arith.constant 2 : index
    %c2_128 = arith.constant 2 : index
    %c0_129 = arith.constant 0 : index
    %133 = vector.load %arg2[%c0_126, %132, %c2_127, %c2_128, %c0_129] : memref<1x6x10x10x8xf32, #tpu.memory_space<vmem>>, vector<1x2x8x8x8xf32>
    %134 = vector.shape_cast %133 : vector<1x2x8x8x8xf32> to vector<2x8x8x8xf32>
    %135 = vector.shape_cast %134 : vector<2x8x8x8xf32> to vector<128x8xf32>
    %136 = tpu.concatenate %5, %10, %15, %20, %25, %30, %35, %40, %45, %50, %55, %60, %65, %70, %75, %80 in 1 : vector<128x8xf32>, vector<128x8xf32>, vector<128x8xf32>, vector<128x8xf32>, vector<128x8xf32>, vector<128x8xf32>, vector<128x8xf32>, vector<128x8xf32>, vector<128x8xf32>, vector<128x8xf32>, vector<128x8xf32>, vector<128x8xf32>, vector<128x8xf32>, vector<128x8xf32>, vector<128x8xf32>, vector<128x8xf32> -> vector<128x128xf32>
    %137 = tpu.concatenate %85, %90, %95, %100, %105, %110, %115, %120, %125, %130, %135 in 1 : vector<128x8xf32>, vector<128x8xf32>, vector<128x8xf32>, vector<128x8xf32>, vector<128x8xf32>, vector<128x8xf32>, vector<128x8xf32>, vector<128x8xf32>, vector<128x8xf32>, vector<128x8xf32>, vector<128x8xf32> -> vector<128x88xf32>
    %138 = tpu.concatenate %136, %137 in 1 : vector<128x128xf32>, vector<128x88xf32> -> vector<128x216xf32>
    %c0_130 = arith.constant 0 : index
    %c0_131 = arith.constant 0 : index
    %139 = vector.load %arg3[%c0_130, %c0_131] : memref<216x8xf32, #tpu.memory_space<vmem>>, vector<216x8xf32>
    %cst = arith.constant dense<0.000000e+00> : vector<128x8xf32>
    %140 = tpu.matmul %138, %139, %cst {dimension_numbers = #tpu.dot_dimension_numbers<[1], [0], [0], [1], [0, 0, 1, 1], [], []>} : vector<128x216xf32>, vector<216x8xf32>, vector<128x8xf32> -> vector<128x8xf32>
    %141 = vector.shape_cast %140 : vector<128x8xf32> to vector<2x8x8x8xf32>
    %c0_132 = arith.constant 0 : index
    %c0_133 = arith.constant 0 : index
    %c0_134 = arith.constant 0 : index
    %c0_135 = arith.constant 0 : index
    %c0_136 = arith.constant 0 : index
    %142 = vector.load %arg4[%c0_132, %c0_133, %c0_134, %c0_135, %c0_136] : memref<1x2x8x8x8xf32, #tpu.memory_space<vmem>>, vector<1x2x8x8x8xf32>
    %143 = vector.shape_cast %142 : vector<1x2x8x8x8xf32> to vector<2x8x8x8xf32>
    %144 = vector.shape_cast %141 : vector<2x8x8x8xf32> to vector<1x2x8x8x8xf32>
    tpu.vector_store %arg4[%c0_132, %c0_133, %c0_134, %c0_135, %c0_136], %144 {strides = array<i32>} : memref<1x2x8x8x8xf32, #tpu.memory_space<vmem>>, vector<1x2x8x8x8xf32>,
    %cst_137 = arith.constant dense<0.000000e+00> : vector<8xf32>
    %145 = vector.multi_reduction <add>, %140, %cst_137 [0] : vector<128x8xf32> to vector<8xf32>
    %146 = vector.shape_cast %145 : vector<8xf32> to vector<1x8xf32>
    %147 = arith.mulf %140, %140 : vector<128x8xf32>
    %cst_138 = arith.constant dense<0.000000e+00> : vector<8xf32>
    %148 = vector.multi_reduction <add>, %147, %cst_138 [0] : vector<128x8xf32> to vector<8xf32>
    %149 = vector.shape_cast %148 : vector<8xf32> to vector<1x8xf32>
    %150 = tpu.concatenate %146, %149 in 0 : vector<1x8xf32>, vector<1x8xf32> -> vector<2x8xf32>
    %c0_139 = arith.constant 0 : index
    %c0_140 = arith.constant 0 : index
    %c0_141 = arith.constant 0 : index
    %c0_142 = arith.constant 0 : index
    %151 = vector.load %arg5[%c0_139, %c0_140, %c0_141, %c0_142] : memref<1x1x2x8xf32, #tpu.memory_space<vmem>>, vector<1x1x2x8xf32>
    %152 = vector.shape_cast %151 : vector<1x1x2x8xf32> to vector<2x8xf32>
    %153 = vector.shape_cast %150 : vector<2x8xf32> to vector<1x1x2x8xf32>
    tpu.vector_store %arg5[%c0_139, %c0_140, %c0_141, %c0_142], %153 {strides = array<i32>} : memref<1x1x2x8xf32, #tpu.memory_space<vmem>>, vector<1x1x2x8xf32>,
    return
  }
  func.func @transform_0(%arg0: i32, %arg1: i32) -> (i32, i32, i32, i32, i32) {
    %c0_i32 = arith.constant 0 : i32
    %c0_i32_0 = arith.constant 0 : i32
    %c0_i32_1 = arith.constant 0 : i32
    %c0_i32_2 = arith.constant 0 : i32
    %c0_i32_3 = arith.constant 0 : i32
    return %arg0, %c0_i32, %c0_i32_0, %c0_i32_1, %c0_i32_2 : i32, i32, i32, i32, i32
  }
  func.func @transform_1(%arg0: i32, %arg1: i32) -> (i32, i32) {
    %c0_i32 = arith.constant 0 : i32
    %c0_i32_0 = arith.constant 0 : i32
    %c0_i32_1 = arith.constant 0 : i32
    return %c0_i32, %c0_i32_0 : i32, i32
  }
  func.func @transform_2(%arg0: i32, %arg1: i32) -> (i32, i32, i32, i32, i32) {
    %c0_i32 = arith.constant 0 : i32
    %c0_i32_0 = arith.constant 0 : i32
    %c0_i32_1 = arith.constant 0 : i32
    %c0_i32_2 = arith.constant 0 : i32
    return %arg0, %arg1, %c0_i32, %c0_i32_0, %c0_i32_1 : i32, i32, i32, i32, i32
  }
  func.func @transform_3(%arg0: i32, %arg1: i32) -> (i32, i32, i32, i32) {
    %c0_i32 = arith.constant 0 : i32
    %c0_i32_0 = arith.constant 0 : i32
    %c0_i32_1 = arith.constant 0 : i32
    return %arg0, %arg1, %c0_i32, %c0_i32_0 : i32, i32, i32, i32
  }
}

module attributes {stable_mosaic.version = 11 : i64} {
  func.func @_residual_merge_kernel(%arg0: i32, %arg1: memref<8x512xf32, #tpu.memory_space<vmem>>, %arg2: memref<8x512xf32, #tpu.memory_space<vmem>>, %arg3: memref<8x512xf32, #tpu.memory_space<vmem>>, %arg4: memref<8x512xf32, #tpu.memory_space<vmem>>) attributes {dimension_semantics = [#tpu.dimension_semantics<parallel>], iteration_bounds = array<i64: 1>, scalar_prefetch = 0 : i64, scratch_operands = 0 : i64, tpu.core_type = #tpu.core_type<tc>, window_params = [{transform_indices = @transform_0, window_bounds = array<i64: 8, 512>}, {transform_indices = @transform_1, window_bounds = array<i64: 8, 512>}, {pipeline_mode = #tpu.pipeline_mode<synchronous>, transform_indices = @transform_2, window_bounds = array<i64: 8, 512>}, {transform_indices = @transform_3, window_bounds = array<i64: 8, 512>}]} {
    %c0 = arith.constant 0 : index
    %c0_0 = arith.constant 0 : index
    %0 = vector.load %arg3[%c0, %c0_0] : memref<8x512xf32, #tpu.memory_space<vmem>>, vector<8x512xf32>
    %c0_1 = arith.constant 0 : index
    %c0_2 = arith.constant 0 : index
    %1 = vector.load %arg1[%c0_1, %c0_2] : memref<8x512xf32, #tpu.memory_space<vmem>>, vector<8x512xf32>
    %2 = vector.extract_strided_slice %0 {offsets = [0, 0], sizes = [1, 512], strides = [1, 1]} : vector<8x512xf32> to vector<1x512xf32>
    %3 = vector.broadcast %2 : vector<1x512xf32> to vector<8x512xf32>
    %4 = arith.mulf %1, %3 : vector<8x512xf32>
    %5 = vector.extract_strided_slice %0 {offsets = [1, 0], sizes = [1, 512], strides = [1, 1]} : vector<8x512xf32> to vector<1x512xf32>
    %6 = vector.broadcast %5 : vector<1x512xf32> to vector<8x512xf32>
    %7 = arith.addf %4, %6 : vector<8x512xf32>
    %cst = arith.constant 0.000000e+00 : f32
    %8 = vector.broadcast %cst : f32 to vector<8x512xf32>
    %9 = arith.maximumf %7, %8 : vector<8x512xf32>
    %10 = vector.extract_strided_slice %0 {offsets = [2, 0], sizes = [1, 512], strides = [1, 1]} : vector<8x512xf32> to vector<1x512xf32>
    %11 = vector.broadcast %10 : vector<1x512xf32> to vector<8x512xf32>
    %12 = arith.mulf %9, %11 : vector<8x512xf32>
    %13 = vector.extract_strided_slice %0 {offsets = [3, 0], sizes = [1, 512], strides = [1, 1]} : vector<8x512xf32> to vector<1x512xf32>
    %14 = vector.broadcast %13 : vector<1x512xf32> to vector<8x512xf32>
    %15 = arith.addf %12, %14 : vector<8x512xf32>
    %c0_3 = arith.constant 0 : index
    %c0_4 = arith.constant 0 : index
    %16 = vector.load %arg2[%c0_3, %c0_4] : memref<8x512xf32, #tpu.memory_space<vmem>>, vector<8x512xf32>
    %17 = vector.extract_strided_slice %0 {offsets = [4, 0], sizes = [1, 512], strides = [1, 1]} : vector<8x512xf32> to vector<1x512xf32>
    %18 = vector.broadcast %17 : vector<1x512xf32> to vector<8x512xf32>
    %19 = arith.mulf %16, %18 : vector<8x512xf32>
    %20 = vector.extract_strided_slice %0 {offsets = [5, 0], sizes = [1, 512], strides = [1, 1]} : vector<8x512xf32> to vector<1x512xf32>
    %21 = vector.broadcast %20 : vector<1x512xf32> to vector<8x512xf32>
    %22 = arith.addf %19, %21 : vector<8x512xf32>
    %cst_5 = arith.constant 0.000000e+00 : f32
    %23 = vector.broadcast %cst_5 : f32 to vector<8x512xf32>
    %24 = arith.maximumf %22, %23 : vector<8x512xf32>
    %25 = vector.extract_strided_slice %0 {offsets = [6, 0], sizes = [1, 512], strides = [1, 1]} : vector<8x512xf32> to vector<1x512xf32>
    %26 = vector.broadcast %25 : vector<1x512xf32> to vector<8x512xf32>
    %27 = arith.mulf %24, %26 : vector<8x512xf32>
    %28 = vector.extract_strided_slice %0 {offsets = [7, 0], sizes = [1, 512], strides = [1, 1]} : vector<8x512xf32> to vector<1x512xf32>
    %29 = vector.broadcast %28 : vector<1x512xf32> to vector<8x512xf32>
    %30 = arith.addf %27, %29 : vector<8x512xf32>
    %31 = arith.addf %30, %15 : vector<8x512xf32>
    %cst_6 = arith.constant 0.000000e+00 : f32
    %32 = vector.broadcast %cst_6 : f32 to vector<8x512xf32>
    %33 = arith.maximumf %31, %32 : vector<8x512xf32>
    %c0_7 = arith.constant 0 : index
    %c0_8 = arith.constant 0 : index
    %34 = vector.load %arg4[%c0_7, %c0_8] : memref<8x512xf32, #tpu.memory_space<vmem>>, vector<8x512xf32>
    tpu.vector_store %arg4[%c0_7, %c0_8], %33 {strides = array<i32>} : memref<8x512xf32, #tpu.memory_space<vmem>>, vector<8x512xf32>,
    return
  }
  func.func @transform_0(%arg0: i32) -> (i32, i32) {
    %c0_i32 = arith.constant 0 : i32
    %c0_i32_0 = arith.constant 0 : i32
    return %arg0, %c0_i32 : i32, i32
  }
  func.func @transform_1(%arg0: i32) -> (i32, i32) {
    %c0_i32 = arith.constant 0 : i32
    %c0_i32_0 = arith.constant 0 : i32
    return %arg0, %c0_i32 : i32, i32
  }
  func.func @transform_2(%arg0: i32) -> (i32, i32) {
    %c0_i32 = arith.constant 0 : i32
    %c0_i32_0 = arith.constant 0 : i32
    %c0_i32_1 = arith.constant 0 : i32
    return %c0_i32, %c0_i32_0 : i32, i32
  }
  func.func @transform_3(%arg0: i32) -> (i32, i32) {
    %c0_i32 = arith.constant 0 : i32
    %c0_i32_0 = arith.constant 0 : i32
    return %arg0, %c0_i32 : i32, i32
  }
}

module attributes {stable_mosaic.version = 11 : i64} {
  func.func @_residual_merge_kernel(%arg0: i32, %arg1: memref<8x512xf32, #tpu.memory_space<vmem>>, %arg2: memref<8x512xf32, #tpu.memory_space<vmem>>, %arg3: memref<4x512xf32, #tpu.memory_space<vmem>>, %arg4: memref<8x512xf32, #tpu.memory_space<vmem>>) attributes {dimension_semantics = [#tpu.dimension_semantics<parallel>], iteration_bounds = array<i64: 1>, scalar_prefetch = 0 : i64, scratch_operands = 0 : i64, tpu.core_type = #tpu.core_type<tc>, window_params = [{transform_indices = @transform_0, window_bounds = array<i64: 8, 512>}, {transform_indices = @transform_1, window_bounds = array<i64: 8, 512>}, {pipeline_mode = #tpu.pipeline_mode<synchronous>, transform_indices = @transform_2, window_bounds = array<i64: 4, 512>}, {transform_indices = @transform_3, window_bounds = array<i64: 8, 512>}]} {
    %c0 = arith.constant 0 : index
    %c0_0 = arith.constant 0 : index
    %0 = vector.load %arg3[%c0, %c0_0] : memref<4x512xf32, #tpu.memory_space<vmem>>, vector<4x512xf32>
    %c0_1 = arith.constant 0 : index
    %c0_2 = arith.constant 0 : index
    %1 = vector.load %arg1[%c0_1, %c0_2] : memref<8x512xf32, #tpu.memory_space<vmem>>, vector<8x512xf32>
    %2 = vector.extract_strided_slice %0 {offsets = [0, 0], sizes = [1, 512], strides = [1, 1]} : vector<4x512xf32> to vector<1x512xf32>
    %3 = vector.broadcast %2 : vector<1x512xf32> to vector<8x512xf32>
    %4 = arith.mulf %1, %3 : vector<8x512xf32>
    %5 = vector.extract_strided_slice %0 {offsets = [1, 0], sizes = [1, 512], strides = [1, 1]} : vector<4x512xf32> to vector<1x512xf32>
    %6 = vector.broadcast %5 : vector<1x512xf32> to vector<8x512xf32>
    %7 = arith.addf %4, %6 : vector<8x512xf32>
    %cst = arith.constant 0.000000e+00 : f32
    %8 = vector.broadcast %cst : f32 to vector<8x512xf32>
    %9 = arith.maximumf %7, %8 : vector<8x512xf32>
    %10 = vector.extract_strided_slice %0 {offsets = [2, 0], sizes = [1, 512], strides = [1, 1]} : vector<4x512xf32> to vector<1x512xf32>
    %11 = vector.broadcast %10 : vector<1x512xf32> to vector<8x512xf32>
    %12 = arith.mulf %9, %11 : vector<8x512xf32>
    %13 = vector.extract_strided_slice %0 {offsets = [3, 0], sizes = [1, 512], strides = [1, 1]} : vector<4x512xf32> to vector<1x512xf32>
    %14 = vector.broadcast %13 : vector<1x512xf32> to vector<8x512xf32>
    %15 = arith.addf %12, %14 : vector<8x512xf32>
    %c0_3 = arith.constant 0 : index
    %c0_4 = arith.constant 0 : index
    %16 = vector.load %arg2[%c0_3, %c0_4] : memref<8x512xf32, #tpu.memory_space<vmem>>, vector<8x512xf32>
    %17 = arith.addf %16, %15 : vector<8x512xf32>
    %cst_5 = arith.constant 0.000000e+00 : f32
    %18 = vector.broadcast %cst_5 : f32 to vector<8x512xf32>
    %19 = arith.maximumf %17, %18 : vector<8x512xf32>
    %c0_6 = arith.constant 0 : index
    %c0_7 = arith.constant 0 : index
    %20 = vector.load %arg4[%c0_6, %c0_7] : memref<8x512xf32, #tpu.memory_space<vmem>>, vector<8x512xf32>
    tpu.vector_store %arg4[%c0_6, %c0_7], %19 {strides = array<i32>} : memref<8x512xf32, #tpu.memory_space<vmem>>, vector<8x512xf32>,
    return
  }
  func.func @transform_0(%arg0: i32) -> (i32, i32) {
    %c0_i32 = arith.constant 0 : i32
    %c0_i32_0 = arith.constant 0 : i32
    return %arg0, %c0_i32 : i32, i32
  }
  func.func @transform_1(%arg0: i32) -> (i32, i32) {
    %c0_i32 = arith.constant 0 : i32
    %c0_i32_0 = arith.constant 0 : i32
    return %arg0, %c0_i32 : i32, i32
  }
  func.func @transform_2(%arg0: i32) -> (i32, i32) {
    %c0_i32 = arith.constant 0 : i32
    %c0_i32_0 = arith.constant 0 : i32
    %c0_i32_1 = arith.constant 0 : i32
    return %c0_i32, %c0_i32_0 : i32, i32
  }
  func.func @transform_3(%arg0: i32) -> (i32, i32) {
    %c0_i32 = arith.constant 0 : i32
    %c0_i32_0 = arith.constant 0 : i32
    return %arg0, %c0_i32 : i32, i32
  }
}

</mosaic_0001>

<llo_original>
// kernel: tile.223
$region0: #{tile.223}
  #allocation0 [shape = 's32[1]{0}', space=sflag, size = 0x4, scoped, tag = 'scoped memory for tile.223']
  %s0 = inlined_call_operand.vmem [shape: f32[8], index: 0, kind: input, shape index: {}]
  %s1 = inlined_call_operand.vmem [shape: f32[64,8], index: 1, kind: output, shape index: {}]
  // Predicated region
  $region2: #{tile.223} parent=0 // pred_check
    _
  $region3: #{tile.223} parent=0 // pred_check_branch
    %3 = sbr.rel (0) target = $region5
  $region4: #{tile.223} parent=0 // pred_region
    _
  $region5: #{tile.223} parent=0 // pred_fallthru
    _
  %v4 = vld [vmem:[%s0] ss:$0 sm:$0xff]
  %5 = vst [vmem:[%s1] sm:$0xff] %v4
  %s6 = scalar_lea.vmem %s1, 8
  %7 = vst [vmem:[%s6] sm:$0xff] %v4
  %s8 = scalar_lea.vmem %s1, 16
  %9 = vst [vmem:[%s8] sm:$0xff] %v4
  %s10 = scalar_lea.vmem %s1, 24
  %11 = vst [vmem:[%s10] sm:$0xff] %v4
  %s12 = scalar_lea.vmem %s1, 32
  %13 = vst [vmem:[%s12] sm:$0xff] %v4
  %s14 = scalar_lea.vmem %s1, 40
  %15 = vst [vmem:[%s14] sm:$0xff] %v4
  %s16 = scalar_lea.vmem %s1, 48
  %17 = vst [vmem:[%s16] sm:$0xff] %v4
  %s18 = scalar_lea.vmem %s1, 56
  %19 = vst [vmem:[%s18] sm:$0xff] %v4

// kernel: tile.237
$region0: #{tile.237}
  %s0 = inlined_call_operand.vmem [shape: f32[64,8], index: 0, kind: input, shape index: {}]
  %s1 = inlined_call_operand.vmem [shape: f32[1,512], index: 1, kind: output, shape index: {}]
  $region1: #{tile.237} parent=0
    #allocation0 [shape = 'u8[16384]{0}', space=vmem, size = 0x4000, scoped, tag = 'scoped mem for output reshape']
    %s2 = smov 3
    %v3 = vld [vmem:[%s0] ss:$16 sm:%s2]
    %s4 = smov 12
    %v5 = vld [vmem:[%s0] ss:$16 sm:%s4]
    %vm6 = vcmask 1043458
    %v7 = vsel %vm6, %v5, %v3
    %vm8 = vcmask 64512
    %9 = vst.msk [vmem:[#allocation0] ss:$8 sm:$0xf] %vm8, %v7
    %s10 = scalar_lea.vmem %s0, 15
    %s11 = smov 3
    %v12 = vld [vmem:[%s10] ss:$16 sm:%s11]
    %s13 = scalar_lea.vmem %s0, 15
    %s14 = smov 12
    %v15 = vld [vmem:[%s13] ss:$16 sm:%s14]
    %vm16 = vcmask 1043458
    %v17 = vsel %vm16, %v15, %v12
    %18 = vrot.lane.b32.xlu0 %v17, 120
    %v19 = vpop.permute.xlu0 %18
    %vm20 = vcmask 1048512
    %21 = vst.msk [vmem:[#allocation0] ss:$8 sm:$0xf] %vm20, %v19
    %s22 = scalar_lea.vmem %s0, 14
    %s23 = smov 3
    %v24 = vld [vmem:[%s22] ss:$16 sm:%s23]
    %s25 = scalar_lea.vmem %s0, 14
    %s26 = smov 12
    %v27 = vld [vmem:[%s25] ss:$16 sm:%s26]
    %vm28 = vcmask 1043458
    %v29 = vsel %vm28, %v27, %v24
    %30 = vrot.lane.b32.xlu0 %v29, 112
    %v31 = vpop.permute.xlu0 %30
    %vm32 = vcmask 982912
    %33 = vst.msk [vmem:[#allocation0] ss:$8 sm:$0xf] %vm32, %v31
    %s34 = scalar_lea.vmem %s0, 13
    %s35 = smov 3
    %v36 = vld [vmem:[%s34] ss:$16 sm:%s35]
    %s37 = scalar_lea.vmem %s0, 13
    %s38 = smov 12
    %v39 = vld [vmem:[%s37] ss:$16 sm:%s38]
    %vm40 = vcmask 1043458
    %v41 = vsel %vm40, %v39, %v36
    %42 = vrot.lane.b32.xlu0 %v41, 104
    %v43 = vpop.permute.xlu0 %42
    %vm44 = vcmask 917312
    %45 = vst.msk [vmem:[#allocation0] ss:$8 sm:$0xf] %vm44, %v43
    %s46 = scalar_lea.vmem %s0, 12
    %s47 = smov 3
    %v48 = vld [vmem:[%s46] ss:$16 sm:%s47]
    %s49 = scalar_lea.vmem %s0, 12
    %s50 = smov 12
    %v51 = vld [vmem:[%s49] ss:$16 sm:%s50]
    %vm52 = vcmask 1043458
    %v53 = vsel %vm52, %v51, %v48
    %54 = vrot.lane.b32.xlu0 %v53, 96
    %v55 = vpop.permute.xlu0 %54
    %vm56 = vcmask 851712
    %57 = vst.msk [vmem:[#allocation0] ss:$8 sm:$0xf] %vm56, %v55
    %s58 = scalar_lea.vmem %s0, 11
    %s59 = smov 3
    %v60 = vld [vmem:[%s58] ss:$16 sm:%s59]
    %s61 = scalar_lea.vmem %s0, 11
    %s62 = smov 12
    %v63 = vld [vmem:[%s61] ss:$16 sm:%s62]
    %vm64 = vcmask 1043458
    %v65 = vsel %vm64, %v63, %v60
    %66 = vrot.lane.b32.xlu0 %v65, 88
    %v67 = vpop.permute.xlu0 %66
    %vm68 = vcmask 786112
    %69 = vst.msk [vmem:[#allocation0] ss:$8 sm:$0xf] %vm68, %v67
    %s70 = scalar_lea.vmem %s0, 10
    %s71 = smov 3
    %v72 = vld [vmem:[%s70] ss:$16 sm:%s71]
    %s73 = scalar_lea.vmem %s0, 10
    %s74 = smov 12
    %v75 = vld [vmem:[%s73] ss:$16 sm:%s74]
    %vm76 = vcmask 1043458
    %v77 = vsel %vm76, %v75, %v72
    %78 = vrot.lane.b32.xlu0 %v77, 80
    %v79 = vpop.permute.xlu0 %78
    %vm80 = vcmask 720512
    %81 = vst.msk [vmem:[#allocation0] ss:$8 sm:$0xf] %vm80, %v79
    %s82 = scalar_lea.vmem %s0, 9
    %s83 = smov 3
    %v84 = vld [vmem:[%s82] ss:$16 sm:%s83]
    %s85 = scalar_lea.vmem %s0, 9
    %s86 = smov 12
    %v87 = vld [vmem:[%s85] ss:$16 sm:%s86]
    %vm88 = vcmask 1043458
    %v89 = vsel %vm88, %v87, %v84
    %90 = vrot.lane.b32.xlu0 %v89, 72
    %v91 = vpop.permute.xlu0 %90
    %vm92 = vcmask 654912
    %93 = vst.msk [vmem:[#allocation0] ss:$8 sm:$0xf] %vm92, %v91
    %s94 = scalar_lea.vmem %s0, 8
    %s95 = smov 3
    %v96 = vld [vmem:[%s94] ss:$16 sm:%s95]
    %s97 = scalar_lea.vmem %s0, 8
    %s98 = smov 12
    %v99 = vld [vmem:[%s97] ss:$16 sm:%s98]
    %vm100 = vcmask 1043458
    %v101 = vsel %vm100, %v99, %v96
    %102 = vrot.lane.b32.xlu0 %v101, 64
    %v103 = vpop.permute.xlu0 %102
    %vm104 = vcmask 589312
    %105 = vst.msk [vmem:[#allocation0] ss:$8 sm:$0xf] %vm104, %v103
    %s106 = scalar_lea.vmem %s0, 7
    %s107 = smov 3
    %v108 = vld [vmem:[%s106] ss:$16 sm:%s107]
    %s109 = scalar_lea.vmem %s0, 7
    %s110 = smov 12
    %v111 = vld [vmem:[%s109] ss:$16 sm:%s110]
    %vm112 = vcmask 1043458
    %v113 = vsel %vm112, %v111, %v108
    %114 = vrot.lane.b32.xlu0 %v113, 56
    %v115 = vpop.permute.xlu0 %114
    %vm116 = vcmask 523712
    %117 = vst.msk [vmem:[#allocation0] ss:$8 sm:$0xf] %vm116, %v115
    %s118 = scalar_lea.vmem %s0, 6
    %s119 = smov 3
    %v120 = vld [vmem:[%s118] ss:$16 sm:%s119]
    %s121 = scalar_lea.vmem %s0, 6
    %s122 = smov 12
    %v123 = vld [vmem:[%s121] ss:$16 sm:%s122]
    %vm124 = vcmask 1043458
    %v125 = vsel %vm124, %v123, %v120
    %126 = vrot.lane.b32.xlu0 %v125, 48
    %v127 = vpop.permute.xlu0 %126
    %vm128 = vcmask 458112
    %129 = vst.msk [vmem:[#allocation0] ss:$8 sm:$0xf] %vm128, %v127
    %s130 = scalar_lea.vmem %s0, 5
    %s131 = smov 3
    %v132 = vld [vmem:[%s130] ss:$16 sm:%s131]
    %s133 = scalar_lea.vmem %s0, 5
    %s134 = smov 12
    %v135 = vld [vmem:[%s133] ss:$16 sm:%s134]
    %vm136 = vcmask 1043458
    %v137 = vsel %vm136, %v135, %v132
    %138 = vrot.lane.b32.xlu0 %v137, 40
    %v139 = vpop.permute.xlu0 %138
    %vm140 = vcmask 392512
    %141 = vst.msk [vmem:[#allocation0] ss:$8 sm:$0xf] %vm140, %v139
    %s142 = scalar_lea.vmem %s0, 4
    %s143 = smov 3
    %v144 = vld [vmem:[%s142] ss:$16 sm:%s143]
    %s145 = scalar_lea.vmem %s0, 4
    %s146 = smov 12
    %v147 = vld [vmem:[%s145] ss:$16 sm:%s146]
    %vm148 = vcmask 1043458
    %v149 = vsel %vm148, %v147, %v144
    %150 = vrot.lane.b32.xlu0 %v149, 32
    %v151 = vpop.permute.xlu0 %150
    %vm152 = vcmask 326912
    %153 = vst.msk [vmem:[#allocation0] ss:$8 sm:$0xf] %vm152, %v151
    %s154 = scalar_lea.vmem %s0, 3
    %s155 = smov 3
    %v156 = vld [vmem:[%s154] ss:$16 sm:%s155]
    %s157 = scalar_lea.vmem %s0, 3
    %s158 = smov 12
    %v159 = vld [vmem:[%s157] ss:$16 sm:%s158]
    %vm160 = vcmask 1043458
    %v161 = vsel %vm160, %v159, %v156
    %162 = vrot.lane.b32.xlu0 %v161, 24
    %v163 = vpop.permute.xlu0 %162
    %vm164 = vcmask 261312
    %165 = vst.msk [vmem:[#allocation0] ss:$8 sm:$0xf] %vm164, %v163
    %s166 = scalar_lea.vmem %s0, 2
    %s167 = smov 3
    %v168 = vld [vmem:[%s166] ss:$16 sm:%s167]
    %s169 = scalar_lea.vmem %s0, 2
    %s170 = smov 12
    %v171 = vld [vmem:[%s169] ss:$16 sm:%s170]
    %vm172 = vcmask 1043458
    %v173 = vsel %vm172, %v171, %v168
    %174 = vrot.lane.b32.xlu0 %v173, 16
    %v175 = vpop.permute.xlu0 %174
    %vm176 = vcmask 195712
    %177 = vst.msk [vmem:[#allocation0] ss:$8 sm:$0xf] %vm176, %v175
    %s178 = scalar_lea.vmem %s0, 1
    %s179 = smov 3
    %v180 = vld [vmem:[%s178] ss:$16 sm:%s179]
    %s181 = scalar_lea.vmem %s0, 1
    %s182 = smov 12
    %v183 = vld [vmem:[%s181] ss:$16 sm:%s182]
    %vm184 = vcmask 1043458
    %v185 = vsel %vm184, %v183, %v180
    %186 = vrot.lane.b32.xlu0 %v185, 8
    %v187 = vpop.permute.xlu0 %186
    %vm188 = vcmask 130112
    %189 = vst.msk [vmem:[#allocation0] ss:$8 sm:$0xf] %vm188, %v187
    %s191 = sshllo.u32 0, 1
    %v193 = vld [vmem:[#allocation0] sm:%s191]
    %s194 = sshllo.u32 0, 1
    %195 = vst [vmem:[%s1] sm:%s194] %v193
    %s196 = scalar_lea.vmem [#allocation0], 8
    %v197 = vld [vmem:[%s196] sm:%s191]
    %s198 = sshllo.u32 0, 1
    %s199 = scalar_lea.vmem %s1, 1
    %200 = vst [vmem:[%s199] sm:%s198] %v197
    %s201 = scalar_lea.vmem [#allocation0], 16
    %v202 = vld [vmem:[%s201] sm:%s191]
    %s203 = sshllo.u32 0, 1
    %s204 = smul.addr 1, 2
    %s205 = scalar_lea.vmem %s1, %s204
    %206 = vst [vmem:[%s205] sm:%s203] %v202
    %s207 = scalar_lea.vmem [#allocation0], 24
    %v208 = vld [vmem:[%s207] sm:%s191]
    %s209 = sshllo.u32 0, 1
    %s210 = smul.addr 1, 3
    %s211 = scalar_lea.vmem %s1, %s210
    %212 = vst [vmem:[%s211] sm:%s209] %v208

// kernel: res_layer.20
$region0: #{res_layer.20}
  #allocation0 [shape = 'u32[]', space=smem, size = 0x4, offset = 0x4, fixed_abs, tag = 'smem constant byte address 0x4 - core index']
  #allocation1 [shape = 'u32[144,128]{1,0:T(1,128)}', space=vmem, size = 0x12000, scoped, tag = 'internal scratch']
  %s0 = inlined_call_operand.vmem [shape: f32[8,512], index: 0, kind: input, shape index: {}]
  %s1 = inlined_call_operand.vmem [shape: f32[2,512], index: 1, kind: input, shape index: {}]
  %s2 = inlined_call_operand.vmem [shape: f32[1,2,512], index: 2, kind: output, shape index: {}]
  %s3 = sld [smem:[#allocation0]]
  $region18: #{res_layer.20} parent=0
    _
  %s5 = ssub.s32 1, %s3
  %s6 = scalar_select 0, %s5, %s3
  // Predicated region
  $region2: #{res_layer.20} parent=0 // pred_check
    _
  $region3: #{res_layer.20} parent=0 // pred_check_branch
    %8 = sbr.rel (0) target = $region5
  $region4: #{res_layer.20} parent=0 // pred_region
    _
  $region5: #{res_layer.20} parent=0 // pred_fallthru
    _
  // Predicated region
  $region6: #{res_layer.20} parent=0 // pred_check
    _
  $region7: #{res_layer.20} parent=0 // pred_check_branch
    %10 = sbr.rel (0) target = $region9
  $region8: #{res_layer.20} parent=0 // pred_region
    _
  $region9: #{res_layer.20} parent=0 // pred_fallthru
    _
  %v11 = vld [vmem:[%s1] sm:$0xff]
  %v12 = vld [vmem:[%s0] sm:$0xff]
  %v13 = vld [vmem:[%s0 + $0x8] sm:$0xff]
  %v14 = vld [vmem:[%s0 + $0x10] sm:$0xff]
  %v15 = vld [vmem:[%s0 + $0x18] sm:$0xff]
  %v17 = vlaneseq
  %v18 = vshrl.u32 %v17, 7
  %v19 = vsub.s32 0, %v18
  %v20 = vrot.slane %v11, %v19
  %v21 = vlaneseq
  %v22 = vshrl.u32 %v21, 7
  %v23 = vsub.s32 2, %v22
  %v24 = vrot.slane %v11, %v23
  %v25 = vlaneseq
  %v26 = vshrl.u32 %v25, 7
  %v27 = vsub.s32 4, %v26
  %v28 = vrot.slane %v11, %v27
  %v29 = vlaneseq
  %v30 = vshrl.u32 %v29, 7
  %v31 = vsub.s32 6, %v30
  %v32 = vrot.slane %v11, %v31
  %v37 = vlaneseq
  %v38 = vshrl.u32 %v37, 7
  %v39 = vsub.s32 0, %v38
  %v40 = vrot.slane %v20, %v39
  %v41 = vlaneseq
  %v42 = vshrl.u32 %v41, 7
  %v43 = vsub.s32 0, %v42
  %v44 = vrot.slane %v24, %v43
  %v45 = vlaneseq
  %v46 = vshrl.u32 %v45, 7
  %v47 = vsub.s32 0, %v46
  %v48 = vrot.slane %v28, %v47
  %v49 = vlaneseq
  %v50 = vshrl.u32 %v49, 7
  %v51 = vsub.s32 0, %v50
  %v52 = vrot.slane %v32, %v51
  %v53 = vmul.f32 %v12, %v40
  %v54 = vmul.f32 %v13, %v44
  %v55 = vmul.f32 %v14, %v48
  %v56 = vmul.f32 %v15, %v52
  %v57 = vlaneseq
  %v58 = vshrl.u32 %v57, 7
  %v59 = vsub.s32 1, %v58
  %v60 = vrot.slane %v11, %v59
  %v61 = vlaneseq
  %v62 = vshrl.u32 %v61, 7
  %v63 = vsub.s32 3, %v62
  %v64 = vrot.slane %v11, %v63
  %v65 = vlaneseq
  %v66 = vshrl.u32 %v65, 7
  %v67 = vsub.s32 5, %v66
  %v68 = vrot.slane %v11, %v67
  %v69 = vlaneseq
  %v70 = vshrl.u32 %v69, 7
  %v71 = vsub.s32 7, %v70
  %v72 = vrot.slane %v11, %v71
  %v77 = vlaneseq
  %v78 = vshrl.u32 %v77, 7
  %v79 = vsub.s32 1, %v78
  %v80 = vrot.slane %v60, %v79
  %v81 = vlaneseq
  %v82 = vshrl.u32 %v81, 7
  %v83 = vsub.s32 1, %v82
  %v84 = vrot.slane %v64, %v83
  %v85 = vlaneseq
  %v86 = vshrl.u32 %v85, 7
  %v87 = vsub.s32 1, %v86
  %v88 = vrot.slane %v68, %v87
  %v89 = vlaneseq
  %v90 = vshrl.u32 %v89, 7
  %v91 = vsub.s32 1, %v90
  %v92 = vrot.slane %v72, %v91
  %v93 = vadd.f32 %v53, %v80
  %v94 = vadd.f32 %v54, %v84
  %v95 = vadd.f32 %v55, %v88
  %v96 = vadd.f32 %v56, %v92
  %v97 = vmax.f32 %v93, 0.0
  %v98 = vmax.f32 %v94, 0.0
  %v99 = vmax.f32 %v95, 0.0
  %v100 = vmax.f32 %v96, 0.0
  %v101 = vrot.slane %v97, 4
  %v102 = vadd.f32 %v97, %v101
  %v103 = vrot.slane %v102, 2
  %v104 = vadd.f32 %v102, %v103
  %v105 = vrot.slane %v104, 1
  %v106 = vadd.f32 %v104, %v105
  %v107 = vrot.slane %v98, 4
  %v108 = vadd.f32 %v98, %v107
  %v109 = vrot.slane %v108, 2
  %v110 = vadd.f32 %v108, %v109
  %v111 = vrot.slane %v110, 1
  %v112 = vadd.f32 %v110, %v111
  %v113 = vrot.slane %v99, 4
  %v114 = vadd.f32 %v99, %v113
  %v115 = vrot.slane %v114, 2
  %v116 = vadd.f32 %v114, %v115
  %v117 = vrot.slane %v116, 1
  %v118 = vadd.f32 %v116, %v117
  %v119 = vrot.slane %v100, 4
  %v120 = vadd.f32 %v100, %v119
  %v121 = vrot.slane %v120, 2
  %v122 = vadd.f32 %v120, %v121
  %v123 = vrot.slane %v122, 1
  %v124 = vadd.f32 %v122, %v123
  %v125 = vmul.f32 %v97, %v97
  %v126 = vmul.f32 %v98, %v98
  %v127 = vmul.f32 %v99, %v99
  %v128 = vmul.f32 %v100, %v100
  %v129 = vrot.slane %v125, 4
  %v130 = vadd.f32 %v125, %v129
  %v131 = vrot.slane %v130, 2
  %v132 = vadd.f32 %v130, %v131
  %v133 = vrot.slane %v132, 1
  %v134 = vadd.f32 %v132, %v133
  %v135 = vrot.slane %v126, 4
  %v136 = vadd.f32 %v126, %v135
  %v137 = vrot.slane %v136, 2
  %v138 = vadd.f32 %v136, %v137
  %v139 = vrot.slane %v138, 1
  %v140 = vadd.f32 %v138, %v139
  %v141 = vrot.slane %v127, 4
  %v142 = vadd.f32 %v127, %v141
  %v143 = vrot.slane %v142, 2
  %v144 = vadd.f32 %v142, %v143
  %v145 = vrot.slane %v144, 1
  %v146 = vadd.f32 %v144, %v145
  %v147 = vrot.slane %v128, 4
  %v148 = vadd.f32 %v128, %v147
  %v149 = vrot.slane %v148, 2
  %v150 = vadd.f32 %v148, %v149
  %v151 = vrot.slane %v150, 1
  %v152 = vadd.f32 %v150, %v151
  %vm153 = vcmask 1040384
  %v154 = vsel %vm153, %v106, %v134
  %v155 = vsel %vm153, %v112, %v140
  %v156 = vsel %vm153, %v118, %v146
  %v157 = vsel %vm153, %v124, %v152
  %v162 = vcombine.low %v154, %v155
  %v163 = vcombine.low %v156, %v157
  %v165 = vunpack.c.l.s4 1983009808
  %v166 = vunpack.c.0.s8 %v165
  %v167 = vlaneseq
  %v168 = vshrl.u32 %v167, 7
  %v169 = vsub.s32 %v166, %v168
  %v170 = vrot.slane %v162, %v169
  %v172 = vunpack.c.l.s4 1983009808
  %v173 = vunpack.c.0.s8 %v172
  %v174 = vlaneseq
  %v175 = vshrl.u32 %v174, 7
  %v176 = vsub.s32 %v173, %v175
  %v177 = vrot.slane %v163, %v176
  %v178 = vcombine.low %v170, %v177
  %180 = vst [vmem:[%s2] sm:$0xff] %v178
  // Predicated region
  $region10: #{res_layer.20} parent=0 // pred_check
    _
  $region11: #{res_layer.20} parent=0 // pred_check_branch
    %182 = sbr.rel (0) target = $region13
  $region12: #{res_layer.20} parent=0 // pred_region
    _
  $region13: #{res_layer.20} parent=0 // pred_fallthru
    _
  // Predicated region
  $region14: #{res_layer.20} parent=0 // pred_check
    _
  $region15: #{res_layer.20} parent=0 // pred_check_branch
    %184 = sbr.rel (0) target = $region17
  $region16: #{res_layer.20} parent=0 // pred_region
    _
  $region17: #{res_layer.20} parent=0 // pred_fallthru
    _

// kernel: res_layer.19
$region0: #{res_layer.19}
  #allocation0 [shape = 'u32[]', space=smem, size = 0x4, offset = 0x4, fixed_abs, tag = 'smem constant byte address 0x4 - core index']
  #allocation1 [shape = 'u32[144,128]{1,0:T(1,128)}', space=vmem, size = 0x12000, scoped, tag = 'internal scratch']
  %s0 = inlined_call_operand.vmem [shape: f32[2,4,8,8,4], index: 0, kind: input, shape index: {}]
  %s1 = inlined_call_operand.vmem [shape: f32[4,8], index: 1, kind: input, shape index: {}]
  %s2 = inlined_call_operand.vmem [shape: f32[2,4,8,8,8], index: 2, kind: output, shape index: {0}]
  %s3 = inlined_call_operand.vmem [shape: f32[2,2,2,8], index: 3, kind: output, shape index: {1}]
  %4 = xla_tuple %s2, %s3
  %s5 = sld [smem:[#allocation0]]
  $region49: #{res_layer.19} parent=0
    _
  %s7 = ssub.s32 1, %s5
  %s8 = scalar_select 0, %s7, %s5
  loop: start=0, step=1, limit=6
  $region2: #{res_layer.19} parent=0 // loop_pre_header
    _
  $region3: #{res_layer.19} parent=0 // loop_header
    %s10 = sphi 0, %s14
    %p11 = scmp.ge.s32.totalorder %s10, 6
    %s17 = sphi 0, %s29
    %s18 = sphi 0, %s25
    %s19 = sphi 0, %s17
    %s20 = sphi 0, %s18
    %s21 = sphi 0, %s19
    %s22 = sphi 0, %s20
    %s32 = sphi 0, %s34
    %s35 = sphi 0, %s32
    %s36 = sphi 0, %s35
    %s52 = sphi 0, %s36
    %s56 = sphi 0, %s56
    %s58 = sphi 0, %s56
    %s59 = sphi 0, %s58
    %s73 = sphi 0, %s59
    %s81 = sphi 0, %s83
    %s84 = sphi 0, %s81
    %s85 = sphi 0, %s84
    %s101 = sphi 0, %s85
    %s109 = sphi 0, %s111
    %s112 = sphi 0, %s109
    %s113 = sphi 0, %s112
    %s129 = sphi 0, %s113
  $region4: #{res_layer.19} parent=0 // loop_header_branch
    %13 = sbr.rel (%p11) target = $region8
  $region5: #{res_layer.19} parent=0 // loop_body
    %s15 = ssub.s32 %s10, 1
    %s16 = ssub.s32 %s10, 2
    %s23 = sadd.s32 1, %s18
    %p24 = scmp.ge.s32.totalorder %s23, 2
    %s25 = scalar_select %p24, 0, %s23
    %s26 = sadd.s32 1, %s17
    %s27 = scalar_select %p24, %s26, %s17
    %p28 = scmp.ge.s32.totalorder %s27, 2
    %s29 = scalar_select %p28, 0, %s27
    %s30 = ssub.s32 %s17, %s29
    %p31 = scmp.eq.s32.totalorder %s30, 0
    %s33 = sadd.s32 %s32, 1
    %s34 = scalar_select %p31, %s32, %s33
    %p37 = pneg %p31
    %p38 = scmp.eq.s32.totalorder %s10, 3
    %p39 = por %p37, %p38
    %p40 = scmp.ne.s32.totalorder %s32, %s35
    %p41 = scmp.eq.s32.totalorder %s10, 0
    %p42 = por %p40, %p41
    %p43 = scmp.ne.s32.totalorder %s32, %s35
    %p44 = scmp.eq.s32.totalorder %s15, 3
    %p45 = por %p43, %p44
    %p46 = scmp.ne.s32.totalorder %s35, %s36
    %p47 = scmp.eq.s32.totalorder %s15, 0
    %p48 = por %p46, %p47
    %p49 = scmp.ne.s32.totalorder %s35, %s36
    %p50 = scmp.eq.s32.totalorder %s16, 3
    %p51 = por %p49, %p50
    %p53 = scmp.ne.s32.totalorder %s36, %s52
    %p54 = scmp.eq.s32.totalorder %s16, 0
    %p55 = por %p53, %p54
    %s57 = sadd.s32 %s56, 1
    %p60 = scmp.eq.s32.totalorder %s10, 3
    %p61 = scmp.ne.s32.totalorder %s56, %s58
    %p62 = scmp.eq.s32.totalorder %s10, 0
    %p63 = por %p61, %p62
    %p64 = scmp.ne.s32.totalorder %s56, %s58
    %p65 = scmp.eq.s32.totalorder %s15, 3
    %p66 = por %p64, %p65
    %p67 = scmp.ne.s32.totalorder %s58, %s59
    %p68 = scmp.eq.s32.totalorder %s15, 0
    %p69 = por %p67, %p68
    %p70 = scmp.ne.s32.totalorder %s58, %s59
    %p71 = scmp.eq.s32.totalorder %s16, 3
    %p72 = por %p70, %p71
    %p74 = scmp.ne.s32.totalorder %s59, %s73
    %p75 = scmp.eq.s32.totalorder %s16, 0
    %p76 = por %p74, %p75
    %s77 = ssub.s32 %s17, %s29
    %s78 = ssub.s32 %s18, %s25
    %s79 = sor.u32 %s77, %s78
    %p80 = scmp.eq.s32.totalorder %s79, 0
    %s82 = sadd.s32 %s81, 1
    %s83 = scalar_select %p80, %s81, %s82
    %p86 = pneg %p80
    %p87 = scmp.eq.s32.totalorder %s10, 3
    %p88 = por %p86, %p87
    %p89 = scmp.ne.s32.totalorder %s81, %s84
    %p90 = scmp.eq.s32.totalorder %s10, 0
    %p91 = por %p89, %p90
    %p92 = scmp.ne.s32.totalorder %s81, %s84
    %p93 = scmp.eq.s32.totalorder %s15, 3
    %p94 = por %p92, %p93
    %p95 = scmp.ne.s32.totalorder %s84, %s85
    %p96 = scmp.eq.s32.totalorder %s15, 0
    %p97 = por %p95, %p96
    %p98 = scmp.ne.s32.totalorder %s84, %s85
    %p99 = scmp.eq.s32.totalorder %s16, 3
    %p100 = por %p98, %p99
    %p102 = scmp.ne.s32.totalorder %s85, %s101
    %p103 = scmp.eq.s32.totalorder %s16, 0
    %p104 = por %p102, %p103
    %s105 = ssub.s32 %s17, %s29
    %s106 = ssub.s32 %s18, %s25
    %s107 = sor.u32 %s105, %s106
    %p108 = scmp.eq.s32.totalorder %s107, 0
    %s110 = sadd.s32 %s109, 1
    %s111 = scalar_select %p108, %s109, %s110
    %p114 = pneg %p108
    %p115 = scmp.eq.s32.totalorder %s10, 3
    %p116 = por %p114, %p115
    %p117 = scmp.ne.s32.totalorder %s109, %s112
    %p118 = scmp.eq.s32.totalorder %s10, 0
    %p119 = por %p117, %p118
    %p120 = scmp.ne.s32.totalorder %s109, %s112
    %p121 = scmp.eq.s32.totalorder %s15, 3
    %p122 = por %p120, %p121
    %p123 = scmp.ne.s32.totalorder %s112, %s113
    %p124 = scmp.eq.s32.totalorder %s15, 0
    %p125 = por %p123, %p124
    %p126 = scmp.ne.s32.totalorder %s112, %s113
    %p127 = scmp.eq.s32.totalorder %s16, 3
    %p128 = por %p126, %p127
    %p130 = scmp.ne.s32.totalorder %s113, %s129
    %p131 = scmp.eq.s32.totalorder %s16, 0
    %p132 = por %p130, %p131
    %p133 = scmp.le.s32.totalorder 1, %s10
    %p134 = scmp.lt.s32.totalorder %s10, 5
    %p135 = pnand %p133, %p134
    %p136 = pneg %p135
    // Predicated region
    $region9: #{res_layer.19} parent=5 // pred_check
      _
    $region10: #{res_layer.19} parent=5 // pred_check_branch
      %138 = sbr.rel (%p135) target = $region12
    $region11: #{res_layer.19} parent=5 // pred_region
      %s139 = ssub.s32 %s10, 1
      // Predicated region
      $region13: #{res_layer.19} parent=11 // pred_check
        %p140 = pneg %p69
      $region14: #{res_layer.19} parent=11 // pred_check_branch
        %142 = sbr.rel (%p140) target = $region16
      $region15: #{res_layer.19} parent=11 // pred_region
        _
      $region16: #{res_layer.19} parent=11 // pred_fallthru
        _
    $region12: #{res_layer.19} parent=5 // pred_fallthru
      _
    %p143 = scmp.lt.s32.totalorder %s10, 4
    // Predicated region
    $region17: #{res_layer.19} parent=5 // pred_check
      %p144 = pneg %p143
    $region18: #{res_layer.19} parent=5 // pred_check_branch
      %146 = sbr.rel (%p144) target = $region20
    $region19: #{res_layer.19} parent=5 // pred_region
      // Predicated region
      $region21: #{res_layer.19} parent=19 // pred_check
        %p147 = pneg %p42
      $region22: #{res_layer.19} parent=19 // pred_check_branch
        %149 = sbr.rel (%p147) target = $region24
      $region23: #{res_layer.19} parent=19 // pred_region
        %p150 = scmp.lt.s32.totalorder %s17, 1
        %s151 = scalar_select %p150, %s17, 1
        %s152 = smul.addr %s151, 32
        %s153 = smul.addr %s152, 8
        %s154 = scalar_lea.vmem %s0, %s153
      $region24: #{res_layer.19} parent=19 // pred_fallthru
        _
    $region20: #{res_layer.19} parent=5 // pred_fallthru
      _
    %p155 = scmp.le.s32.totalorder 1, %s10
    %p156 = scmp.lt.s32.totalorder %s10, 5
    %p157 = pnand %p155, %p156
    %p158 = pneg %p157
    // Predicated region
    $region25: #{res_layer.19} parent=5 // pred_check
      _
    $region26: #{res_layer.19} parent=5 // pred_check_branch
      %160 = sbr.rel (%p157) target = $region28
    $region27: #{res_layer.19} parent=5 // pred_region
      %s161 = ssub.s32 %s10, 1
      %p162 = scmp.lt.s32.totalorder %s19, 1
      %s163 = scalar_select %p162, %s19, 1
      %s164 = smul.addr %s163, 32
      %s165 = smul.addr %s164, 8
      %s166 = scalar_lea.vmem %s0, %s165
      %p167 = pneg %p48
      %p168 = pneg %p45
      %p169 = pneg %p69
      %p170 = pneg %p66
      %p171 = pneg %p97
      %p172 = pneg %p94
      %s173 = smul.u32 2, %s20
      %p174 = scmp.lt.s32.totalorder %s19, 1
      %s175 = scalar_select %p174, %s19, 1
      %p176 = scmp.lt.s32.totalorder %s173, 3
      %s177 = scalar_select %p176, %s173, 3
      %s178 = smul.addr %s177, 8
      %s179 = smul.addr %s175, 32
      %s180 = sadd.s32 %s178, %s179
      %s181 = smul.addr %s180, 8
      %s182 = scalar_lea.vmem %s2, %s181
      %p183 = pneg %p125
      %p184 = pneg %p122
      %p185 = scmp.lt.s32.totalorder %s19, 1
      %s186 = scalar_select %p185, %s19, 1
      %p187 = scmp.lt.s32.totalorder %s20, 1
      %s188 = scalar_select %p187, %s20, 1
      %s189 = smul.addr %s186, 2
      %s190 = sadd.s32 %s188, %s189
      %s191 = smul.addr %s190, 2
      %s192 = scalar_lea.vmem %s3, %s191
      %p193 = scmp.lt.s32.totalorder %s19, 1
      %s194 = scalar_select %p193, %s19, 1
      %s195 = smul.addr %s194, 32
      %s196 = smul.addr %s195, 8
      %s197 = scalar_lea.vmem %s0, %s196
      %s198 = smul.u32 2, %s20
      %p199 = scmp.lt.s32.totalorder %s19, 1
      %s200 = scalar_select %p199, %s19, 1
      %p201 = scmp.lt.s32.totalorder %s198, 3
      %s202 = scalar_select %p201, %s198, 3
      %s203 = smul.addr %s202, 8
      %s204 = smul.addr %s200, 32
      %s205 = sadd.s32 %s203, %s204
      %s206 = smul.addr %s205, 8
      %s207 = scalar_lea.vmem %s2, %s206
      %s208 = smul.u32 2, %s20
      %p209 = scmp.lt.s32.totalorder %s19, 1
      %s210 = scalar_select %p209, %s19, 1
      %p211 = scmp.lt.s32.totalorder %s20, 1
      %s212 = scalar_select %p211, %s20, 1
      %s213 = smul.addr %s210, 2
      %s214 = sadd.s32 %s212, %s213
      %s215 = smul.addr %s214, 2
      %s216 = scalar_lea.vmem %s3, %s215
      %s217 = smul.u32 %s20, 2
      %s218 = smul.u32 %s217, 64
      %s219 = scalar_lea.vmem %s197, %s218
      %v220 = vld [vmem:[%s219] sm:$0xff]
      %v221 = vld [vmem:[%s219 + $0x8] sm:$0xff]
      %v222 = vld [vmem:[%s219 + $0x10] sm:$0xff]
      %v223 = vld [vmem:[%s219 + $0x18] sm:$0xff]
      %v224 = vld [vmem:[%s219 + $0x20] sm:$0xff]
      %v225 = vld [vmem:[%s219 + $0x28] sm:$0xff]
      %v226 = vld [vmem:[%s219 + $0x30] sm:$0xff]
      %v227 = vld [vmem:[%s219 + $0x38] sm:$0xff]
      %v228 = vld [vmem:[%s219 + $0x40] sm:$0xff]
      %v229 = vld [vmem:[%s219 + $0x48] sm:$0xff]
      %v230 = vld [vmem:[%s219 + $0x50] sm:$0xff]
      %v231 = vld [vmem:[%s219 + $0x58] sm:$0xff]
      %v232 = vld [vmem:[%s219 + $0x60] sm:$0xff]
      %v233 = vld [vmem:[%s219 + $0x68] sm:$0xff]
      %v234 = vld [vmem:[%s219 + $0x70] sm:$0xff]
      %v235 = vld [vmem:[%s219 + $0x78] sm:$0xff]
      %v236 = vld [vmem:[%s1] sm:$0xf]
      %vm237 = vcmask 31744
      %v239 = vsel %vm237, %v220, 0
      %v242 = vsel %vm237, %v221, 0
      %v245 = vsel %vm237, %v222, 0
      %v248 = vsel %vm237, %v223, 0
      %v251 = vsel %vm237, %v224, 0
      %v254 = vsel %vm237, %v225, 0
      %v257 = vsel %vm237, %v226, 0
      %v260 = vsel %vm237, %v227, 0
      %v263 = vsel %vm237, %v228, 0
      %v266 = vsel %vm237, %v229, 0
      %v269 = vsel %vm237, %v230, 0
      %v272 = vsel %vm237, %v231, 0
      %v275 = vsel %vm237, %v232, 0
      %v278 = vsel %vm237, %v233, 0
      %v281 = vsel %vm237, %v234, 0
      %v284 = vsel %vm237, %v235, 0
      %vm286 = vcmask 1043456
      %v288 = vsel %vm286, %v236, 0
      %290 = vmatprep.subr.mxu0 0.0
      %291 = vmatpush1.msra.mxu0 %v288
      %292 = vmatprep.subr.mxu0 0.0
      %293 = vmatpush1.msra.mxu0 0.0
      %294 = vmatprep.subr.mxu0 0.0
      %295 = vmatpush1.msra.mxu0 0.0
      %296 = vmatprep.subr.mxu0 0.0
      %297 = vmatpush1.msra.mxu0 0.0
      %298 = vmatprep.subr.mxu0 0.0
      %299 = vmatpush1.msra.mxu0 0.0
      %300 = vmatprep.subr.mxu0 0.0
      %301 = vmatpush1.msra.mxu0 0.0
      %302 = vmatprep.subr.mxu0 0.0
      %303 = vmatpush1.msra.mxu0 0.0
      %304 = vmatprep.subr.mxu0 0.0
      %305 = vmatpush1.msra.mxu0 0.0
      %306 = vmatprep.subr.mxu0 0.0
      %307 = vmatpush1.msra.mxu0 0.0
      %308 = vmatprep.subr.mxu0 0.0
      %309 = vmatpush1.msra.mxu0 0.0
      %310 = vmatprep.subr.mxu0 0.0
      %311 = vmatpush1.msra.mxu0 0.0
      %312 = vmatprep.subr.mxu0 0.0
      %313 = vmatpush1.msra.mxu0 0.0
      %314 = vmatprep.subr.mxu0 0.0
      %315 = vmatpush1.msra.mxu0 0.0
      %316 = vmatprep.subr.mxu0 0.0
      %317 = vmatpush1.msra.mxu0 0.0
      %318 = vmatprep.subr.mxu0 0.0
      %319 = vmatpush1.msra.mxu0 0.0
      %320 = vmatprep.subr.mxu0 0.0
      %321 = vmatpush1.msra.mxu0 0.0
      %322 = vmatprep.subr.mxu0 0.0
      %323 = vmatpush1.msra.mxu0 0.0
      %324 = vmatprep.subr.mxu0 0.0
      %325 = vmatpush1.msra.mxu0 0.0
      %326 = vmatprep.subr.mxu0 0.0
      %327 = vmatpush1.msra.mxu0 0.0
      %328 = vmatprep.subr.mxu0 0.0
      %329 = vmatpush1.msra.mxu0 0.0
      %330 = vmatprep.subr.mxu0 0.0
      %331 = vmatpush1.msra.mxu0 0.0
      %332 = vmatprep.subr.mxu0 0.0
      %333 = vmatpush1.msra.mxu0 0.0
      %334 = vmatprep.subr.mxu0 0.0
      %335 = vmatpush1.msra.mxu0 0.0
      %336 = vmatprep.subr.mxu0 0.0
      %337 = vmatpush1.msra.mxu0 0.0
      %338 = vmatprep.subr.mxu0 0.0
      %339 = vmatpush1.msra.mxu0 0.0
      %340 = vmatprep.subr.mxu0 0.0
      %341 = vmatpush1.msra.mxu0 0.0
      %342 = vmatprep.subr.mxu0 0.0
      %343 = vmatpush1.msra.mxu0 0.0
      %344 = vmatprep.subr.mxu0 0.0
      %345 = vmatpush1.msra.mxu0 0.0
      %346 = vmatprep.subr.mxu0 0.0
      %347 = vmatpush1.msra.mxu0 0.0
      %348 = vmatprep.subr.mxu0 0.0
      %349 = vmatpush1.msra.mxu0 0.0
      %350 = vmatprep.subr.mxu0 0.0
      %351 = vmatpush1.msra.mxu0 0.0
      %352 = vmatprep.subr.mxu0 0.0
      %353 = vmatpush1.msra.mxu0 0.0
      %354 = vmatprep.mubr.f32.mxu0 0.0
      %355 = vmatmul.mubr.f32.gmra.mrb[0].mxu0 %v239
      %v356 = vpop.f32.mrb[0].mxu0
      %v357 = vadd.f32 0.0, %v356
      %v358 = vpop.f32.mrb[0].mxu0
      %359 = vmatprep.mubr.f32.mxu0 0.0
      %360 = vmatmul.mubr.f32.gmra.mrb[0].mxu0 %v242
      %v361 = vpop.f32.mrb[0].mxu0
      %v362 = vadd.f32 0.0, %v361
      %v363 = vpop.f32.mrb[0].mxu0
      %364 = vmatprep.mubr.f32.mxu0 0.0
      %365 = vmatmul.mubr.f32.gmra.mrb[0].mxu0 %v245
      %v366 = vpop.f32.mrb[0].mxu0
      %v367 = vadd.f32 0.0, %v366
      %v368 = vpop.f32.mrb[0].mxu0
      %369 = vmatprep.mubr.f32.mxu0 0.0
      %370 = vmatmul.mubr.f32.gmra.mrb[0].mxu0 %v248
      %v371 = vpop.f32.mrb[0].mxu0
      %v372 = vadd.f32 0.0, %v371
      %v373 = vpop.f32.mrb[0].mxu0
      %374 = vmatprep.mubr.f32.mxu0 0.0
      %375 = vmatmul.mubr.f32.gmra.mrb[0].mxu0 %v251
      %v376 = vpop.f32.mrb[0].mxu0
      %v377 = vadd.f32 0.0, %v376
      %v378 = vpop.f32.mrb[0].mxu0
      %379 = vmatprep.mubr.f32.mxu0 0.0
      %380 = vmatmul.mubr.f32.gmra.mrb[0].mxu0 %v254
      %v381 = vpop.f32.mrb[0].mxu0
      %v382 = vadd.f32 0.0, %v381
      %v383 = vpop.f32.mrb[0].mxu0
      %384 = vmatprep.mubr.f32.mxu0 0.0
      %385 = vmatmul.mubr.f32.gmra.mrb[0].mxu0 %v257
      %v386 = vpop.f32.mrb[0].mxu0
      %v387 = vadd.f32 0.0, %v386
      %v388 = vpop.f32.mrb[0].mxu0
      %389 = vmatprep.mubr.f32.mxu0 0.0
      %390 = vmatmul.mubr.f32.gmra.mrb[0].mxu0 %v260
      %v391 = vpop.f32.mrb[0].mxu0
      %v392 = vadd.f32 0.0, %v391
      %v393 = vpop.f32.mrb[0].mxu0
      %394 = vmatprep.mubr.f32.mxu0 0.0
      %395 = vmatmul.mubr.f32.gmra.mrb[0].mxu0 %v263
      %v396 = vpop.f32.mrb[0].mxu0
      %v397 = vadd.f32 0.0, %v396
      %v398 = vpop.f32.mrb[0].mxu0
      %399 = vmatprep.mubr.f32.mxu0 0.0
      %400 = vmatmul.mubr.f32.gmra.mrb[0].mxu0 %v266
      %v401 = vpop.f32.mrb[0].mxu0
      %v402 = vadd.f32 0.0, %v401
      %v403 = vpop.f32.mrb[0].mxu0
      %404 = vmatprep.mubr.f32.mxu0 0.0
      %405 = vmatmul.mubr.f32.gmra.mrb[0].mxu0 %v269
      %v406 = vpop.f32.mrb[0].mxu0
      %v407 = vadd.f32 0.0, %v406
      %v408 = vpop.f32.mrb[0].mxu0
      %409 = vmatprep.mubr.f32.mxu0 0.0
      %410 = vmatmul.mubr.f32.gmra.mrb[0].mxu0 %v272
      %v411 = vpop.f32.mrb[0].mxu0
      %v412 = vadd.f32 0.0, %v411
      %v413 = vpop.f32.mrb[0].mxu0
      %414 = vmatprep.mubr.f32.mxu0 0.0
      %415 = vmatmul.mubr.f32.gmra.mrb[0].mxu0 %v275
      %v416 = vpop.f32.mrb[0].mxu0
      %v417 = vadd.f32 0.0, %v416
      %v418 = vpop.f32.mrb[0].mxu0
      %419 = vmatprep.mubr.f32.mxu0 0.0
      %420 = vmatmul.mubr.f32.gmra.mrb[0].mxu0 %v278
      %v421 = vpop.f32.mrb[0].mxu0
      %v422 = vadd.f32 0.0, %v421
      %v423 = vpop.f32.mrb[0].mxu0
      %424 = vmatprep.mubr.f32.mxu0 0.0
      %425 = vmatmul.mubr.f32.gmra.mrb[0].mxu0 %v281
      %v426 = vpop.f32.mrb[0].mxu0
      %v427 = vadd.f32 0.0, %v426
      %v428 = vpop.f32.mrb[0].mxu0
      %429 = vmatprep.mubr.f32.mxu0 0.0
      %430 = vmatmul.mubr.f32.gmra.mrb[0].mxu0 %v284
      %v431 = vpop.f32.mrb[0].mxu0
      %v432 = vadd.f32 0.0, %v431
      %v433 = vpop.f32.mrb[0].mxu0
      %434 = vdwg.mxu0
      %vm435 = vcmask 64512
      %436 = vst.msk [vmem:[%s207] sm:$0xff] %vm435, %v357
      %437 = vst.msk [vmem:[%s207 + $0x8] sm:$0xff] %vm435, %v362
      %438 = vst.msk [vmem:[%s207 + $0x10] sm:$0xff] %vm435, %v367
      %439 = vst.msk [vmem:[%s207 + $0x18] sm:$0xff] %vm435, %v372
      %440 = vst.msk [vmem:[%s207 + $0x20] sm:$0xff] %vm435, %v377
      %441 = vst.msk [vmem:[%s207 + $0x28] sm:$0xff] %vm435, %v382
      %442 = vst.msk [vmem:[%s207 + $0x30] sm:$0xff] %vm435, %v387
      %443 = vst.msk [vmem:[%s207 + $0x38] sm:$0xff] %vm435, %v392
      %444 = vst.msk [vmem:[%s207 + $0x40] sm:$0xff] %vm435, %v397
      %445 = vst.msk [vmem:[%s207 + $0x48] sm:$0xff] %vm435, %v402
      %446 = vst.msk [vmem:[%s207 + $0x50] sm:$0xff] %vm435, %v407
      %447 = vst.msk [vmem:[%s207 + $0x58] sm:$0xff] %vm435, %v412
      %448 = vst.msk [vmem:[%s207 + $0x60] sm:$0xff] %vm435, %v417
      %449 = vst.msk [vmem:[%s207 + $0x68] sm:$0xff] %vm435, %v422
      %450 = vst.msk [vmem:[%s207 + $0x70] sm:$0xff] %vm435, %v427
      %451 = vst.msk [vmem:[%s207 + $0x78] sm:$0xff] %vm435, %v432
      %v452 = vsel %vm435, %v357, 0.0
      %v453 = vsel %vm435, %v362, 0.0
      %v454 = vadd.f32 %v452, %v453
      %v455 = vsel %vm435, %v367, 0.0
      %v456 = vadd.f32 %v454, %v455
      %v457 = vsel %vm435, %v372, 0.0
      %v458 = vadd.f32 %v456, %v457
      %v459 = vsel %vm435, %v377, 0.0
      %v460 = vadd.f32 %v458, %v459
      %v461 = vsel %vm435, %v382, 0.0
      %v462 = vadd.f32 %v460, %v461
      %v463 = vsel %vm435, %v387, 0.0
      %v464 = vadd.f32 %v462, %v463
      %v465 = vsel %vm435, %v392, 0.0
      %v466 = vadd.f32 %v464, %v465
      %v467 = vsel %vm435, %v397, 0.0
      %v468 = vadd.f32 %v466, %v467
      %v469 = vsel %vm435, %v402, 0.0
      %v470 = vadd.f32 %v468, %v469
      %v471 = vsel %vm435, %v407, 0.0
      %v472 = vadd.f32 %v470, %v471
      %v473 = vsel %vm435, %v412, 0.0
      %v474 = vadd.f32 %v472, %v473
      %v475 = vsel %vm435, %v417, 0.0
      %v476 = vadd.f32 %v474, %v475
      %v477 = vsel %vm435, %v422, 0.0
      %v478 = vadd.f32 %v476, %v477
      %v479 = vsel %vm435, %v427, 0.0
      %v480 = vadd.f32 %v478, %v479
      %v481 = vsel %vm435, %v432, 0.0
      %v482 = vadd.f32 %v480, %v481
      %v483 = vrot.slane %v482, 4
      %v484 = vadd.f32 %v482, %v483
      %v485 = vrot.slane %v484, 2
      %v486 = vadd.f32 %v484, %v485
      %v487 = vrot.slane %v486, 1
      %v488 = vadd.f32 %v486, %v487
      %v489 = vmul.f32 %v357, %v357
      %v490 = vmul.f32 %v362, %v362
      %v491 = vmul.f32 %v367, %v367
      %v492 = vmul.f32 %v372, %v372
      %v493 = vmul.f32 %v377, %v377
      %v494 = vmul.f32 %v382, %v382
      %v495 = vmul.f32 %v387, %v387
      %v496 = vmul.f32 %v392, %v392
      %v497 = vmul.f32 %v397, %v397
      %v498 = vmul.f32 %v402, %v402
      %v499 = vmul.f32 %v407, %v407
      %v500 = vmul.f32 %v412, %v412
      %v501 = vmul.f32 %v417, %v417
      %v502 = vmul.f32 %v422, %v422
      %v503 = vmul.f32 %v427, %v427
      %v504 = vmul.f32 %v432, %v432
      %v505 = vsel %vm435, %v489, 0.0
      %v506 = vsel %vm435, %v490, 0.0
      %v507 = vadd.f32 %v505, %v506
      %v508 = vsel %vm435, %v491, 0.0
      %v509 = vadd.f32 %v507, %v508
      %v510 = vsel %vm435, %v492, 0.0
      %v511 = vadd.f32 %v509, %v510
      %v512 = vsel %vm435, %v493, 0.0
      %v513 = vadd.f32 %v511, %v512
      %v514 = vsel %vm435, %v494, 0.0
      %v515 = vadd.f32 %v513, %v514
      %v516 = vsel %vm435, %v495, 0.0
      %v517 = vadd.f32 %v515, %v516
      %v518 = vsel %vm435, %v496, 0.0
      %v519 = vadd.f32 %v517, %v518
      %v520 = vsel %vm435, %v497, 0.0
      %v521 = vadd.f32 %v519, %v520
      %v522 = vsel %vm435, %v498, 0.0
      %v523 = vadd.f32 %v521, %v522
      %v524 = vsel %vm435, %v499, 0.0
      %v525 = vadd.f32 %v523, %v524
      %v526 = vsel %vm435, %v500, 0.0
      %v527 = vadd.f32 %v525, %v526
      %v528 = vsel %vm435, %v501, 0.0
      %v529 = vadd.f32 %v527, %v528
      %v530 = vsel %vm435, %v502, 0.0
      %v531 = vadd.f32 %v529, %v530
      %v532 = vsel %vm435, %v503, 0.0
      %v533 = vadd.f32 %v531, %v532
      %v534 = vsel %vm435, %v504, 0.0
      %v535 = vadd.f32 %v533, %v534
      %v536 = vrot.slane %v535, 4
      %v537 = vadd.f32 %v535, %v536
      %v538 = vrot.slane %v537, 2
      %v539 = vadd.f32 %v537, %v538
      %v540 = vrot.slane %v539, 1
      %v541 = vadd.f32 %v539, %v540
      %vm542 = vcmask 1040384
      %v543 = vsel %vm542, %v488, %v541
      %vm544 = vcmask 58368
      %545 = vst.msk [vmem:[%s216] sm:$0x3] %vm544, %v543
      %s546 = smul.u32 2, %s20
      %p547 = scmp.lt.s32.totalorder %s19, 1
      %s548 = scalar_select %p547, %s19, 1
      %p549 = scmp.lt.s32.totalorder %s546, 3
      %s550 = scalar_select %p549, %s546, 3
      %s551 = smul.addr %s550, 8
      %s552 = smul.addr %s548, 32
      %s553 = sadd.s32 %s551, %s552
      %s554 = smul.addr %s553, 8
      %s555 = scalar_lea.vmem %s2, %s554
      %p556 = scmp.lt.s32.totalorder %s19, 1
      %s557 = scalar_select %p556, %s19, 1
      %p558 = scmp.lt.s32.totalorder %s20, 1
      %s559 = scalar_select %p558, %s20, 1
      %s560 = smul.addr %s557, 2
      %s561 = sadd.s32 %s559, %s560
      %s562 = smul.addr %s561, 2
      %s563 = scalar_lea.vmem %s3, %s562
      // Predicated region
      $region29: #{res_layer.19} parent=27 // pred_check
        %p564 = pneg %p94
      $region30: #{res_layer.19} parent=27 // pred_check_branch
        %566 = sbr.rel (%p564) target = $region32
      $region31: #{res_layer.19} parent=27 // pred_region
        %s567 = smul.u32 2, %s20
      $region32: #{res_layer.19} parent=27 // pred_fallthru
        _
      // Predicated region
      $region33: #{res_layer.19} parent=27 // pred_check
        %p568 = pneg %p122
      $region34: #{res_layer.19} parent=27 // pred_check_branch
        %570 = sbr.rel (%p568) target = $region36
      $region35: #{res_layer.19} parent=27 // pred_region
        _
      $region36: #{res_layer.19} parent=27 // pred_fallthru
        _
    $region28: #{res_layer.19} parent=5 // pred_fallthru
      _
    %p571 = scmp.le.s32.totalorder 2, %s10
    // Predicated region
    $region37: #{res_layer.19} parent=5 // pred_check
      %p572 = pneg %p571
    $region38: #{res_layer.19} parent=5 // pred_check_branch
      %574 = sbr.rel (%p572) target = $region40
    $region39: #{res_layer.19} parent=5 // pred_region
      %s575 = ssub.s32 %s10, 2
      // Predicated region
      $region41: #{res_layer.19} parent=39 // pred_check
        %p576 = pneg %p100
      $region42: #{res_layer.19} parent=39 // pred_check_branch
        %578 = sbr.rel (%p576) target = $region44
      $region43: #{res_layer.19} parent=39 // pred_region
        %s579 = smul.u32 2, %s22
        %p580 = scmp.lt.s32.totalorder %s21, 1
        %s581 = scalar_select %p580, %s21, 1
        %p582 = scmp.lt.s32.totalorder %s579, 3
        %s583 = scalar_select %p582, %s579, 3
        %s584 = smul.addr %s583, 8
        %s585 = smul.addr %s581, 32
        %s586 = sadd.s32 %s584, %s585
        %s587 = smul.addr %s586, 8
        %s588 = scalar_lea.vmem %s2, %s587
      $region44: #{res_layer.19} parent=39 // pred_fallthru
        _
      // Predicated region
      $region45: #{res_layer.19} parent=39 // pred_check
        %p589 = pneg %p128
      $region46: #{res_layer.19} parent=39 // pred_check_branch
        %591 = sbr.rel (%p589) target = $region48
      $region47: #{res_layer.19} parent=39 // pred_region
        %p592 = scmp.lt.s32.totalorder %s21, 1
        %s593 = scalar_select %p592, %s21, 1
        %p594 = scmp.lt.s32.totalorder %s22, 1
        %s595 = scalar_select %p594, %s22, 1
        %s596 = smul.addr %s593, 2
        %s597 = sadd.s32 %s595, %s596
        %s598 = smul.addr %s597, 2
        %s599 = scalar_lea.vmem %s3, %s598
      $region48: #{res_layer.19} parent=39 // pred_fallthru
        _
    $region40: #{res_layer.19} parent=5 // pred_fallthru
      _
  $region6: #{res_layer.19} parent=0 // loop_footer
    %s14 = sadd.s32 1, %s10
  $region7: #{res_layer.19} parent=0 // loop_footer_branch
    %9 = sbr.rel target = $region3
  $region8: #{res_layer.19} parent=0 // loop_exit
    _

// kernel: squeeze.86
$region0: #{squeeze.86}
  %s0 = inlined_call_operand.vmem [shape: f32[512], index: 0, kind: input, shape index: {}]
  %s1 = inlined_call_operand.vmem [shape: f32[64,8], index: 1, kind: output, shape index: {}]
  $region1: #{squeeze.86} parent=0
    #allocation0 [shape = 'u8[4096]{0}', space=vmem, size = 0x1000, scoped, tag = 'scoped mem for input reshape']
    %s3 = sshllo.u32 0, 4
    %v4 = vld [vmem:[%s0] sm:%s3]
    %5 = vst [vmem:[#allocation0] sm:%s3] %v4
    %v6 = vld [vmem:[#allocation0] sm:$0xf]
    %vm7 = vcmask 64512
    %8 = vst.msk [vmem:[%s1] ss:$16 sm:$0x3] %vm7, %v6
    %9 = vst.msk [vmem:[%s1] ss:$16 sm:$0xc] %vm7, %v6
    %v10 = vld [vmem:[#allocation0] sm:$0xf]
    %11 = vrot.lane.b32.xlu0 %v10, 120
    %v12 = vpop.permute.xlu0 %11
    %vm13 = vcmask 64512
    %s14 = scalar_lea.vmem %s1, 1
    %15 = vst.msk [vmem:[%s14] ss:$16 sm:$0x3] %vm13, %v12
    %s16 = scalar_lea.vmem %s1, 1
    %17 = vst.msk [vmem:[%s16] ss:$16 sm:$0xc] %vm13, %v12
    %v18 = vld [vmem:[#allocation0] sm:$0xf]
    %19 = vrot.lane.b32.xlu0 %v18, 112
    %v20 = vpop.permute.xlu0 %19
    %vm21 = vcmask 64512
    %s22 = scalar_lea.vmem %s1, 2
    %23 = vst.msk [vmem:[%s22] ss:$16 sm:$0x3] %vm21, %v20
    %s24 = scalar_lea.vmem %s1, 2
    %25 = vst.msk [vmem:[%s24] ss:$16 sm:$0xc] %vm21, %v20
    %v26 = vld [vmem:[#allocation0] sm:$0xf]
    %27 = vrot.lane.b32.xlu0 %v26, 104
    %v28 = vpop.permute.xlu0 %27
    %vm29 = vcmask 64512
    %s30 = scalar_lea.vmem %s1, 3
    %31 = vst.msk [vmem:[%s30] ss:$16 sm:$0x3] %vm29, %v28
    %s32 = scalar_lea.vmem %s1, 3
    %33 = vst.msk [vmem:[%s32] ss:$16 sm:$0xc] %vm29, %v28
    %v34 = vld [vmem:[#allocation0] sm:$0xf]
    %35 = vrot.lane.b32.xlu0 %v34, 96
    %v36 = vpop.permute.xlu0 %35
    %vm37 = vcmask 64512
    %s38 = scalar_lea.vmem %s1, 4
    %39 = vst.msk [vmem:[%s38] ss:$16 sm:$0x3] %vm37, %v36
    %s40 = scalar_lea.vmem %s1, 4
    %41 = vst.msk [vmem:[%s40] ss:$16 sm:$0xc] %vm37, %v36
    %v42 = vld [vmem:[#allocation0] sm:$0xf]
    %43 = vrot.lane.b32.xlu0 %v42, 88
    %v44 = vpop.permute.xlu0 %43
    %vm45 = vcmask 64512
    %s46 = scalar_lea.vmem %s1, 5
    %47 = vst.msk [vmem:[%s46] ss:$16 sm:$0x3] %vm45, %v44
    %s48 = scalar_lea.vmem %s1, 5
    %49 = vst.msk [vmem:[%s48] ss:$16 sm:$0xc] %vm45, %v44
    %v50 = vld [vmem:[#allocation0] sm:$0xf]
    %51 = vrot.lane.b32.xlu0 %v50, 80
    %v52 = vpop.permute.xlu0 %51
    %vm53 = vcmask 64512
    %s54 = scalar_lea.vmem %s1, 6
    %55 = vst.msk [vmem:[%s54] ss:$16 sm:$0x3] %vm53, %v52
    %s56 = scalar_lea.vmem %s1, 6
    %57 = vst.msk [vmem:[%s56] ss:$16 sm:$0xc] %vm53, %v52
    %v58 = vld [vmem:[#allocation0] sm:$0xf]
    %59 = vrot.lane.b32.xlu0 %v58, 72
    %v60 = vpop.permute.xlu0 %59
    %vm61 = vcmask 64512
    %s62 = scalar_lea.vmem %s1, 7
    %63 = vst.msk [vmem:[%s62] ss:$16 sm:$0x3] %vm61, %v60
    %s64 = scalar_lea.vmem %s1, 7
    %65 = vst.msk [vmem:[%s64] ss:$16 sm:$0xc] %vm61, %v60
    %v66 = vld [vmem:[#allocation0] sm:$0xf]
    %67 = vrot.lane.b32.xlu0 %v66, 64
    %v68 = vpop.permute.xlu0 %67
    %vm69 = vcmask 64512
    %s70 = scalar_lea.vmem %s1, 8
    %71 = vst.msk [vmem:[%s70] ss:$16 sm:$0x3] %vm69, %v68
    %s72 = scalar_lea.vmem %s1, 8
    %73 = vst.msk [vmem:[%s72] ss:$16 sm:$0xc] %vm69, %v68
    %v74 = vld [vmem:[#allocation0] sm:$0xf]
    %75 = vrot.lane.b32.xlu0 %v74, 56
    %v76 = vpop.permute.xlu0 %75
    %vm77 = vcmask 64512
    %s78 = scalar_lea.vmem %s1, 9
    %79 = vst.msk [vmem:[%s78] ss:$16 sm:$0x3] %vm77, %v76
    %s80 = scalar_lea.vmem %s1, 9
    %81 = vst.msk [vmem:[%s80] ss:$16 sm:$0xc] %vm77, %v76
    %v82 = vld [vmem:[#allocation0] sm:$0xf]
    %83 = vrot.lane.b32.xlu0 %v82, 48
    %v84 = vpop.permute.xlu0 %83
    %vm85 = vcmask 64512
    %s86 = scalar_lea.vmem %s1, 10
    %87 = vst.msk [vmem:[%s86] ss:$16 sm:$0x3] %vm85, %v84
    %s88 = scalar_lea.vmem %s1, 10
    %89 = vst.msk [vmem:[%s88] ss:$16 sm:$0xc] %vm85, %v84
    %v90 = vld [vmem:[#allocation0] sm:$0xf]
    %91 = vrot.lane.b32.xlu0 %v90, 40
    %v92 = vpop.permute.xlu0 %91
    %vm93 = vcmask 64512
    %s94 = scalar_lea.vmem %s1, 11
    %95 = vst.msk [vmem:[%s94] ss:$16 sm:$0x3] %vm93, %v92
    %s96 = scalar_lea.vmem %s1, 11
    %97 = vst.msk [vmem:[%s96] ss:$16 sm:$0xc] %vm93, %v92
    %v98 = vld [vmem:[#allocation0] sm:$0xf]
    %99 = vrot.lane.b32.xlu0 %v98, 32
    %v100 = vpop.permute.xlu0 %99
    %vm101 = vcmask 64512
    %s102 = scalar_lea.vmem %s1, 12
    %103 = vst.msk [vmem:[%s102] ss:$16 sm:$0x3] %vm101, %v100
    %s104 = scalar_lea.vmem %s1, 12
    %105 = vst.msk [vmem:[%s104] ss:$16 sm:$0xc] %vm101, %v100
    %v106 = vld [vmem:[#allocation0] sm:$0xf]
    %107 = vrot.lane.b32.xlu0 %v106, 24
    %v108 = vpop.permute.xlu0 %107
    %vm109 = vcmask 64512
    %s110 = scalar_lea.vmem %s1, 13
    %111 = vst.msk [vmem:[%s110] ss:$16 sm:$0x3] %vm109, %v108
    %s112 = scalar_lea.vmem %s1, 13
    %113 = vst.msk [vmem:[%s112] ss:$16 sm:$0xc] %vm109, %v108
    %v114 = vld [vmem:[#allocation0] sm:$0xf]
    %115 = vrot.lane.b32.xlu0 %v114, 16
    %v116 = vpop.permute.xlu0 %115
    %vm117 = vcmask 64512
    %s118 = scalar_lea.vmem %s1, 14
    %119 = vst.msk [vmem:[%s118] ss:$16 sm:$0x3] %vm117, %v116
    %s120 = scalar_lea.vmem %s1, 14
    %121 = vst.msk [vmem:[%s120] ss:$16 sm:$0xc] %vm117, %v116
    %v122 = vld [vmem:[#allocation0] sm:$0xf]
    %123 = vrot.lane.b32.xlu0 %v122, 8
    %v124 = vpop.permute.xlu0 %123
    %vm125 = vcmask 64512
    %s126 = scalar_lea.vmem %s1, 15
    %127 = vst.msk [vmem:[%s126] ss:$16 sm:$0x3] %vm125, %v124
    %s128 = scalar_lea.vmem %s1, 15
    %129 = vst.msk [vmem:[%s128] ss:$16 sm:$0xc] %vm125, %v124

// kernel: res_layer.14
$region0: #{res_layer.14}
  #allocation0 [shape = 'u32[]', space=smem, size = 0x4, offset = 0x4, fixed_abs, tag = 'smem constant byte address 0x4 - core index']
  #allocation1 [shape = 'u32[144,128]{1,0:T(1,128)}', space=vmem, size = 0x12000, scoped, tag = 'internal scratch']
  %s0 = inlined_call_operand.vmem [shape: f32[2,5,9,9,32], index: 0, kind: input, shape index: {}]
  %s1 = inlined_call_operand.vmem [shape: f32[256,8], index: 1, kind: input, shape index: {}]
  %s2 = inlined_call_operand.vmem [shape: f32[2,4,8,8,8], index: 2, kind: output, shape index: {0}]
  %s3 = inlined_call_operand.vmem [shape: f32[2,2,2,8], index: 3, kind: output, shape index: {1}]
  %4 = xla_tuple %s2, %s3
  %s5 = sld [smem:[#allocation0]]
  $region49: #{res_layer.14} parent=0
    _
  %s7 = ssub.s32 1, %s5
  %s8 = scalar_select 0, %s7, %s5
  loop: start=0, step=1, limit=6
  $region2: #{res_layer.14} parent=0 // loop_pre_header
    _
  $region3: #{res_layer.14} parent=0 // loop_header
    %s10 = sphi 0, %s14
    %p11 = scmp.ge.s32.totalorder %s10, 6
    %s17 = sphi 0, %s29
    %s18 = sphi 0, %s25
    %s19 = sphi 0, %s17
    %s20 = sphi 0, %s18
    %s21 = sphi 0, %s19
    %s22 = sphi 0, %s20
    %s32 = sphi 0, %s34
    %s35 = sphi 0, %s32
    %s36 = sphi 0, %s35
    %s52 = sphi 0, %s36
    %s56 = sphi 0, %s56
    %s58 = sphi 0, %s56
    %s59 = sphi 0, %s58
    %s73 = sphi 0, %s59
    %s81 = sphi 0, %s83
    %s84 = sphi 0, %s81
    %s85 = sphi 0, %s84
    %s101 = sphi 0, %s85
    %s109 = sphi 0, %s111
    %s112 = sphi 0, %s109
    %s113 = sphi 0, %s112
    %s129 = sphi 0, %s113
  $region4: #{res_layer.14} parent=0 // loop_header_branch
    %13 = sbr.rel (%p11) target = $region8
  $region5: #{res_layer.14} parent=0 // loop_body
    %s15 = ssub.s32 %s10, 1
    %s16 = ssub.s32 %s10, 2
    %s23 = sadd.s32 1, %s18
    %p24 = scmp.ge.s32.totalorder %s23, 2
    %s25 = scalar_select %p24, 0, %s23
    %s26 = sadd.s32 1, %s17
    %s27 = scalar_select %p24, %s26, %s17
    %p28 = scmp.ge.s32.totalorder %s27, 2
    %s29 = scalar_select %p28, 0, %s27
    %s30 = ssub.s32 %s17, %s29
    %p31 = scmp.eq.s32.totalorder %s30, 0
    %s33 = sadd.s32 %s32, 1
    %s34 = scalar_select %p31, %s32, %s33
    %p37 = pneg %p31
    %p38 = scmp.eq.s32.totalorder %s10, 3
    %p39 = por %p37, %p38
    %p40 = scmp.ne.s32.totalorder %s32, %s35
    %p41 = scmp.eq.s32.totalorder %s10, 0
    %p42 = por %p40, %p41
    %p43 = scmp.ne.s32.totalorder %s32, %s35
    %p44 = scmp.eq.s32.totalorder %s15, 3
    %p45 = por %p43, %p44
    %p46 = scmp.ne.s32.totalorder %s35, %s36
    %p47 = scmp.eq.s32.totalorder %s15, 0
    %p48 = por %p46, %p47
    %p49 = scmp.ne.s32.totalorder %s35, %s36
    %p50 = scmp.eq.s32.totalorder %s16, 3
    %p51 = por %p49, %p50
    %p53 = scmp.ne.s32.totalorder %s36, %s52
    %p54 = scmp.eq.s32.totalorder %s16, 0
    %p55 = por %p53, %p54
    %s57 = sadd.s32 %s56, 1
    %p60 = scmp.eq.s32.totalorder %s10, 3
    %p61 = scmp.ne.s32.totalorder %s56, %s58
    %p62 = scmp.eq.s32.totalorder %s10, 0
    %p63 = por %p61, %p62
    %p64 = scmp.ne.s32.totalorder %s56, %s58
    %p65 = scmp.eq.s32.totalorder %s15, 3
    %p66 = por %p64, %p65
    %p67 = scmp.ne.s32.totalorder %s58, %s59
    %p68 = scmp.eq.s32.totalorder %s15, 0
    %p69 = por %p67, %p68
    %p70 = scmp.ne.s32.totalorder %s58, %s59
    %p71 = scmp.eq.s32.totalorder %s16, 3
    %p72 = por %p70, %p71
    %p74 = scmp.ne.s32.totalorder %s59, %s73
    %p75 = scmp.eq.s32.totalorder %s16, 0
    %p76 = por %p74, %p75
    %s77 = ssub.s32 %s17, %s29
    %s78 = ssub.s32 %s18, %s25
    %s79 = sor.u32 %s77, %s78
    %p80 = scmp.eq.s32.totalorder %s79, 0
    %s82 = sadd.s32 %s81, 1
    %s83 = scalar_select %p80, %s81, %s82
    %p86 = pneg %p80
    %p87 = scmp.eq.s32.totalorder %s10, 3
    %p88 = por %p86, %p87
    %p89 = scmp.ne.s32.totalorder %s81, %s84
    %p90 = scmp.eq.s32.totalorder %s10, 0
    %p91 = por %p89, %p90
    %p92 = scmp.ne.s32.totalorder %s81, %s84
    %p93 = scmp.eq.s32.totalorder %s15, 3
    %p94 = por %p92, %p93
    %p95 = scmp.ne.s32.totalorder %s84, %s85
    %p96 = scmp.eq.s32.totalorder %s15, 0
    %p97 = por %p95, %p96
    %p98 = scmp.ne.s32.totalorder %s84, %s85
    %p99 = scmp.eq.s32.totalorder %s16, 3
    %p100 = por %p98, %p99
    %p102 = scmp.ne.s32.totalorder %s85, %s101
    %p103 = scmp.eq.s32.totalorder %s16, 0
    %p104 = por %p102, %p103
    %s105 = ssub.s32 %s17, %s29
    %s106 = ssub.s32 %s18, %s25
    %s107 = sor.u32 %s105, %s106
    %p108 = scmp.eq.s32.totalorder %s107, 0
    %s110 = sadd.s32 %s109, 1
    %s111 = scalar_select %p108, %s109, %s110
    %p114 = pneg %p108
    %p115 = scmp.eq.s32.totalorder %s10, 3
    %p116 = por %p114, %p115
    %p117 = scmp.ne.s32.totalorder %s109, %s112
    %p118 = scmp.eq.s32.totalorder %s10, 0
    %p119 = por %p117, %p118
    %p120 = scmp.ne.s32.totalorder %s109, %s112
    %p121 = scmp.eq.s32.totalorder %s15, 3
    %p122 = por %p120, %p121
    %p123 = scmp.ne.s32.totalorder %s112, %s113
    %p124 = scmp.eq.s32.totalorder %s15, 0
    %p125 = por %p123, %p124
    %p126 = scmp.ne.s32.totalorder %s112, %s113
    %p127 = scmp.eq.s32.totalorder %s16, 3
    %p128 = por %p126, %p127
    %p130 = scmp.ne.s32.totalorder %s113, %s129
    %p131 = scmp.eq.s32.totalorder %s16, 0
    %p132 = por %p130, %p131
    %p133 = scmp.le.s32.totalorder 1, %s10
    %p134 = scmp.lt.s32.totalorder %s10, 5
    %p135 = pnand %p133, %p134
    %p136 = pneg %p135
    // Predicated region
    $region9: #{res_layer.14} parent=5 // pred_check
      _
    $region10: #{res_layer.14} parent=5 // pred_check_branch
      %138 = sbr.rel (%p135) target = $region12
    $region11: #{res_layer.14} parent=5 // pred_region
      %s139 = ssub.s32 %s10, 1
      // Predicated region
      $region13: #{res_layer.14} parent=11 // pred_check
        %p140 = pneg %p69
      $region14: #{res_layer.14} parent=11 // pred_check_branch
        %142 = sbr.rel (%p140) target = $region16
      $region15: #{res_layer.14} parent=11 // pred_region
        _
      $region16: #{res_layer.14} parent=11 // pred_fallthru
        _
    $region12: #{res_layer.14} parent=5 // pred_fallthru
      _
    %p143 = scmp.lt.s32.totalorder %s10, 4
    // Predicated region
    $region17: #{res_layer.14} parent=5 // pred_check
      %p144 = pneg %p143
    $region18: #{res_layer.14} parent=5 // pred_check_branch
      %146 = sbr.rel (%p144) target = $region20
    $region19: #{res_layer.14} parent=5 // pred_region
      // Predicated region
      $region21: #{res_layer.14} parent=19 // pred_check
        %p147 = pneg %p42
      $region22: #{res_layer.14} parent=19 // pred_check_branch
        %149 = sbr.rel (%p147) target = $region24
      $region23: #{res_layer.14} parent=19 // pred_region
        %p150 = scmp.lt.s32.totalorder %s17, 1
        %s151 = scalar_select %p150, %s17, 1
        %s152 = smul.addr %s151, 90
        %s153 = smul.addr %s152, 8
        %s154 = scalar_lea.vmem %s0, %s153
      $region24: #{res_layer.14} parent=19 // pred_fallthru
        _
    $region20: #{res_layer.14} parent=5 // pred_fallthru
      _
    %p155 = scmp.le.s32.totalorder 1, %s10
    %p156 = scmp.lt.s32.totalorder %s10, 5
    %p157 = pnand %p155, %p156
    %p158 = pneg %p157
    // Predicated region
    $region25: #{res_layer.14} parent=5 // pred_check
      _
    $region26: #{res_layer.14} parent=5 // pred_check_branch
      %160 = sbr.rel (%p157) target = $region28
    $region27: #{res_layer.14} parent=5 // pred_region
      %s161 = ssub.s32 %s10, 1
      %p162 = scmp.lt.s32.totalorder %s19, 1
      %s163 = scalar_select %p162, %s19, 1
      %s164 = smul.addr %s163, 90
      %s165 = smul.addr %s164, 8
      %s166 = scalar_lea.vmem %s0, %s165
      %p167 = pneg %p48
      %p168 = pneg %p45
      %p169 = pneg %p69
      %p170 = pneg %p66
      %p171 = pneg %p97
      %p172 = pneg %p94
      %s173 = smul.u32 2, %s20
      %p174 = scmp.lt.s32.totalorder %s19, 1
      %s175 = scalar_select %p174, %s19, 1
      %p176 = scmp.lt.s32.totalorder %s173, 3
      %s177 = scalar_select %p176, %s173, 3
      %s178 = smul.addr %s177, 8
      %s179 = smul.addr %s175, 32
      %s180 = sadd.s32 %s178, %s179
      %s181 = smul.addr %s180, 8
      %s182 = scalar_lea.vmem %s2, %s181
      %p183 = pneg %p125
      %p184 = pneg %p122
      %p185 = scmp.lt.s32.totalorder %s19, 1
      %s186 = scalar_select %p185, %s19, 1
      %p187 = scmp.lt.s32.totalorder %s20, 1
      %s188 = scalar_select %p187, %s20, 1
      %s189 = smul.addr %s186, 2
      %s190 = sadd.s32 %s188, %s189
      %s191 = smul.addr %s190, 2
      %s192 = scalar_lea.vmem %s3, %s191
      %p193 = scmp.lt.s32.totalorder %s19, 1
      %s194 = scalar_select %p193, %s19, 1
      %s195 = smul.addr %s194, 90
      %s196 = smul.addr %s195, 8
      %s197 = scalar_lea.vmem %s0, %s196
      %s198 = smul.u32 2, %s20
      %p199 = scmp.lt.s32.totalorder %s19, 1
      %s200 = scalar_select %p199, %s19, 1
      %p201 = scmp.lt.s32.totalorder %s198, 3
      %s202 = scalar_select %p201, %s198, 3
      %s203 = smul.addr %s202, 8
      %s204 = smul.addr %s200, 32
      %s205 = sadd.s32 %s203, %s204
      %s206 = smul.addr %s205, 8
      %s207 = scalar_lea.vmem %s2, %s206
      %s208 = smul.u32 2, %s20
      %p209 = scmp.lt.s32.totalorder %s19, 1
      %s210 = scalar_select %p209, %s19, 1
      %p211 = scmp.lt.s32.totalorder %s20, 1
      %s212 = scalar_select %p211, %s20, 1
      %s213 = smul.addr %s210, 2
      %s214 = sadd.s32 %s212, %s213
      %s215 = smul.addr %s214, 2
      %s216 = scalar_lea.vmem %s3, %s215
      %s217 = smul.u32 %s20, 2
      %s218 = smul.u32 %s217, 144
      %s219 = scalar_lea.vmem %s197, %s218
      %v220 = vld [vmem:[%s219] sm:$0xff]
      %v221 = vld [vmem:[%s219 + $0x10] sm:$0xff]
      %v222 = vld [vmem:[%s219 + $0x20] sm:$0xff]
      %v223 = vld [vmem:[%s219 + $0x30] sm:$0xff]
      %v224 = vld [vmem:[%s219 + $0x40] sm:$0xff]
      %v225 = vld [vmem:[%s219 + $0x50] sm:$0xff]
      %v226 = vld [vmem:[%s219 + $0x60] sm:$0xff]
      %v227 = vld [vmem:[%s219 + $0x70] sm:$0xff]
      %v228 = vld [vmem:[%s219 + $0x90] sm:$0xff]
      %v229 = vld [vmem:[%s219 + $0xa0] sm:$0xff]
      %v230 = vld [vmem:[%s219 + $0xb0] sm:$0xff]
      %v231 = vld [vmem:[%s219 + $0xc0] sm:$0xff]
      %v232 = vld [vmem:[%s219 + $0xd0] sm:$0xff]
      %v233 = vld [vmem:[%s219 + $0xe0] sm:$0xff]
      %v234 = vld [vmem:[%s219 + $0xf0] sm:$0xff]
      %v235 = vld [vmem:[%s219 + $0x100] sm:$0xff]
      %v236 = vld [vmem:[%s219 + $0x1] sm:$0xff]
      %v237 = vld [vmem:[%s219 + $0x11] sm:$0xff]
      %v238 = vld [vmem:[%s219 + $0x21] sm:$0xff]
      %v239 = vld [vmem:[%s219 + $0x31] sm:$0xff]
      %v240 = vld [vmem:[%s219 + $0x41] sm:$0xff]
      %v241 = vld [vmem:[%s219 + $0x51] sm:$0xff]
      %v242 = vld [vmem:[%s219 + $0x61] sm:$0xff]
      %v243 = vld [vmem:[%s219 + $0x71] sm:$0xff]
      %v244 = vld [vmem:[%s219 + $0x91] sm:$0xff]
      %v245 = vld [vmem:[%s219 + $0xa1] sm:$0xff]
      %v246 = vld [vmem:[%s219 + $0xb1] sm:$0xff]
      %v247 = vld [vmem:[%s219 + $0xc1] sm:$0xff]
      %v248 = vld [vmem:[%s219 + $0xd1] sm:$0xff]
      %v249 = vld [vmem:[%s219 + $0xe1] sm:$0xff]
      %v250 = vld [vmem:[%s219 + $0xf1] sm:$0xff]
      %v251 = vld [vmem:[%s219 + $0x101] sm:$0xff]
      %s252 = sadd.s32 16, %s218
      %s253 = scalar_lea.vmem %s197, %s252
      %v254 = vld [vmem:[%s253] sm:$0xff]
      %v255 = vld [vmem:[%s253 + $0x10] sm:$0xff]
      %v256 = vld [vmem:[%s253 + $0x20] sm:$0xff]
      %v257 = vld [vmem:[%s253 + $0x30] sm:$0xff]
      %v258 = vld [vmem:[%s253 + $0x40] sm:$0xff]
      %v259 = vld [vmem:[%s253 + $0x50] sm:$0xff]
      %v260 = vld [vmem:[%s253 + $0x60] sm:$0xff]
      %v261 = vld [vmem:[%s253 + $0x70] sm:$0xff]
      %v262 = vld [vmem:[%s253 + $0x90] sm:$0xff]
      %v263 = vld [vmem:[%s253 + $0xa0] sm:$0xff]
      %v264 = vld [vmem:[%s253 + $0xb0] sm:$0xff]
      %v265 = vld [vmem:[%s253 + $0xc0] sm:$0xff]
      %v266 = vld [vmem:[%s253 + $0xd0] sm:$0xff]
      %v267 = vld [vmem:[%s253 + $0xe0] sm:$0xff]
      %v268 = vld [vmem:[%s253 + $0xf0] sm:$0xff]
      %v269 = vld [vmem:[%s253 + $0x100] sm:$0xff]
      %v270 = vld [vmem:[%s253 + $0x1] sm:$0xff]
      %v271 = vld [vmem:[%s253 + $0x11] sm:$0xff]
      %v272 = vld [vmem:[%s253 + $0x21] sm:$0xff]
      %v273 = vld [vmem:[%s253 + $0x31] sm:$0xff]
      %v274 = vld [vmem:[%s253 + $0x41] sm:$0xff]
      %v275 = vld [vmem:[%s253 + $0x51] sm:$0xff]
      %v276 = vld [vmem:[%s253 + $0x61] sm:$0xff]
      %v277 = vld [vmem:[%s253 + $0x71] sm:$0xff]
      %v278 = vld [vmem:[%s253 + $0x91] sm:$0xff]
      %v279 = vld [vmem:[%s253 + $0xa1] sm:$0xff]
      %v280 = vld [vmem:[%s253 + $0xb1] sm:$0xff]
      %v281 = vld [vmem:[%s253 + $0xc1] sm:$0xff]
      %v282 = vld [vmem:[%s253 + $0xd1] sm:$0xff]
      %v283 = vld [vmem:[%s253 + $0xe1] sm:$0xff]
      %v284 = vld [vmem:[%s253 + $0xf1] sm:$0xff]
      %v285 = vld [vmem:[%s253 + $0x101] sm:$0xff]
      %s286 = sadd.s32 %s217, 1
      %s287 = smul.u32 %s286, 144
      %s288 = scalar_lea.vmem %s197, %s287
      %v289 = vld [vmem:[%s288] sm:$0xff]
      %v290 = vld [vmem:[%s288 + $0x10] sm:$0xff]
      %v291 = vld [vmem:[%s288 + $0x20] sm:$0xff]
      %v292 = vld [vmem:[%s288 + $0x30] sm:$0xff]
      %v293 = vld [vmem:[%s288 + $0x40] sm:$0xff]
      %v294 = vld [vmem:[%s288 + $0x50] sm:$0xff]
      %v295 = vld [vmem:[%s288 + $0x60] sm:$0xff]
      %v296 = vld [vmem:[%s288 + $0x70] sm:$0xff]
      %v297 = vld [vmem:[%s288 + $0x90] sm:$0xff]
      %v298 = vld [vmem:[%s288 + $0xa0] sm:$0xff]
      %v299 = vld [vmem:[%s288 + $0xb0] sm:$0xff]
      %v300 = vld [vmem:[%s288 + $0xc0] sm:$0xff]
      %v301 = vld [vmem:[%s288 + $0xd0] sm:$0xff]
      %v302 = vld [vmem:[%s288 + $0xe0] sm:$0xff]
      %v303 = vld [vmem:[%s288 + $0xf0] sm:$0xff]
      %v304 = vld [vmem:[%s288 + $0x100] sm:$0xff]
      %v305 = vld [vmem:[%s288 + $0x1] sm:$0xff]
      %v306 = vld [vmem:[%s288 + $0x11] sm:$0xff]
      %v307 = vld [vmem:[%s288 + $0x21] sm:$0xff]
      %v308 = vld [vmem:[%s288 + $0x31] sm:$0xff]
      %v309 = vld [vmem:[%s288 + $0x41] sm:$0xff]
      %v310 = vld [vmem:[%s288 + $0x51] sm:$0xff]
      %v311 = vld [vmem:[%s288 + $0x61] sm:$0xff]
      %v312 = vld [vmem:[%s288 + $0x71] sm:$0xff]
      %v313 = vld [vmem:[%s288 + $0x91] sm:$0xff]
      %v314 = vld [vmem:[%s288 + $0xa1] sm:$0xff]
      %v315 = vld [vmem:[%s288 + $0xb1] sm:$0xff]
      %v316 = vld [vmem:[%s288 + $0xc1] sm:$0xff]
      %v317 = vld [vmem:[%s288 + $0xd1] sm:$0xff]
      %v318 = vld [vmem:[%s288 + $0xe1] sm:$0xff]
      %v319 = vld [vmem:[%s288 + $0xf1] sm:$0xff]
      %v320 = vld [vmem:[%s288 + $0x101] sm:$0xff]
      %s321 = sadd.s32 16, %s287
      %s322 = scalar_lea.vmem %s197, %s321
      %v323 = vld [vmem:[%s322] sm:$0xff]
      %v324 = vld [vmem:[%s322 + $0x10] sm:$0xff]
      %v325 = vld [vmem:[%s322 + $0x20] sm:$0xff]
      %v326 = vld [vmem:[%s322 + $0x30] sm:$0xff]
      %v327 = vld [vmem:[%s322 + $0x40] sm:$0xff]
      %v328 = vld [vmem:[%s322 + $0x50] sm:$0xff]
      %v329 = vld [vmem:[%s322 + $0x60] sm:$0xff]
      %v330 = vld [vmem:[%s322 + $0x70] sm:$0xff]
      %v331 = vld [vmem:[%s322 + $0x90] sm:$0xff]
      %v332 = vld [vmem:[%s322 + $0xa0] sm:$0xff]
      %v333 = vld [vmem:[%s322 + $0xb0] sm:$0xff]
      %v334 = vld [vmem:[%s322 + $0xc0] sm:$0xff]
      %v335 = vld [vmem:[%s322 + $0xd0] sm:$0xff]
      %v336 = vld [vmem:[%s322 + $0xe0] sm:$0xff]
      %v337 = vld [vmem:[%s322 + $0xf0] sm:$0xff]
      %v338 = vld [vmem:[%s322 + $0x100] sm:$0xff]
      %v339 = vld [vmem:[%s322 + $0x1] sm:$0xff]
      %v340 = vld [vmem:[%s322 + $0x11] sm:$0xff]
      %v341 = vld [vmem:[%s322 + $0x21] sm:$0xff]
      %v342 = vld [vmem:[%s322 + $0x31] sm:$0xff]
      %v343 = vld [vmem:[%s322 + $0x41] sm:$0xff]
      %v344 = vld [vmem:[%s322 + $0x51] sm:$0xff]
      %v345 = vld [vmem:[%s322 + $0x61] sm:$0xff]
      %v346 = vld [vmem:[%s322 + $0x71] sm:$0xff]
      %v347 = vld [vmem:[%s322 + $0x91] sm:$0xff]
      %v348 = vld [vmem:[%s322 + $0xa1] sm:$0xff]
      %v349 = vld [vmem:[%s322 + $0xb1] sm:$0xff]
      %v350 = vld [vmem:[%s322 + $0xc1] sm:$0xff]
      %v351 = vld [vmem:[%s322 + $0xd1] sm:$0xff]
      %v352 = vld [vmem:[%s322 + $0xe1] sm:$0xff]
      %v353 = vld [vmem:[%s322 + $0xf1] sm:$0xff]
      %v354 = vld [vmem:[%s322 + $0x101] sm:$0xff]
      %371 = vrot.lane.b32.xlu0 %v236, 32
      %v372 = vpop.permute.xlu0 %371
      %373 = vrot.lane.b32.xlu0 %v237, 32
      %v374 = vpop.permute.xlu0 %373
      %375 = vrot.lane.b32.xlu0 %v238, 32
      %v376 = vpop.permute.xlu0 %375
      %377 = vrot.lane.b32.xlu0 %v239, 32
      %v378 = vpop.permute.xlu0 %377
      %379 = vrot.lane.b32.xlu0 %v240, 32
      %v380 = vpop.permute.xlu0 %379
      %381 = vrot.lane.b32.xlu0 %v241, 32
      %v382 = vpop.permute.xlu0 %381
      %383 = vrot.lane.b32.xlu0 %v242, 32
      %v384 = vpop.permute.xlu0 %383
      %385 = vrot.lane.b32.xlu0 %v243, 32
      %v386 = vpop.permute.xlu0 %385
      %387 = vrot.lane.b32.xlu0 %v244, 32
      %v388 = vpop.permute.xlu0 %387
      %389 = vrot.lane.b32.xlu0 %v245, 32
      %v390 = vpop.permute.xlu0 %389
      %391 = vrot.lane.b32.xlu0 %v246, 32
      %v392 = vpop.permute.xlu0 %391
      %393 = vrot.lane.b32.xlu0 %v247, 32
      %v394 = vpop.permute.xlu0 %393
      %395 = vrot.lane.b32.xlu0 %v248, 32
      %v396 = vpop.permute.xlu0 %395
      %397 = vrot.lane.b32.xlu0 %v249, 32
      %v398 = vpop.permute.xlu0 %397
      %399 = vrot.lane.b32.xlu0 %v250, 32
      %v400 = vpop.permute.xlu0 %399
      %401 = vrot.lane.b32.xlu0 %v251, 32
      %v402 = vpop.permute.xlu0 %401
      %435 = vrot.lane.b32.xlu0 %v254, 64
      %v436 = vpop.permute.xlu0 %435
      %437 = vrot.lane.b32.xlu0 %v255, 64
      %v438 = vpop.permute.xlu0 %437
      %439 = vrot.lane.b32.xlu0 %v256, 64
      %v440 = vpop.permute.xlu0 %439
      %441 = vrot.lane.b32.xlu0 %v257, 64
      %v442 = vpop.permute.xlu0 %441
      %443 = vrot.lane.b32.xlu0 %v258, 64
      %v444 = vpop.permute.xlu0 %443
      %445 = vrot.lane.b32.xlu0 %v259, 64
      %v446 = vpop.permute.xlu0 %445
      %447 = vrot.lane.b32.xlu0 %v260, 64
      %v448 = vpop.permute.xlu0 %447
      %449 = vrot.lane.b32.xlu0 %v261, 64
      %v450 = vpop.permute.xlu0 %449
      %451 = vrot.lane.b32.xlu0 %v262, 64
      %v452 = vpop.permute.xlu0 %451
      %453 = vrot.lane.b32.xlu0 %v263, 64
      %v454 = vpop.permute.xlu0 %453
      %455 = vrot.lane.b32.xlu0 %v264, 64
      %v456 = vpop.permute.xlu0 %455
      %457 = vrot.lane.b32.xlu0 %v265, 64
      %v458 = vpop.permute.xlu0 %457
      %459 = vrot.lane.b32.xlu0 %v266, 64
      %v460 = vpop.permute.xlu0 %459
      %461 = vrot.lane.b32.xlu0 %v267, 64
      %v462 = vpop.permute.xlu0 %461
      %463 = vrot.lane.b32.xlu0 %v268, 64
      %v464 = vpop.permute.xlu0 %463
      %465 = vrot.lane.b32.xlu0 %v269, 64
      %v466 = vpop.permute.xlu0 %465
      %499 = vrot.lane.b32.xlu0 %v270, 96
      %v500 = vpop.permute.xlu0 %499
      %501 = vrot.lane.b32.xlu0 %v271, 96
      %v502 = vpop.permute.xlu0 %501
      %503 = vrot.lane.b32.xlu0 %v272, 96
      %v504 = vpop.permute.xlu0 %503
      %505 = vrot.lane.b32.xlu0 %v273, 96
      %v506 = vpop.permute.xlu0 %505
      %507 = vrot.lane.b32.xlu0 %v274, 96
      %v508 = vpop.permute.xlu0 %507
      %509 = vrot.lane.b32.xlu0 %v275, 96
      %v510 = vpop.permute.xlu0 %509
      %511 = vrot.lane.b32.xlu0 %v276, 96
      %v512 = vpop.permute.xlu0 %511
      %513 = vrot.lane.b32.xlu0 %v277, 96
      %v514 = vpop.permute.xlu0 %513
      %515 = vrot.lane.b32.xlu0 %v278, 96
      %v516 = vpop.permute.xlu0 %515
      %517 = vrot.lane.b32.xlu0 %v279, 96
      %v518 = vpop.permute.xlu0 %517
      %519 = vrot.lane.b32.xlu0 %v280, 96
      %v520 = vpop.permute.xlu0 %519
      %521 = vrot.lane.b32.xlu0 %v281, 96
      %v522 = vpop.permute.xlu0 %521
      %523 = vrot.lane.b32.xlu0 %v282, 96
      %v524 = vpop.permute.xlu0 %523
      %525 = vrot.lane.b32.xlu0 %v283, 96
      %v526 = vpop.permute.xlu0 %525
      %527 = vrot.lane.b32.xlu0 %v284, 96
      %v528 = vpop.permute.xlu0 %527
      %529 = vrot.lane.b32.xlu0 %v285, 96
      %v530 = vpop.permute.xlu0 %529
      %563 = vrot.lane.b32.xlu0 %v305, 32
      %v564 = vpop.permute.xlu0 %563
      %565 = vrot.lane.b32.xlu0 %v306, 32
      %v566 = vpop.permute.xlu0 %565
      %567 = vrot.lane.b32.xlu0 %v307, 32
      %v568 = vpop.permute.xlu0 %567
      %569 = vrot.lane.b32.xlu0 %v308, 32
      %v570 = vpop.permute.xlu0 %569
      %571 = vrot.lane.b32.xlu0 %v309, 32
      %v572 = vpop.permute.xlu0 %571
      %573 = vrot.lane.b32.xlu0 %v310, 32
      %v574 = vpop.permute.xlu0 %573
      %575 = vrot.lane.b32.xlu0 %v311, 32
      %v576 = vpop.permute.xlu0 %575
      %577 = vrot.lane.b32.xlu0 %v312, 32
      %v578 = vpop.permute.xlu0 %577
      %579 = vrot.lane.b32.xlu0 %v313, 32
      %v580 = vpop.permute.xlu0 %579
      %581 = vrot.lane.b32.xlu0 %v314, 32
      %v582 = vpop.permute.xlu0 %581
      %583 = vrot.lane.b32.xlu0 %v315, 32
      %v584 = vpop.permute.xlu0 %583
      %585 = vrot.lane.b32.xlu0 %v316, 32
      %v586 = vpop.permute.xlu0 %585
      %587 = vrot.lane.b32.xlu0 %v317, 32
      %v588 = vpop.permute.xlu0 %587
      %589 = vrot.lane.b32.xlu0 %v318, 32
      %v590 = vpop.permute.xlu0 %589
      %591 = vrot.lane.b32.xlu0 %v319, 32
      %v592 = vpop.permute.xlu0 %591
      %593 = vrot.lane.b32.xlu0 %v320, 32
      %v594 = vpop.permute.xlu0 %593
      %627 = vrot.lane.b32.xlu0 %v323, 64
      %v628 = vpop.permute.xlu0 %627
      %629 = vrot.lane.b32.xlu0 %v324, 64
      %v630 = vpop.permute.xlu0 %629
      %631 = vrot.lane.b32.xlu0 %v325, 64
      %v632 = vpop.permute.xlu0 %631
      %633 = vrot.lane.b32.xlu0 %v326, 64
      %v634 = vpop.permute.xlu0 %633
      %635 = vrot.lane.b32.xlu0 %v327, 64
      %v636 = vpop.permute.xlu0 %635
      %637 = vrot.lane.b32.xlu0 %v328, 64
      %v638 = vpop.permute.xlu0 %637
      %639 = vrot.lane.b32.xlu0 %v329, 64
      %v640 = vpop.permute.xlu0 %639
      %641 = vrot.lane.b32.xlu0 %v330, 64
      %v642 = vpop.permute.xlu0 %641
      %643 = vrot.lane.b32.xlu0 %v331, 64
      %v644 = vpop.permute.xlu0 %643
      %645 = vrot.lane.b32.xlu0 %v332, 64
      %v646 = vpop.permute.xlu0 %645
      %647 = vrot.lane.b32.xlu0 %v333, 64
      %v648 = vpop.permute.xlu0 %647
      %649 = vrot.lane.b32.xlu0 %v334, 64
      %v650 = vpop.permute.xlu0 %649
      %651 = vrot.lane.b32.xlu0 %v335, 64
      %v652 = vpop.permute.xlu0 %651
      %653 = vrot.lane.b32.xlu0 %v336, 64
      %v654 = vpop.permute.xlu0 %653
      %655 = vrot.lane.b32.xlu0 %v337, 64
      %v656 = vpop.permute.xlu0 %655
      %657 = vrot.lane.b32.xlu0 %v338, 64
      %v658 = vpop.permute.xlu0 %657
      %691 = vrot.lane.b32.xlu0 %v339, 96
      %v692 = vpop.permute.xlu0 %691
      %693 = vrot.lane.b32.xlu0 %v340, 96
      %v694 = vpop.permute.xlu0 %693
      %695 = vrot.lane.b32.xlu0 %v341, 96
      %v696 = vpop.permute.xlu0 %695
      %697 = vrot.lane.b32.xlu0 %v342, 96
      %v698 = vpop.permute.xlu0 %697
      %699 = vrot.lane.b32.xlu0 %v343, 96
      %v700 = vpop.permute.xlu0 %699
      %701 = vrot.lane.b32.xlu0 %v344, 96
      %v702 = vpop.permute.xlu0 %701
      %703 = vrot.lane.b32.xlu0 %v345, 96
      %v704 = vpop.permute.xlu0 %703
      %705 = vrot.lane.b32.xlu0 %v346, 96
      %v706 = vpop.permute.xlu0 %705
      %707 = vrot.lane.b32.xlu0 %v347, 96
      %v708 = vpop.permute.xlu0 %707
      %709 = vrot.lane.b32.xlu0 %v348, 96
      %v710 = vpop.permute.xlu0 %709
      %711 = vrot.lane.b32.xlu0 %v349, 96
      %v712 = vpop.permute.xlu0 %711
      %713 = vrot.lane.b32.xlu0 %v350, 96
      %v714 = vpop.permute.xlu0 %713
      %715 = vrot.lane.b32.xlu0 %v351, 96
      %v716 = vpop.permute.xlu0 %715
      %717 = vrot.lane.b32.xlu0 %v352, 96
      %v718 = vpop.permute.xlu0 %717
      %719 = vrot.lane.b32.xlu0 %v353, 96
      %v720 = vpop.permute.xlu0 %719
      %721 = vrot.lane.b32.xlu0 %v354, 96
      %v722 = vpop.permute.xlu0 %721
      %vm739 = vcmask 261120
      %v740 = vsel %vm739, %v220, %v372
      %v741 = vsel %vm739, %v221, %v374
      %v742 = vsel %vm739, %v222, %v376
      %v743 = vsel %vm739, %v223, %v378
      %v744 = vsel %vm739, %v224, %v380
      %v745 = vsel %vm739, %v225, %v382
      %v746 = vsel %vm739, %v226, %v384
      %v747 = vsel %vm739, %v227, %v386
      %v748 = vsel %vm739, %v228, %v388
      %v749 = vsel %vm739, %v229, %v390
      %v750 = vsel %vm739, %v230, %v392
      %v751 = vsel %vm739, %v231, %v394
      %v752 = vsel %vm739, %v232, %v396
      %v753 = vsel %vm739, %v233, %v398
      %v754 = vsel %vm739, %v234, %v400
      %v755 = vsel %vm739, %v235, %v402
      %vm756 = vcmask 523264
      %v757 = vsel %vm756, %v740, %v436
      %v758 = vsel %vm756, %v741, %v438
      %v759 = vsel %vm756, %v742, %v440
      %v760 = vsel %vm756, %v743, %v442
      %v761 = vsel %vm756, %v744, %v444
      %v762 = vsel %vm756, %v745, %v446
      %v763 = vsel %vm756, %v746, %v448
      %v764 = vsel %vm756, %v747, %v450
      %v765 = vsel %vm756, %v748, %v452
      %v766 = vsel %vm756, %v749, %v454
      %v767 = vsel %vm756, %v750, %v456
      %v768 = vsel %vm756, %v751, %v458
      %v769 = vsel %vm756, %v752, %v460
      %v770 = vsel %vm756, %v753, %v462
      %v771 = vsel %vm756, %v754, %v464
      %v772 = vsel %vm756, %v755, %v466
      %vm773 = vcmask 785408
      %v774 = vsel %vm773, %v757, %v500
      %v775 = vsel %vm773, %v758, %v502
      %v776 = vsel %vm773, %v759, %v504
      %v777 = vsel %vm773, %v760, %v506
      %v778 = vsel %vm773, %v761, %v508
      %v779 = vsel %vm773, %v762, %v510
      %v780 = vsel %vm773, %v763, %v512
      %v781 = vsel %vm773, %v764, %v514
      %v782 = vsel %vm773, %v765, %v516
      %v783 = vsel %vm773, %v766, %v518
      %v784 = vsel %vm773, %v767, %v520
      %v785 = vsel %vm773, %v768, %v522
      %v786 = vsel %vm773, %v769, %v524
      %v787 = vsel %vm773, %v770, %v526
      %v788 = vsel %vm773, %v771, %v528
      %v789 = vsel %vm773, %v772, %v530
      %v790 = vsel %vm739, %v289, %v564
      %v791 = vsel %vm739, %v290, %v566
      %v792 = vsel %vm739, %v291, %v568
      %v793 = vsel %vm739, %v292, %v570
      %v794 = vsel %vm739, %v293, %v572
      %v795 = vsel %vm739, %v294, %v574
      %v796 = vsel %vm739, %v295, %v576
      %v797 = vsel %vm739, %v296, %v578
      %v798 = vsel %vm739, %v297, %v580
      %v799 = vsel %vm739, %v298, %v582
      %v800 = vsel %vm739, %v299, %v584
      %v801 = vsel %vm739, %v300, %v586
      %v802 = vsel %vm739, %v301, %v588
      %v803 = vsel %vm739, %v302, %v590
      %v804 = vsel %vm739, %v303, %v592
      %v805 = vsel %vm739, %v304, %v594
      %v806 = vsel %vm756, %v790, %v628
      %v807 = vsel %vm756, %v791, %v630
      %v808 = vsel %vm756, %v792, %v632
      %v809 = vsel %vm756, %v793, %v634
      %v810 = vsel %vm756, %v794, %v636
      %v811 = vsel %vm756, %v795, %v638
      %v812 = vsel %vm756, %v796, %v640
      %v813 = vsel %vm756, %v797, %v642
      %v814 = vsel %vm756, %v798, %v644
      %v815 = vsel %vm756, %v799, %v646
      %v816 = vsel %vm756, %v800, %v648
      %v817 = vsel %vm756, %v801, %v650
      %v818 = vsel %vm756, %v802, %v652
      %v819 = vsel %vm756, %v803, %v654
      %v820 = vsel %vm756, %v804, %v656
      %v821 = vsel %vm756, %v805, %v658
      %v822 = vsel %vm773, %v806, %v692
      %v823 = vsel %vm773, %v807, %v694
      %v824 = vsel %vm773, %v808, %v696
      %v825 = vsel %vm773, %v809, %v698
      %v826 = vsel %vm773, %v810, %v700
      %v827 = vsel %vm773, %v811, %v702
      %v828 = vsel %vm773, %v812, %v704
      %v829 = vsel %vm773, %v813, %v706
      %v830 = vsel %vm773, %v814, %v708
      %v831 = vsel %vm773, %v815, %v710
      %v832 = vsel %vm773, %v816, %v712
      %v833 = vsel %vm773, %v817, %v714
      %v834 = vsel %vm773, %v818, %v716
      %v835 = vsel %vm773, %v819, %v718
      %v836 = vsel %vm773, %v820, %v720
      %v837 = vsel %vm773, %v821, %v722
      %v838 = vld [vmem:[%s1] sm:$0xff]
      %v839 = vld [vmem:[%s1 + $0x8] sm:$0xff]
      %v840 = vld [vmem:[%s1 + $0x10] sm:$0xff]
      %v841 = vld [vmem:[%s1 + $0x18] sm:$0xff]
      %v842 = vld [vmem:[%s1 + $0x20] sm:$0xff]
      %v843 = vld [vmem:[%s1 + $0x28] sm:$0xff]
      %v844 = vld [vmem:[%s1 + $0x30] sm:$0xff]
      %v845 = vld [vmem:[%s1 + $0x38] sm:$0xff]
      %v846 = vld [vmem:[%s1 + $0x40] sm:$0xff]
      %v847 = vld [vmem:[%s1 + $0x48] sm:$0xff]
      %v848 = vld [vmem:[%s1 + $0x50] sm:$0xff]
      %v849 = vld [vmem:[%s1 + $0x58] sm:$0xff]
      %v850 = vld [vmem:[%s1 + $0x60] sm:$0xff]
      %v851 = vld [vmem:[%s1 + $0x68] sm:$0xff]
      %v852 = vld [vmem:[%s1 + $0x70] sm:$0xff]
      %v853 = vld [vmem:[%s1 + $0x78] sm:$0xff]
      %v854 = vld [vmem:[%s1 + $0x80] sm:$0xff]
      %v855 = vld [vmem:[%s1 + $0x88] sm:$0xff]
      %v856 = vld [vmem:[%s1 + $0x90] sm:$0xff]
      %v857 = vld [vmem:[%s1 + $0x98] sm:$0xff]
      %v858 = vld [vmem:[%s1 + $0xa0] sm:$0xff]
      %v859 = vld [vmem:[%s1 + $0xa8] sm:$0xff]
      %v860 = vld [vmem:[%s1 + $0xb0] sm:$0xff]
      %v861 = vld [vmem:[%s1 + $0xb8] sm:$0xff]
      %v862 = vld [vmem:[%s1 + $0xc0] sm:$0xff]
      %v863 = vld [vmem:[%s1 + $0xc8] sm:$0xff]
      %v864 = vld [vmem:[%s1 + $0xd0] sm:$0xff]
      %v865 = vld [vmem:[%s1 + $0xd8] sm:$0xff]
      %v866 = vld [vmem:[%s1 + $0xe0] sm:$0xff]
      %v867 = vld [vmem:[%s1 + $0xe8] sm:$0xff]
      %v868 = vld [vmem:[%s1 + $0xf0] sm:$0xff]
      %v869 = vld [vmem:[%s1 + $0xf8] sm:$0xff]
      %870 = vmatprep.subr.mxu0 0.0
      %871 = vmatpush1.msra.mxu0 %v838
      %872 = vmatprep.subr.mxu0 0.0
      %873 = vmatpush1.msra.mxu0 %v839
      %874 = vmatprep.subr.mxu0 0.0
      %875 = vmatpush1.msra.mxu0 %v840
      %876 = vmatprep.subr.mxu0 0.0
      %877 = vmatpush1.msra.mxu0 %v841
      %878 = vmatprep.subr.mxu0 0.0
      %879 = vmatpush1.msra.mxu0 %v842
      %880 = vmatprep.subr.mxu0 0.0
      %881 = vmatpush1.msra.mxu0 %v843
      %882 = vmatprep.subr.mxu0 0.0
      %883 = vmatpush1.msra.mxu0 %v844
      %884 = vmatprep.subr.mxu0 0.0
      %885 = vmatpush1.msra.mxu0 %v845
      %886 = vmatprep.subr.mxu0 0.0
      %887 = vmatpush1.msra.mxu0 %v846
      %888 = vmatprep.subr.mxu0 0.0
      %889 = vmatpush1.msra.mxu0 %v847
      %890 = vmatprep.subr.mxu0 0.0
      %891 = vmatpush1.msra.mxu0 %v848
      %892 = vmatprep.subr.mxu0 0.0
      %893 = vmatpush1.msra.mxu0 %v849
      %894 = vmatprep.subr.mxu0 0.0
      %895 = vmatpush1.msra.mxu0 %v850
      %896 = vmatprep.subr.mxu0 0.0
      %897 = vmatpush1.msra.mxu0 %v851
      %898 = vmatprep.subr.mxu0 0.0
      %899 = vmatpush1.msra.mxu0 %v852
      %900 = vmatprep.subr.mxu0 0.0
      %901 = vmatpush1.msra.mxu0 %v853
      %902 = vmatprep.subr.mxu0 0.0
      %903 = vmatpush1.msra.mxu0 %v854
      %904 = vmatprep.subr.mxu0 0.0
      %905 = vmatpush1.msra.mxu0 %v855
      %906 = vmatprep.subr.mxu0 0.0
      %907 = vmatpush1.msra.mxu0 %v856
      %908 = vmatprep.subr.mxu0 0.0
      %909 = vmatpush1.msra.mxu0 %v857
      %910 = vmatprep.subr.mxu0 0.0
      %911 = vmatpush1.msra.mxu0 %v858
      %912 = vmatprep.subr.mxu0 0.0
      %913 = vmatpush1.msra.mxu0 %v859
      %914 = vmatprep.subr.mxu0 0.0
      %915 = vmatpush1.msra.mxu0 %v860
      %916 = vmatprep.subr.mxu0 0.0
      %917 = vmatpush1.msra.mxu0 %v861
      %918 = vmatprep.subr.mxu0 0.0
      %919 = vmatpush1.msra.mxu0 %v862
      %920 = vmatprep.subr.mxu0 0.0
      %921 = vmatpush1.msra.mxu0 %v863
      %922 = vmatprep.subr.mxu0 0.0
      %923 = vmatpush1.msra.mxu0 %v864
      %924 = vmatprep.subr.mxu0 0.0
      %925 = vmatpush1.msra.mxu0 %v865
      %926 = vmatprep.subr.mxu0 0.0
      %927 = vmatpush1.msra.mxu0 %v866
      %928 = vmatprep.subr.mxu0 0.0
      %929 = vmatpush1.msra.mxu0 %v867
      %930 = vmatprep.subr.mxu0 0.0
      %931 = vmatpush1.msra.mxu0 %v868
      %932 = vmatprep.subr.mxu0 0.0
      %933 = vmatpush1.msra.mxu0 %v869
      %934 = vmatprep.mubr.f32.mxu0 %v822
      %935 = vmatmul.mubr.f32.gmra.mrb[0].mxu0 %v774
      %v936 = vpop.f32.mrb[0].mxu0
      %v937 = vadd.f32 0.0, %v936
      %v938 = vpop.f32.mrb[0].mxu0
      %939 = vmatprep.mubr.f32.mxu0 %v823
      %940 = vmatmul.mubr.f32.gmra.mrb[0].mxu0 %v775
      %v941 = vpop.f32.mrb[0].mxu0
      %v942 = vadd.f32 0.0, %v941
      %v943 = vpop.f32.mrb[0].mxu0
      %944 = vmatprep.mubr.f32.mxu0 %v824
      %945 = vmatmul.mubr.f32.gmra.mrb[0].mxu0 %v776
      %v946 = vpop.f32.mrb[0].mxu0
      %v947 = vadd.f32 0.0, %v946
      %v948 = vpop.f32.mrb[0].mxu0
      %949 = vmatprep.mubr.f32.mxu0 %v825
      %950 = vmatmul.mubr.f32.gmra.mrb[0].mxu0 %v777
      %v951 = vpop.f32.mrb[0].mxu0
      %v952 = vadd.f32 0.0, %v951
      %v953 = vpop.f32.mrb[0].mxu0
      %954 = vmatprep.mubr.f32.mxu0 %v826
      %955 = vmatmul.mubr.f32.gmra.mrb[0].mxu0 %v778
      %v956 = vpop.f32.mrb[0].mxu0
      %v957 = vadd.f32 0.0, %v956
      %v958 = vpop.f32.mrb[0].mxu0
      %959 = vmatprep.mubr.f32.mxu0 %v827
      %960 = vmatmul.mubr.f32.gmra.mrb[0].mxu0 %v779
      %v961 = vpop.f32.mrb[0].mxu0
      %v962 = vadd.f32 0.0, %v961
      %v963 = vpop.f32.mrb[0].mxu0
      %964 = vmatprep.mubr.f32.mxu0 %v828
      %965 = vmatmul.mubr.f32.gmra.mrb[0].mxu0 %v780
      %v966 = vpop.f32.mrb[0].mxu0
      %v967 = vadd.f32 0.0, %v966
      %v968 = vpop.f32.mrb[0].mxu0
      %969 = vmatprep.mubr.f32.mxu0 %v829
      %970 = vmatmul.mubr.f32.gmra.mrb[0].mxu0 %v781
      %v971 = vpop.f32.mrb[0].mxu0
      %v972 = vadd.f32 0.0, %v971
      %v973 = vpop.f32.mrb[0].mxu0
      %974 = vmatprep.mubr.f32.mxu0 %v830
      %975 = vmatmul.mubr.f32.gmra.mrb[0].mxu0 %v782
      %v976 = vpop.f32.mrb[0].mxu0
      %v977 = vadd.f32 0.0, %v976
      %v978 = vpop.f32.mrb[0].mxu0
      %979 = vmatprep.mubr.f32.mxu0 %v831
      %980 = vmatmul.mubr.f32.gmra.mrb[0].mxu0 %v783
      %v981 = vpop.f32.mrb[0].mxu0
      %v982 = vadd.f32 0.0, %v981
      %v983 = vpop.f32.mrb[0].mxu0
      %984 = vmatprep.mubr.f32.mxu0 %v832
      %985 = vmatmul.mubr.f32.gmra.mrb[0].mxu0 %v784
      %v986 = vpop.f32.mrb[0].mxu0
      %v987 = vadd.f32 0.0, %v986
      %v988 = vpop.f32.mrb[0].mxu0
      %989 = vmatprep.mubr.f32.mxu0 %v833
      %990 = vmatmul.mubr.f32.gmra.mrb[0].mxu0 %v785
      %v991 = vpop.f32.mrb[0].mxu0
      %v992 = vadd.f32 0.0, %v991
      %v993 = vpop.f32.mrb[0].mxu0
      %994 = vmatprep.mubr.f32.mxu0 %v834
      %995 = vmatmul.mubr.f32.gmra.mrb[0].mxu0 %v786
      %v996 = vpop.f32.mrb[0].mxu0
      %v997 = vadd.f32 0.0, %v996
      %v998 = vpop.f32.mrb[0].mxu0
      %999 = vmatprep.mubr.f32.mxu0 %v835
      %1000 = vmatmul.mubr.f32.gmra.mrb[0].mxu0 %v787
      %v1001 = vpop.f32.mrb[0].mxu0
      %v1002 = vadd.f32 0.0, %v1001
      %v1003 = vpop.f32.mrb[0].mxu0
      %1004 = vmatprep.mubr.f32.mxu0 %v836
      %1005 = vmatmul.mubr.f32.gmra.mrb[0].mxu0 %v788
      %v1006 = vpop.f32.mrb[0].mxu0
      %v1007 = vadd.f32 0.0, %v1006
      %v1008 = vpop.f32.mrb[0].mxu0
      %1009 = vmatprep.mubr.f32.mxu0 %v837
      %1010 = vmatmul.mubr.f32.gmra.mrb[0].mxu0 %v789
      %v1011 = vpop.f32.mrb[0].mxu0
      %v1012 = vadd.f32 0.0, %v1011
      %v1013 = vpop.f32.mrb[0].mxu0
      %1014 = vdwg.mxu0
      %vm1015 = vcmask 64512
      %1016 = vst.msk [vmem:[%s207] sm:$0xff] %vm1015, %v937
      %1017 = vst.msk [vmem:[%s207 + $0x8] sm:$0xff] %vm1015, %v942
      %1018 = vst.msk [vmem:[%s207 + $0x10] sm:$0xff] %vm1015, %v947
      %1019 = vst.msk [vmem:[%s207 + $0x18] sm:$0xff] %vm1015, %v952
      %1020 = vst.msk [vmem:[%s207 + $0x20] sm:$0xff] %vm1015, %v957
      %1021 = vst.msk [vmem:[%s207 + $0x28] sm:$0xff] %vm1015, %v962
      %1022 = vst.msk [vmem:[%s207 + $0x30] sm:$0xff] %vm1015, %v967
      %1023 = vst.msk [vmem:[%s207 + $0x38] sm:$0xff] %vm1015, %v972
      %1024 = vst.msk [vmem:[%s207 + $0x40] sm:$0xff] %vm1015, %v977
      %1025 = vst.msk [vmem:[%s207 + $0x48] sm:$0xff] %vm1015, %v982
      %1026 = vst.msk [vmem:[%s207 + $0x50] sm:$0xff] %vm1015, %v987
      %1027 = vst.msk [vmem:[%s207 + $0x58] sm:$0xff] %vm1015, %v992
      %1028 = vst.msk [vmem:[%s207 + $0x60] sm:$0xff] %vm1015, %v997
      %1029 = vst.msk [vmem:[%s207 + $0x68] sm:$0xff] %vm1015, %v1002
      %1030 = vst.msk [vmem:[%s207 + $0x70] sm:$0xff] %vm1015, %v1007
      %1031 = vst.msk [vmem:[%s207 + $0x78] sm:$0xff] %vm1015, %v1012
      %v1032 = vsel %vm1015, %v937, 0.0
      %v1033 = vsel %vm1015, %v942, 0.0
      %v1034 = vadd.f32 %v1032, %v1033
      %v1035 = vsel %vm1015, %v947, 0.0
      %v1036 = vadd.f32 %v1034, %v1035
      %v1037 = vsel %vm1015, %v952, 0.0
      %v1038 = vadd.f32 %v1036, %v1037
      %v1039 = vsel %vm1015, %v957, 0.0
      %v1040 = vadd.f32 %v1038, %v1039
      %v1041 = vsel %vm1015, %v962, 0.0
      %v1042 = vadd.f32 %v1040, %v1041
      %v1043 = vsel %vm1015, %v967, 0.0
      %v1044 = vadd.f32 %v1042, %v1043
      %v1045 = vsel %vm1015, %v972, 0.0
      %v1046 = vadd.f32 %v1044, %v1045
      %v1047 = vsel %vm1015, %v977, 0.0
      %v1048 = vadd.f32 %v1046, %v1047
      %v1049 = vsel %vm1015, %v982, 0.0
      %v1050 = vadd.f32 %v1048, %v1049
      %v1051 = vsel %vm1015, %v987, 0.0
      %v1052 = vadd.f32 %v1050, %v1051
      %v1053 = vsel %vm1015, %v992, 0.0
      %v1054 = vadd.f32 %v1052, %v1053
      %v1055 = vsel %vm1015, %v997, 0.0
      %v1056 = vadd.f32 %v1054, %v1055
      %v1057 = vsel %vm1015, %v1002, 0.0
      %v1058 = vadd.f32 %v1056, %v1057
      %v1059 = vsel %vm1015, %v1007, 0.0
      %v1060 = vadd.f32 %v1058, %v1059
      %v1061 = vsel %vm1015, %v1012, 0.0
      %v1062 = vadd.f32 %v1060, %v1061
      %v1063 = vrot.slane %v1062, 4
      %v1064 = vadd.f32 %v1062, %v1063
      %v1065 = vrot.slane %v1064, 2
      %v1066 = vadd.f32 %v1064, %v1065
      %v1067 = vrot.slane %v1066, 1
      %v1068 = vadd.f32 %v1066, %v1067
      %v1069 = vmul.f32 %v937, %v937
      %v1070 = vmul.f32 %v942, %v942
      %v1071 = vmul.f32 %v947, %v947
      %v1072 = vmul.f32 %v952, %v952
      %v1073 = vmul.f32 %v957, %v957
      %v1074 = vmul.f32 %v962, %v962
      %v1075 = vmul.f32 %v967, %v967
      %v1076 = vmul.f32 %v972, %v972
      %v1077 = vmul.f32 %v977, %v977
      %v1078 = vmul.f32 %v982, %v982
      %v1079 = vmul.f32 %v987, %v987
      %v1080 = vmul.f32 %v992, %v992
      %v1081 = vmul.f32 %v997, %v997
      %v1082 = vmul.f32 %v1002, %v1002
      %v1083 = vmul.f32 %v1007, %v1007
      %v1084 = vmul.f32 %v1012, %v1012
      %v1085 = vsel %vm1015, %v1069, 0.0
      %v1086 = vsel %vm1015, %v1070, 0.0
      %v1087 = vadd.f32 %v1085, %v1086
      %v1088 = vsel %vm1015, %v1071, 0.0
      %v1089 = vadd.f32 %v1087, %v1088
      %v1090 = vsel %vm1015, %v1072, 0.0
      %v1091 = vadd.f32 %v1089, %v1090
      %v1092 = vsel %vm1015, %v1073, 0.0
      %v1093 = vadd.f32 %v1091, %v1092
      %v1094 = vsel %vm1015, %v1074, 0.0
      %v1095 = vadd.f32 %v1093, %v1094
      %v1096 = vsel %vm1015, %v1075, 0.0
      %v1097 = vadd.f32 %v1095, %v1096
      %v1098 = vsel %vm1015, %v1076, 0.0
      %v1099 = vadd.f32 %v1097, %v1098
      %v1100 = vsel %vm1015, %v1077, 0.0
      %v1101 = vadd.f32 %v1099, %v1100
      %v1102 = vsel %vm1015, %v1078, 0.0
      %v1103 = vadd.f32 %v1101, %v1102
      %v1104 = vsel %vm1015, %v1079, 0.0
      %v1105 = vadd.f32 %v1103, %v1104
      %v1106 = vsel %vm1015, %v1080, 0.0
      %v1107 = vadd.f32 %v1105, %v1106
      %v1108 = vsel %vm1015, %v1081, 0.0
      %v1109 = vadd.f32 %v1107, %v1108
      %v1110 = vsel %vm1015, %v1082, 0.0
      %v1111 = vadd.f32 %v1109, %v1110
      %v1112 = vsel %vm1015, %v1083, 0.0
      %v1113 = vadd.f32 %v1111, %v1112
      %v1114 = vsel %vm1015, %v1084, 0.0
      %v1115 = vadd.f32 %v1113, %v1114
      %v1116 = vrot.slane %v1115, 4
      %v1117 = vadd.f32 %v1115, %v1116
      %v1118 = vrot.slane %v1117, 2
      %v1119 = vadd.f32 %v1117, %v1118
      %v1120 = vrot.slane %v1119, 1
      %v1121 = vadd.f32 %v1119, %v1120
      %vm1122 = vcmask 1040384
      %v1123 = vsel %vm1122, %v1068, %v1121
      %vm1124 = vcmask 58368
      %1125 = vst.msk [vmem:[%s216] sm:$0x3] %vm1124, %v1123
      %s1126 = smul.u32 2, %s20
      %p1127 = scmp.lt.s32.totalorder %s19, 1
      %s1128 = scalar_select %p1127, %s19, 1
      %p1129 = scmp.lt.s32.totalorder %s1126, 3
      %s1130 = scalar_select %p1129, %s1126, 3
      %s1131 = smul.addr %s1130, 8
      %s1132 = smul.addr %s1128, 32
      %s1133 = sadd.s32 %s1131, %s1132
      %s1134 = smul.addr %s1133, 8
      %s1135 = scalar_lea.vmem %s2, %s1134
      %p1136 = scmp.lt.s32.totalorder %s19, 1
      %s1137 = scalar_select %p1136, %s19, 1
      %p1138 = scmp.lt.s32.totalorder %s20, 1
      %s1139 = scalar_select %p1138, %s20, 1
      %s1140 = smul.addr %s1137, 2
      %s1141 = sadd.s32 %s1139, %s1140
      %s1142 = smul.addr %s1141, 2
      %s1143 = scalar_lea.vmem %s3, %s1142
      // Predicated region
      $region29: #{res_layer.14} parent=27 // pred_check
        %p1144 = pneg %p94
      $region30: #{res_layer.14} parent=27 // pred_check_branch
        %1146 = sbr.rel (%p1144) target = $region32
      $region31: #{res_layer.14} parent=27 // pred_region
        %s1147 = smul.u32 2, %s20
      $region32: #{res_layer.14} parent=27 // pred_fallthru
        _
      // Predicated region
      $region33: #{res_layer.14} parent=27 // pred_check
        %p1148 = pneg %p122
      $region34: #{res_layer.14} parent=27 // pred_check_branch
        %1150 = sbr.rel (%p1148) target = $region36
      $region35: #{res_layer.14} parent=27 // pred_region
        _
      $region36: #{res_layer.14} parent=27 // pred_fallthru
        _
    $region28: #{res_layer.14} parent=5 // pred_fallthru
      _
    %p1151 = scmp.le.s32.totalorder 2, %s10
    // Predicated region
    $region37: #{res_layer.14} parent=5 // pred_check
      %p1152 = pneg %p1151
    $region38: #{res_layer.14} parent=5 // pred_check_branch
      %1154 = sbr.rel (%p1152) target = $region40
    $region39: #{res_layer.14} parent=5 // pred_region
      %s1155 = ssub.s32 %s10, 2
      // Predicated region
      $region41: #{res_layer.14} parent=39 // pred_check
        %p1156 = pneg %p100
      $region42: #{res_layer.14} parent=39 // pred_check_branch
        %1158 = sbr.rel (%p1156) target = $region44
      $region43: #{res_layer.14} parent=39 // pred_region
        %s1159 = smul.u32 2, %s22
        %p1160 = scmp.lt.s32.totalorder %s21, 1
        %s1161 = scalar_select %p1160, %s21, 1
        %p1162 = scmp.lt.s32.totalorder %s1159, 3
        %s1163 = scalar_select %p1162, %s1159, 3
        %s1164 = smul.addr %s1163, 8
        %s1165 = smul.addr %s1161, 32
        %s1166 = sadd.s32 %s1164, %s1165
        %s1167 = smul.addr %s1166, 8
        %s1168 = scalar_lea.vmem %s2, %s1167
      $region44: #{res_layer.14} parent=39 // pred_fallthru
        _
      // Predicated region
      $region45: #{res_layer.14} parent=39 // pred_check
        %p1169 = pneg %p128
      $region46: #{res_layer.14} parent=39 // pred_check_branch
        %1171 = sbr.rel (%p1169) target = $region48
      $region47: #{res_layer.14} parent=39 // pred_region
        %p1172 = scmp.lt.s32.totalorder %s21, 1
        %s1173 = scalar_select %p1172, %s21, 1
        %p1174 = scmp.lt.s32.totalorder %s22, 1
        %s1175 = scalar_select %p1174, %s22, 1
        %s1176 = smul.addr %s1173, 2
        %s1177 = sadd.s32 %s1175, %s1176
        %s1178 = smul.addr %s1177, 2
        %s1179 = scalar_lea.vmem %s3, %s1178
      $region48: #{res_layer.14} parent=39 // pred_fallthru
        _
    $region40: #{res_layer.14} parent=5 // pred_fallthru
      _
  $region6: #{res_layer.14} parent=0 // loop_footer
    %s14 = sadd.s32 1, %s10
  $region7: #{res_layer.14} parent=0 // loop_footer_branch
    %9 = sbr.rel target = $region3
  $region8: #{res_layer.14} parent=0 // loop_exit
    _

// kernel: res_layer.16
$region0: #{res_layer.16}
  #allocation0 [shape = 'u32[]', space=smem, size = 0x4, offset = 0x4, fixed_abs, tag = 'smem constant byte address 0x4 - core index']
  #allocation1 [shape = 'u32[144,128]{1,0:T(1,128)}', space=vmem, size = 0x12000, scoped, tag = 'internal scratch']
  %s0 = inlined_call_operand.vmem [shape: f32[8,512], index: 0, kind: input, shape index: {}]
  %s1 = inlined_call_operand.vmem [shape: f32[4,512], index: 1, kind: input, shape index: {}]
  %s2 = inlined_call_operand.vmem [shape: f32[8,512], index: 2, kind: output, shape index: {}]
  %s3 = sld [smem:[#allocation0]]
  $region18: #{res_layer.16} parent=0
    _
  %s5 = ssub.s32 1, %s3
  %s6 = scalar_select 0, %s5, %s3
  // Predicated region
  $region2: #{res_layer.16} parent=0 // pred_check
    _
  $region3: #{res_layer.16} parent=0 // pred_check_branch
    %8 = sbr.rel (0) target = $region5
  $region4: #{res_layer.16} parent=0 // pred_region
    _
  $region5: #{res_layer.16} parent=0 // pred_fallthru
    _
  // Predicated region
  $region6: #{res_layer.16} parent=0 // pred_check
    _
  $region7: #{res_layer.16} parent=0 // pred_check_branch
    %10 = sbr.rel (0) target = $region9
  $region8: #{res_layer.16} parent=0 // pred_region
    _
  $region9: #{res_layer.16} parent=0 // pred_fallthru
    _
  %v11 = vld [vmem:[%s1] sm:$0xff]
  %v12 = vld [vmem:[%s1 + $0x8] sm:$0xff]
  %v13 = vld [vmem:[%s0] sm:$0xff]
  %v14 = vld [vmem:[%s0 + $0x8] sm:$0xff]
  %v15 = vld [vmem:[%s0 + $0x10] sm:$0xff]
  %v16 = vld [vmem:[%s0 + $0x18] sm:$0xff]
  %v19 = vlaneseq
  %v20 = vshrl.u32 %v19, 7
  %v21 = vsub.s32 0, %v20
  %v22 = vrot.slane %v11, %v21
  %v23 = vlaneseq
  %v24 = vshrl.u32 %v23, 7
  %v25 = vsub.s32 4, %v24
  %v26 = vrot.slane %v11, %v25
  %v27 = vlaneseq
  %v28 = vshrl.u32 %v27, 7
  %v29 = vsub.s32 0, %v28
  %v30 = vrot.slane %v12, %v29
  %v31 = vlaneseq
  %v32 = vshrl.u32 %v31, 7
  %v33 = vsub.s32 4, %v32
  %v34 = vrot.slane %v12, %v33
  %v39 = vlaneseq
  %v40 = vshrl.u32 %v39, 7
  %v41 = vsub.s32 0, %v40
  %v42 = vrot.slane %v22, %v41
  %v43 = vlaneseq
  %v44 = vshrl.u32 %v43, 7
  %v45 = vsub.s32 0, %v44
  %v46 = vrot.slane %v26, %v45
  %v47 = vlaneseq
  %v48 = vshrl.u32 %v47, 7
  %v49 = vsub.s32 0, %v48
  %v50 = vrot.slane %v30, %v49
  %v51 = vlaneseq
  %v52 = vshrl.u32 %v51, 7
  %v53 = vsub.s32 0, %v52
  %v54 = vrot.slane %v34, %v53
  %v55 = vmul.f32 %v13, %v42
  %v56 = vmul.f32 %v14, %v46
  %v57 = vmul.f32 %v15, %v50
  %v58 = vmul.f32 %v16, %v54
  %v59 = vlaneseq
  %v60 = vshrl.u32 %v59, 7
  %v61 = vsub.s32 1, %v60
  %v62 = vrot.slane %v11, %v61
  %v63 = vlaneseq
  %v64 = vshrl.u32 %v63, 7
  %v65 = vsub.s32 5, %v64
  %v66 = vrot.slane %v11, %v65
  %v67 = vlaneseq
  %v68 = vshrl.u32 %v67, 7
  %v69 = vsub.s32 1, %v68
  %v70 = vrot.slane %v12, %v69
  %v71 = vlaneseq
  %v72 = vshrl.u32 %v71, 7
  %v73 = vsub.s32 5, %v72
  %v74 = vrot.slane %v12, %v73
  %v79 = vlaneseq
  %v80 = vshrl.u32 %v79, 7
  %v81 = vsub.s32 1, %v80
  %v82 = vrot.slane %v62, %v81
  %v83 = vlaneseq
  %v84 = vshrl.u32 %v83, 7
  %v85 = vsub.s32 1, %v84
  %v86 = vrot.slane %v66, %v85
  %v87 = vlaneseq
  %v88 = vshrl.u32 %v87, 7
  %v89 = vsub.s32 1, %v88
  %v90 = vrot.slane %v70, %v89
  %v91 = vlaneseq
  %v92 = vshrl.u32 %v91, 7
  %v93 = vsub.s32 1, %v92
  %v94 = vrot.slane %v74, %v93
  %v95 = vadd.f32 %v55, %v82
  %v96 = vadd.f32 %v56, %v86
  %v97 = vadd.f32 %v57, %v90
  %v98 = vadd.f32 %v58, %v94
  %v99 = vmax.f32 %v95, 0.0
  %v100 = vmax.f32 %v96, 0.0
  %v101 = vmax.f32 %v97, 0.0
  %v102 = vmax.f32 %v98, 0.0
  %v103 = vlaneseq
  %v104 = vshrl.u32 %v103, 7
  %v105 = vsub.s32 2, %v104
  %v106 = vrot.slane %v11, %v105
  %v107 = vlaneseq
  %v108 = vshrl.u32 %v107, 7
  %v109 = vsub.s32 6, %v108
  %v110 = vrot.slane %v11, %v109
  %v111 = vlaneseq
  %v112 = vshrl.u32 %v111, 7
  %v113 = vsub.s32 2, %v112
  %v114 = vrot.slane %v12, %v113
  %v115 = vlaneseq
  %v116 = vshrl.u32 %v115, 7
  %v117 = vsub.s32 6, %v116
  %v118 = vrot.slane %v12, %v117
  %v123 = vlaneseq
  %v124 = vshrl.u32 %v123, 7
  %v125 = vsub.s32 2, %v124
  %v126 = vrot.slane %v106, %v125
  %v127 = vlaneseq
  %v128 = vshrl.u32 %v127, 7
  %v129 = vsub.s32 2, %v128
  %v130 = vrot.slane %v110, %v129
  %v131 = vlaneseq
  %v132 = vshrl.u32 %v131, 7
  %v133 = vsub.s32 2, %v132
  %v134 = vrot.slane %v114, %v133
  %v135 = vlaneseq
  %v136 = vshrl.u32 %v135, 7
  %v137 = vsub.s32 2, %v136
  %v138 = vrot.slane %v118, %v137
  %v139 = vmul.f32 %v99, %v126
  %v140 = vmul.f32 %v100, %v130
  %v141 = vmul.f32 %v101, %v134
  %v142 = vmul.f32 %v102, %v138
  %v143 = vlaneseq
  %v144 = vshrl.u32 %v143, 7
  %v145 = vsub.s32 3, %v144
  %v146 = vrot.slane %v11, %v145
  %v147 = vlaneseq
  %v148 = vshrl.u32 %v147, 7
  %v149 = vsub.s32 7, %v148
  %v150 = vrot.slane %v11, %v149
  %v151 = vlaneseq
  %v152 = vshrl.u32 %v151, 7
  %v153 = vsub.s32 3, %v152
  %v154 = vrot.slane %v12, %v153
  %v155 = vlaneseq
  %v156 = vshrl.u32 %v155, 7
  %v157 = vsub.s32 7, %v156
  %v158 = vrot.slane %v12, %v157
  %v163 = vlaneseq
  %v164 = vshrl.u32 %v163, 7
  %v165 = vsub.s32 3, %v164
  %v166 = vrot.slane %v146, %v165
  %v167 = vlaneseq
  %v168 = vshrl.u32 %v167, 7
  %v169 = vsub.s32 3, %v168
  %v170 = vrot.slane %v150, %v169
  %v171 = vlaneseq
  %v172 = vshrl.u32 %v171, 7
  %v173 = vsub.s32 3, %v172
  %v174 = vrot.slane %v154, %v173
  %v175 = vlaneseq
  %v176 = vshrl.u32 %v175, 7
  %v177 = vsub.s32 3, %v176
  %v178 = vrot.slane %v158, %v177
  %v179 = vadd.f32 %v139, %v166
  %v180 = vadd.f32 %v140, %v170
  %v181 = vadd.f32 %v141, %v174
  %v182 = vadd.f32 %v142, %v178
  %v183 = vmax.f32 %v179, 0.0
  %v184 = vmax.f32 %v180, 0.0
  %v185 = vmax.f32 %v181, 0.0
  %v186 = vmax.f32 %v182, 0.0
  %187 = vst [vmem:[%s2] sm:$0xff] %v183
  %188 = vst [vmem:[%s2 + $0x8] sm:$0xff] %v184
  %189 = vst [vmem:[%s2 + $0x10] sm:$0xff] %v185
  %190 = vst [vmem:[%s2 + $0x18] sm:$0xff] %v186
  // Predicated region
  $region10: #{res_layer.16} parent=0 // pred_check
    _
  $region11: #{res_layer.16} parent=0 // pred_check_branch
    %192 = sbr.rel (0) target = $region13
  $region12: #{res_layer.16} parent=0 // pred_region
    _
  $region13: #{res_layer.16} parent=0 // pred_fallthru
    _
  // Predicated region
  $region14: #{res_layer.16} parent=0 // pred_check
    _
  $region15: #{res_layer.16} parent=0 // pred_check_branch
    %194 = sbr.rel (0) target = $region17
  $region16: #{res_layer.16} parent=0 // pred_region
    _
  $region17: #{res_layer.16} parent=0 // pred_fallthru
    _

// kernel: res_layer.21
$region0: #{res_layer.21}
  #allocation0 [shape = 'u32[]', space=smem, size = 0x4, offset = 0x4, fixed_abs, tag = 'smem constant byte address 0x4 - core index']
  #allocation1 [shape = 'u32[144,128]{1,0:T(1,128)}', space=vmem, size = 0x12000, scoped, tag = 'internal scratch']
  %s0 = inlined_call_operand.vmem [shape: f32[8,512], index: 0, kind: input, shape index: {}]
  %s1 = inlined_call_operand.vmem [shape: f32[8,512], index: 1, kind: input, shape index: {}]
  %s2 = inlined_call_operand.vmem [shape: f32[8,512], index: 2, kind: input, shape index: {}]
  %s3 = inlined_call_operand.vmem [shape: f32[8,512], index: 3, kind: output, shape index: {}]
  %s4 = sld [smem:[#allocation0]]
  $region22: #{res_layer.21} parent=0
    _
  %s6 = ssub.s32 1, %s4
  %s7 = scalar_select 0, %s6, %s4
  // Predicated region
  $region2: #{res_layer.21} parent=0 // pred_check
    _
  $region3: #{res_layer.21} parent=0 // pred_check_branch
    %9 = sbr.rel (0) target = $region5
  $region4: #{res_layer.21} parent=0 // pred_region
    _
  $region5: #{res_layer.21} parent=0 // pred_fallthru
    _
  // Predicated region
  $region6: #{res_layer.21} parent=0 // pred_check
    _
  $region7: #{res_layer.21} parent=0 // pred_check_branch
    %11 = sbr.rel (0) target = $region9
  $region8: #{res_layer.21} parent=0 // pred_region
    _
  $region9: #{res_layer.21} parent=0 // pred_fallthru
    _
  // Predicated region
  $region10: #{res_layer.21} parent=0 // pred_check
    _
  $region11: #{res_layer.21} parent=0 // pred_check_branch
    %13 = sbr.rel (0) target = $region13
  $region12: #{res_layer.21} parent=0 // pred_region
    _
  $region13: #{res_layer.21} parent=0 // pred_fallthru
    _
  %v14 = vld [vmem:[%s2] sm:$0xff]
  %v15 = vld [vmem:[%s2 + $0x8] sm:$0xff]
  %v16 = vld [vmem:[%s2 + $0x10] sm:$0xff]
  %v17 = vld [vmem:[%s2 + $0x18] sm:$0xff]
  %v18 = vld [vmem:[%s0] sm:$0xff]
  %v19 = vld [vmem:[%s0 + $0x8] sm:$0xff]
  %v20 = vld [vmem:[%s0 + $0x10] sm:$0xff]
  %v21 = vld [vmem:[%s0 + $0x18] sm:$0xff]
  %v22 = vlaneseq
  %v23 = vshrl.u32 %v22, 7
  %v24 = vsub.s32 0, %v23
  %v25 = vrot.slane %v14, %v24
  %v26 = vlaneseq
  %v27 = vshrl.u32 %v26, 7
  %v28 = vsub.s32 0, %v27
  %v29 = vrot.slane %v15, %v28
  %v30 = vlaneseq
  %v31 = vshrl.u32 %v30, 7
  %v32 = vsub.s32 0, %v31
  %v33 = vrot.slane %v16, %v32
  %v34 = vlaneseq
  %v35 = vshrl.u32 %v34, 7
  %v36 = vsub.s32 0, %v35
  %v37 = vrot.slane %v17, %v36
  %v38 = vmul.f32 %v18, %v25
  %v39 = vmul.f32 %v19, %v29
  %v40 = vmul.f32 %v20, %v33
  %v41 = vmul.f32 %v21, %v37
  %v42 = vlaneseq
  %v43 = vshrl.u32 %v42, 7
  %v44 = vsub.s32 1, %v43
  %v45 = vrot.slane %v14, %v44
  %v46 = vlaneseq
  %v47 = vshrl.u32 %v46, 7
  %v48 = vsub.s32 1, %v47
  %v49 = vrot.slane %v15, %v48
  %v50 = vlaneseq
  %v51 = vshrl.u32 %v50, 7
  %v52 = vsub.s32 1, %v51
  %v53 = vrot.slane %v16, %v52
  %v54 = vlaneseq
  %v55 = vshrl.u32 %v54, 7
  %v56 = vsub.s32 1, %v55
  %v57 = vrot.slane %v17, %v56
  %v58 = vadd.f32 %v38, %v45
  %v59 = vadd.f32 %v39, %v49
  %v60 = vadd.f32 %v40, %v53
  %v61 = vadd.f32 %v41, %v57
  %v62 = vmax.f32 %v58, 0.0
  %v63 = vmax.f32 %v59, 0.0
  %v64 = vmax.f32 %v60, 0.0
  %v65 = vmax.f32 %v61, 0.0
  %v66 = vlaneseq
  %v67 = vshrl.u32 %v66, 7
  %v68 = vsub.s32 2, %v67
  %v69 = vrot.slane %v14, %v68
  %v70 = vlaneseq
  %v71 = vshrl.u32 %v70, 7
  %v72 = vsub.s32 2, %v71
  %v73 = vrot.slane %v15, %v72
  %v74 = vlaneseq
  %v75 = vshrl.u32 %v74, 7
  %v76 = vsub.s32 2, %v75
  %v77 = vrot.slane %v16, %v76
  %v78 = vlaneseq
  %v79 = vshrl.u32 %v78, 7
  %v80 = vsub.s32 2, %v79
  %v81 = vrot.slane %v17, %v80
  %v82 = vmul.f32 %v62, %v69
  %v83 = vmul.f32 %v63, %v73
  %v84 = vmul.f32 %v64, %v77
  %v85 = vmul.f32 %v65, %v81
  %v86 = vlaneseq
  %v87 = vshrl.u32 %v86, 7
  %v88 = vsub.s32 3, %v87
  %v89 = vrot.slane %v14, %v88
  %v90 = vlaneseq
  %v91 = vshrl.u32 %v90, 7
  %v92 = vsub.s32 3, %v91
  %v93 = vrot.slane %v15, %v92
  %v94 = vlaneseq
  %v95 = vshrl.u32 %v94, 7
  %v96 = vsub.s32 3, %v95
  %v97 = vrot.slane %v16, %v96
  %v98 = vlaneseq
  %v99 = vshrl.u32 %v98, 7
  %v100 = vsub.s32 3, %v99
  %v101 = vrot.slane %v17, %v100
  %v102 = vadd.f32 %v82, %v89
  %v103 = vadd.f32 %v83, %v93
  %v104 = vadd.f32 %v84, %v97
  %v105 = vadd.f32 %v85, %v101
  %v106 = vld [vmem:[%s1] sm:$0xff]
  %v107 = vld [vmem:[%s1 + $0x8] sm:$0xff]
  %v108 = vld [vmem:[%s1 + $0x10] sm:$0xff]
  %v109 = vld [vmem:[%s1 + $0x18] sm:$0xff]
  %v110 = vlaneseq
  %v111 = vshrl.u32 %v110, 7
  %v112 = vsub.s32 4, %v111
  %v113 = vrot.slane %v14, %v112
  %v114 = vlaneseq
  %v115 = vshrl.u32 %v114, 7
  %v116 = vsub.s32 4, %v115
  %v117 = vrot.slane %v15, %v116
  %v118 = vlaneseq
  %v119 = vshrl.u32 %v118, 7
  %v120 = vsub.s32 4, %v119
  %v121 = vrot.slane %v16, %v120
  %v122 = vlaneseq
  %v123 = vshrl.u32 %v122, 7
  %v124 = vsub.s32 4, %v123
  %v125 = vrot.slane %v17, %v124
  %v126 = vmul.f32 %v106, %v113
  %v127 = vmul.f32 %v107, %v117
  %v128 = vmul.f32 %v108, %v121
  %v129 = vmul.f32 %v109, %v125
  %v130 = vlaneseq
  %v131 = vshrl.u32 %v130, 7
  %v132 = vsub.s32 5, %v131
  %v133 = vrot.slane %v14, %v132
  %v134 = vlaneseq
  %v135 = vshrl.u32 %v134, 7
  %v136 = vsub.s32 5, %v135
  %v137 = vrot.slane %v15, %v136
  %v138 = vlaneseq
  %v139 = vshrl.u32 %v138, 7
  %v140 = vsub.s32 5, %v139
  %v141 = vrot.slane %v16, %v140
  %v142 = vlaneseq
  %v143 = vshrl.u32 %v142, 7
  %v144 = vsub.s32 5, %v143
  %v145 = vrot.slane %v17, %v144
  %v146 = vadd.f32 %v126, %v133
  %v147 = vadd.f32 %v127, %v137
  %v148 = vadd.f32 %v128, %v141
  %v149 = vadd.f32 %v129, %v145
  %v150 = vmax.f32 %v146, 0.0
  %v151 = vmax.f32 %v147, 0.0
  %v152 = vmax.f32 %v148, 0.0
  %v153 = vmax.f32 %v149, 0.0
  %v154 = vlaneseq
  %v155 = vshrl.u32 %v154, 7
  %v156 = vsub.s32 6, %v155
  %v157 = vrot.slane %v14, %v156
  %v158 = vlaneseq
  %v159 = vshrl.u32 %v158, 7
  %v160 = vsub.s32 6, %v159
  %v161 = vrot.slane %v15, %v160
  %v162 = vlaneseq
  %v163 = vshrl.u32 %v162, 7
  %v164 = vsub.s32 6, %v163
  %v165 = vrot.slane %v16, %v164
  %v166 = vlaneseq
  %v167 = vshrl.u32 %v166, 7
  %v168 = vsub.s32 6, %v167
  %v169 = vrot.slane %v17, %v168
  %v170 = vmul.f32 %v150, %v157
  %v171 = vmul.f32 %v151, %v161
  %v172 = vmul.f32 %v152, %v165
  %v173 = vmul.f32 %v153, %v169
  %v174 = vlaneseq
  %v175 = vshrl.u32 %v174, 7
  %v176 = vsub.s32 7, %v175
  %v177 = vrot.slane %v14, %v176
  %v178 = vlaneseq
  %v179 = vshrl.u32 %v178, 7
  %v180 = vsub.s32 7, %v179
  %v181 = vrot.slane %v15, %v180
  %v182 = vlaneseq
  %v183 = vshrl.u32 %v182, 7
  %v184 = vsub.s32 7, %v183
  %v185 = vrot.slane %v16, %v184
  %v186 = vlaneseq
  %v187 = vshrl.u32 %v186, 7
  %v188 = vsub.s32 7, %v187
  %v189 = vrot.slane %v17, %v188
  %v190 = vadd.f32 %v170, %v177
  %v191 = vadd.f32 %v171, %v181
  %v192 = vadd.f32 %v172, %v185
  %v193 = vadd.f32 %v173, %v189
  %v194 = vadd.f32 %v190, %v102
  %v195 = vadd.f32 %v191, %v103
  %v196 = vadd.f32 %v192, %v104
  %v197 = vadd.f32 %v193, %v105
  %v198 = vmax.f32 %v194, 0.0
  %v199 = vmax.f32 %v195, 0.0
  %v200 = vmax.f32 %v196, 0.0
  %v201 = vmax.f32 %v197, 0.0
  %202 = vst [vmem:[%s3] sm:$0xff] %v198
  %203 = vst [vmem:[%s3 + $0x8] sm:$0xff] %v199
  %204 = vst [vmem:[%s3 + $0x10] sm:$0xff] %v200
  %205 = vst [vmem:[%s3 + $0x18] sm:$0xff] %v201
  // Predicated region
  $region14: #{res_layer.21} parent=0 // pred_check
    _
  $region15: #{res_layer.21} parent=0 // pred_check_branch
    %207 = sbr.rel (0) target = $region17
  $region16: #{res_layer.21} parent=0 // pred_region
    _
  $region17: #{res_layer.21} parent=0 // pred_fallthru
    _
  // Predicated region
  $region18: #{res_layer.21} parent=0 // pred_check
    _
  $region19: #{res_layer.21} parent=0 // pred_check_branch
    %209 = sbr.rel (0) target = $region21
  $region20: #{res_layer.21} parent=0 // pred_region
    _
  $region21: #{res_layer.21} parent=0 // pred_fallthru
    _

// kernel: res_layer.27
$region0: #{res_layer.27}
  #allocation0 [shape = 'u32[]', space=smem, size = 0x4, offset = 0x4, fixed_abs, tag = 'smem constant byte address 0x4 - core index']
  #allocation1 [shape = 'u32[144,128]{1,0:T(1,128)}', space=vmem, size = 0x12000, scoped, tag = 'internal scratch']
  %s0 = inlined_call_operand.vmem [shape: f32[8,512], index: 0, kind: input, shape index: {}]
  %s1 = inlined_call_operand.vmem [shape: f32[8,512], index: 1, kind: input, shape index: {}]
  %s2 = inlined_call_operand.vmem [shape: f32[4,512], index: 2, kind: input, shape index: {}]
  %s3 = inlined_call_operand.vmem [shape: f32[8,512], index: 3, kind: output, shape index: {}]
  %s4 = sld [smem:[#allocation0]]
  $region22: #{res_layer.27} parent=0
    _
  %s6 = ssub.s32 1, %s4
  %s7 = scalar_select 0, %s6, %s4
  // Predicated region
  $region2: #{res_layer.27} parent=0 // pred_check
    _
  $region3: #{res_layer.27} parent=0 // pred_check_branch
    %9 = sbr.rel (0) target = $region5
  $region4: #{res_layer.27} parent=0 // pred_region
    _
  $region5: #{res_layer.27} parent=0 // pred_fallthru
    _
  // Predicated region
  $region6: #{res_layer.27} parent=0 // pred_check
    _
  $region7: #{res_layer.27} parent=0 // pred_check_branch
    %11 = sbr.rel (0) target = $region9
  $region8: #{res_layer.27} parent=0 // pred_region
    _
  $region9: #{res_layer.27} parent=0 // pred_fallthru
    _
  // Predicated region
  $region10: #{res_layer.27} parent=0 // pred_check
    _
  $region11: #{res_layer.27} parent=0 // pred_check_branch
    %13 = sbr.rel (0) target = $region13
  $region12: #{res_layer.27} parent=0 // pred_region
    _
  $region13: #{res_layer.27} parent=0 // pred_fallthru
    _
  %v14 = vld [vmem:[%s2] sm:$0xff]
  %v15 = vld [vmem:[%s2 + $0x8] sm:$0xff]
  %v16 = vld [vmem:[%s0] sm:$0xff]
  %v17 = vld [vmem:[%s0 + $0x8] sm:$0xff]
  %v18 = vld [vmem:[%s0 + $0x10] sm:$0xff]
  %v19 = vld [vmem:[%s0 + $0x18] sm:$0xff]
  %v22 = vlaneseq
  %v23 = vshrl.u32 %v22, 7
  %v24 = vsub.s32 0, %v23
  %v25 = vrot.slane %v14, %v24
  %v26 = vlaneseq
  %v27 = vshrl.u32 %v26, 7
  %v28 = vsub.s32 4, %v27
  %v29 = vrot.slane %v14, %v28
  %v30 = vlaneseq
  %v31 = vshrl.u32 %v30, 7
  %v32 = vsub.s32 0, %v31
  %v33 = vrot.slane %v15, %v32
  %v34 = vlaneseq
  %v35 = vshrl.u32 %v34, 7
  %v36 = vsub.s32 4, %v35
  %v37 = vrot.slane %v15, %v36
  %v42 = vlaneseq
  %v43 = vshrl.u32 %v42, 7
  %v44 = vsub.s32 0, %v43
  %v45 = vrot.slane %v25, %v44
  %v46 = vlaneseq
  %v47 = vshrl.u32 %v46, 7
  %v48 = vsub.s32 0, %v47
  %v49 = vrot.slane %v29, %v48
  %v50 = vlaneseq
  %v51 = vshrl.u32 %v50, 7
  %v52 = vsub.s32 0, %v51
  %v53 = vrot.slane %v33, %v52
  %v54 = vlaneseq
  %v55 = vshrl.u32 %v54, 7
  %v56 = vsub.s32 0, %v55
  %v57 = vrot.slane %v37, %v56
  %v58 = vmul.f32 %v16, %v45
  %v59 = vmul.f32 %v17, %v49
  %v60 = vmul.f32 %v18, %v53
  %v61 = vmul.f32 %v19, %v57
  %v62 = vlaneseq
  %v63 = vshrl.u32 %v62, 7
  %v64 = vsub.s32 1, %v63
  %v65 = vrot.slane %v14, %v64
  %v66 = vlaneseq
  %v67 = vshrl.u32 %v66, 7
  %v68 = vsub.s32 5, %v67
  %v69 = vrot.slane %v14, %v68
  %v70 = vlaneseq
  %v71 = vshrl.u32 %v70, 7
  %v72 = vsub.s32 1, %v71
  %v73 = vrot.slane %v15, %v72
  %v74 = vlaneseq
  %v75 = vshrl.u32 %v74, 7
  %v76 = vsub.s32 5, %v75
  %v77 = vrot.slane %v15, %v76
  %v82 = vlaneseq
  %v83 = vshrl.u32 %v82, 7
  %v84 = vsub.s32 1, %v83
  %v85 = vrot.slane %v65, %v84
  %v86 = vlaneseq
  %v87 = vshrl.u32 %v86, 7
  %v88 = vsub.s32 1, %v87
  %v89 = vrot.slane %v69, %v88
  %v90 = vlaneseq
  %v91 = vshrl.u32 %v90, 7
  %v92 = vsub.s32 1, %v91
  %v93 = vrot.slane %v73, %v92
  %v94 = vlaneseq
  %v95 = vshrl.u32 %v94, 7
  %v96 = vsub.s32 1, %v95
  %v97 = vrot.slane %v77, %v96
  %v98 = vadd.f32 %v58, %v85
  %v99 = vadd.f32 %v59, %v89
  %v100 = vadd.f32 %v60, %v93
  %v101 = vadd.f32 %v61, %v97
  %v102 = vmax.f32 %v98, 0.0
  %v103 = vmax.f32 %v99, 0.0
  %v104 = vmax.f32 %v100, 0.0
  %v105 = vmax.f32 %v101, 0.0
  %v106 = vlaneseq
  %v107 = vshrl.u32 %v106, 7
  %v108 = vsub.s32 2, %v107
  %v109 = vrot.slane %v14, %v108
  %v110 = vlaneseq
  %v111 = vshrl.u32 %v110, 7
  %v112 = vsub.s32 6, %v111
  %v113 = vrot.slane %v14, %v112
  %v114 = vlaneseq
  %v115 = vshrl.u32 %v114, 7
  %v116 = vsub.s32 2, %v115
  %v117 = vrot.slane %v15, %v116
  %v118 = vlaneseq
  %v119 = vshrl.u32 %v118, 7
  %v120 = vsub.s32 6, %v119
  %v121 = vrot.slane %v15, %v120
  %v126 = vlaneseq
  %v127 = vshrl.u32 %v126, 7
  %v128 = vsub.s32 2, %v127
  %v129 = vrot.slane %v109, %v128
  %v130 = vlaneseq
  %v131 = vshrl.u32 %v130, 7
  %v132 = vsub.s32 2, %v131
  %v133 = vrot.slane %v113, %v132
  %v134 = vlaneseq
  %v135 = vshrl.u32 %v134, 7
  %v136 = vsub.s32 2, %v135
  %v137 = vrot.slane %v117, %v136
  %v138 = vlaneseq
  %v139 = vshrl.u32 %v138, 7
  %v140 = vsub.s32 2, %v139
  %v141 = vrot.slane %v121, %v140
  %v142 = vmul.f32 %v102, %v129
  %v143 = vmul.f32 %v103, %v133
  %v144 = vmul.f32 %v104, %v137
  %v145 = vmul.f32 %v105, %v141
  %v146 = vlaneseq
  %v147 = vshrl.u32 %v146, 7
  %v148 = vsub.s32 3, %v147
  %v149 = vrot.slane %v14, %v148
  %v150 = vlaneseq
  %v151 = vshrl.u32 %v150, 7
  %v152 = vsub.s32 7, %v151
  %v153 = vrot.slane %v14, %v152
  %v154 = vlaneseq
  %v155 = vshrl.u32 %v154, 7
  %v156 = vsub.s32 3, %v155
  %v157 = vrot.slane %v15, %v156
  %v158 = vlaneseq
  %v159 = vshrl.u32 %v158, 7
  %v160 = vsub.s32 7, %v159
  %v161 = vrot.slane %v15, %v160
  %v166 = vlaneseq
  %v167 = vshrl.u32 %v166, 7
  %v168 = vsub.s32 3, %v167
  %v169 = vrot.slane %v149, %v168
  %v170 = vlaneseq
  %v171 = vshrl.u32 %v170, 7
  %v172 = vsub.s32 3, %v171
  %v173 = vrot.slane %v153, %v172
  %v174 = vlaneseq
  %v175 = vshrl.u32 %v174, 7
  %v176 = vsub.s32 3, %v175
  %v177 = vrot.slane %v157, %v176
  %v178 = vlaneseq
  %v179 = vshrl.u32 %v178, 7
  %v180 = vsub.s32 3, %v179
  %v181 = vrot.slane %v161, %v180
  %v182 = vadd.f32 %v142, %v169
  %v183 = vadd.f32 %v143, %v173
  %v184 = vadd.f32 %v144, %v177
  %v185 = vadd.f32 %v145, %v181
  %v186 = vld [vmem:[%s1] sm:$0xff]
  %v187 = vld [vmem:[%s1 + $0x8] sm:$0xff]
  %v188 = vld [vmem:[%s1 + $0x10] sm:$0xff]
  %v189 = vld [vmem:[%s1 + $0x18] sm:$0xff]
  %v190 = vadd.f32 %v186, %v182
  %v191 = vadd.f32 %v187, %v183
  %v192 = vadd.f32 %v188, %v184
  %v193 = vadd.f32 %v189, %v185
  %v194 = vmax.f32 %v190, 0.0
  %v195 = vmax.f32 %v191, 0.0
  %v196 = vmax.f32 %v192, 0.0
  %v197 = vmax.f32 %v193, 0.0
  %198 = vst [vmem:[%s3] sm:$0xff] %v194
  %199 = vst [vmem:[%s3 + $0x8] sm:$0xff] %v195
  %200 = vst [vmem:[%s3 + $0x10] sm:$0xff] %v196
  %201 = vst [vmem:[%s3 + $0x18] sm:$0xff] %v197
  // Predicated region
  $region14: #{res_layer.27} parent=0 // pred_check
    _
  $region15: #{res_layer.27} parent=0 // pred_check_branch
    %203 = sbr.rel (0) target = $region17
  $region16: #{res_layer.27} parent=0 // pred_region
    _
  $region17: #{res_layer.27} parent=0 // pred_fallthru
    _
  // Predicated region
  $region18: #{res_layer.27} parent=0 // pred_check
    _
  $region19: #{res_layer.27} parent=0 // pred_check_branch
    %205 = sbr.rel (0) target = $region21
  $region20: #{res_layer.27} parent=0 // pred_region
    _
  $region21: #{res_layer.27} parent=0 // pred_fallthru
    _

// kernel: res_layer.17
$region0: #{res_layer.17}
  #allocation0 [shape = 'u32[]', space=smem, size = 0x4, offset = 0x4, fixed_abs, tag = 'smem constant byte address 0x4 - core index']
  #allocation1 [shape = 'u32[144,128]{1,0:T(1,128)}', space=vmem, size = 0x12000, scoped, tag = 'internal scratch']
  %s0 = inlined_call_operand.vmem [shape: f32[2,6,10,10,8], index: 0, kind: input, shape index: {}]
  %s1 = inlined_call_operand.vmem [shape: f32[216,8], index: 1, kind: input, shape index: {}]
  %s2 = inlined_call_operand.vmem [shape: f32[2,4,8,8,8], index: 2, kind: output, shape index: {0}]
  %s3 = inlined_call_operand.vmem [shape: f32[2,2,2,8], index: 3, kind: output, shape index: {1}]
  %4 = xla_tuple %s2, %s3
  %s5 = sld [smem:[#allocation0]]
  $region49: #{res_layer.17} parent=0
    _
  %s7 = ssub.s32 1, %s5
  %s8 = scalar_select 0, %s7, %s5
  loop: start=0, step=1, limit=6
  $region2: #{res_layer.17} parent=0 // loop_pre_header
    _
  $region3: #{res_layer.17} parent=0 // loop_header
    %s10 = sphi 0, %s14
    %p11 = scmp.ge.s32.totalorder %s10, 6
    %s17 = sphi 0, %s29
    %s18 = sphi 0, %s25
    %s19 = sphi 0, %s17
    %s20 = sphi 0, %s18
    %s21 = sphi 0, %s19
    %s22 = sphi 0, %s20
    %s32 = sphi 0, %s34
    %s35 = sphi 0, %s32
    %s36 = sphi 0, %s35
    %s52 = sphi 0, %s36
    %s56 = sphi 0, %s56
    %s58 = sphi 0, %s56
    %s59 = sphi 0, %s58
    %s73 = sphi 0, %s59
    %s81 = sphi 0, %s83
    %s84 = sphi 0, %s81
    %s85 = sphi 0, %s84
    %s101 = sphi 0, %s85
    %s109 = sphi 0, %s111
    %s112 = sphi 0, %s109
    %s113 = sphi 0, %s112
    %s129 = sphi 0, %s113
  $region4: #{res_layer.17} parent=0 // loop_header_branch
    %13 = sbr.rel (%p11) target = $region8
  $region5: #{res_layer.17} parent=0 // loop_body
    %s15 = ssub.s32 %s10, 1
    %s16 = ssub.s32 %s10, 2
    %s23 = sadd.s32 1, %s18
    %p24 = scmp.ge.s32.totalorder %s23, 2
    %s25 = scalar_select %p24, 0, %s23
    %s26 = sadd.s32 1, %s17
    %s27 = scalar_select %p24, %s26, %s17
    %p28 = scmp.ge.s32.totalorder %s27, 2
    %s29 = scalar_select %p28, 0, %s27
    %s30 = ssub.s32 %s17, %s29
    %p31 = scmp.eq.s32.totalorder %s30, 0
    %s33 = sadd.s32 %s32, 1
    %s34 = scalar_select %p31, %s32, %s33
    %p37 = pneg %p31
    %p38 = scmp.eq.s32.totalorder %s10, 3
    %p39 = por %p37, %p38
    %p40 = scmp.ne.s32.totalorder %s32, %s35
    %p41 = scmp.eq.s32.totalorder %s10, 0
    %p42 = por %p40, %p41
    %p43 = scmp.ne.s32.totalorder %s32, %s35
    %p44 = scmp.eq.s32.totalorder %s15, 3
    %p45 = por %p43, %p44
    %p46 = scmp.ne.s32.totalorder %s35, %s36
    %p47 = scmp.eq.s32.totalorder %s15, 0
    %p48 = por %p46, %p47
    %p49 = scmp.ne.s32.totalorder %s35, %s36
    %p50 = scmp.eq.s32.totalorder %s16, 3
    %p51 = por %p49, %p50
    %p53 = scmp.ne.s32.totalorder %s36, %s52
    %p54 = scmp.eq.s32.totalorder %s16, 0
    %p55 = por %p53, %p54
    %s57 = sadd.s32 %s56, 1
    %p60 = scmp.eq.s32.totalorder %s10, 3
    %p61 = scmp.ne.s32.totalorder %s56, %s58
    %p62 = scmp.eq.s32.totalorder %s10, 0
    %p63 = por %p61, %p62
    %p64 = scmp.ne.s32.totalorder %s56, %s58
    %p65 = scmp.eq.s32.totalorder %s15, 3
    %p66 = por %p64, %p65
    %p67 = scmp.ne.s32.totalorder %s58, %s59
    %p68 = scmp.eq.s32.totalorder %s15, 0
    %p69 = por %p67, %p68
    %p70 = scmp.ne.s32.totalorder %s58, %s59
    %p71 = scmp.eq.s32.totalorder %s16, 3
    %p72 = por %p70, %p71
    %p74 = scmp.ne.s32.totalorder %s59, %s73
    %p75 = scmp.eq.s32.totalorder %s16, 0
    %p76 = por %p74, %p75
    %s77 = ssub.s32 %s17, %s29
    %s78 = ssub.s32 %s18, %s25
    %s79 = sor.u32 %s77, %s78
    %p80 = scmp.eq.s32.totalorder %s79, 0
    %s82 = sadd.s32 %s81, 1
    %s83 = scalar_select %p80, %s81, %s82
    %p86 = pneg %p80
    %p87 = scmp.eq.s32.totalorder %s10, 3
    %p88 = por %p86, %p87
    %p89 = scmp.ne.s32.totalorder %s81, %s84
    %p90 = scmp.eq.s32.totalorder %s10, 0
    %p91 = por %p89, %p90
    %p92 = scmp.ne.s32.totalorder %s81, %s84
    %p93 = scmp.eq.s32.totalorder %s15, 3
    %p94 = por %p92, %p93
    %p95 = scmp.ne.s32.totalorder %s84, %s85
    %p96 = scmp.eq.s32.totalorder %s15, 0
    %p97 = por %p95, %p96
    %p98 = scmp.ne.s32.totalorder %s84, %s85
    %p99 = scmp.eq.s32.totalorder %s16, 3
    %p100 = por %p98, %p99
    %p102 = scmp.ne.s32.totalorder %s85, %s101
    %p103 = scmp.eq.s32.totalorder %s16, 0
    %p104 = por %p102, %p103
    %s105 = ssub.s32 %s17, %s29
    %s106 = ssub.s32 %s18, %s25
    %s107 = sor.u32 %s105, %s106
    %p108 = scmp.eq.s32.totalorder %s107, 0
    %s110 = sadd.s32 %s109, 1
    %s111 = scalar_select %p108, %s109, %s110
    %p114 = pneg %p108
    %p115 = scmp.eq.s32.totalorder %s10, 3
    %p116 = por %p114, %p115
    %p117 = scmp.ne.s32.totalorder %s109, %s112
    %p118 = scmp.eq.s32.totalorder %s10, 0
    %p119 = por %p117, %p118
    %p120 = scmp.ne.s32.totalorder %s109, %s112
    %p121 = scmp.eq.s32.totalorder %s15, 3
    %p122 = por %p120, %p121
    %p123 = scmp.ne.s32.totalorder %s112, %s113
    %p124 = scmp.eq.s32.totalorder %s15, 0
    %p125 = por %p123, %p124
    %p126 = scmp.ne.s32.totalorder %s112, %s113
    %p127 = scmp.eq.s32.totalorder %s16, 3
    %p128 = por %p126, %p127
    %p130 = scmp.ne.s32.totalorder %s113, %s129
    %p131 = scmp.eq.s32.totalorder %s16, 0
    %p132 = por %p130, %p131
    %p133 = scmp.le.s32.totalorder 1, %s10
    %p134 = scmp.lt.s32.totalorder %s10, 5
    %p135 = pnand %p133, %p134
    %p136 = pneg %p135
    // Predicated region
    $region9: #{res_layer.17} parent=5 // pred_check
      _
    $region10: #{res_layer.17} parent=5 // pred_check_branch
      %138 = sbr.rel (%p135) target = $region12
    $region11: #{res_layer.17} parent=5 // pred_region
      %s139 = ssub.s32 %s10, 1
      // Predicated region
      $region13: #{res_layer.17} parent=11 // pred_check
        %p140 = pneg %p69
      $region14: #{res_layer.17} parent=11 // pred_check_branch
        %142 = sbr.rel (%p140) target = $region16
      $region15: #{res_layer.17} parent=11 // pred_region
        _
      $region16: #{res_layer.17} parent=11 // pred_fallthru
        _
    $region12: #{res_layer.17} parent=5 // pred_fallthru
      _
    %p143 = scmp.lt.s32.totalorder %s10, 4
    // Predicated region
    $region17: #{res_layer.17} parent=5 // pred_check
      %p144 = pneg %p143
    $region18: #{res_layer.17} parent=5 // pred_check_branch
      %146 = sbr.rel (%p144) target = $region20
    $region19: #{res_layer.17} parent=5 // pred_region
      // Predicated region
      $region21: #{res_layer.17} parent=19 // pred_check
        %p147 = pneg %p42
      $region22: #{res_layer.17} parent=19 // pred_check_branch
        %149 = sbr.rel (%p147) target = $region24
      $region23: #{res_layer.17} parent=19 // pred_region
        %p150 = scmp.lt.s32.totalorder %s17, 1
        %s151 = scalar_select %p150, %s17, 1
        %s152 = smul.addr %s151, 120
        %s153 = smul.addr %s152, 8
        %s154 = scalar_lea.vmem %s0, %s153
      $region24: #{res_layer.17} parent=19 // pred_fallthru
        _
    $region20: #{res_layer.17} parent=5 // pred_fallthru
      _
    %p155 = scmp.le.s32.totalorder 1, %s10
    %p156 = scmp.lt.s32.totalorder %s10, 5
    %p157 = pnand %p155, %p156
    %p158 = pneg %p157
    // Predicated region
    $region25: #{res_layer.17} parent=5 // pred_check
      _
    $region26: #{res_layer.17} parent=5 // pred_check_branch
      %160 = sbr.rel (%p157) target = $region28
    $region27: #{res_layer.17} parent=5 // pred_region
      %s161 = ssub.s32 %s10, 1
      %p162 = scmp.lt.s32.totalorder %s19, 1
      %s163 = scalar_select %p162, %s19, 1
      %s164 = smul.addr %s163, 120
      %s165 = smul.addr %s164, 8
      %s166 = scalar_lea.vmem %s0, %s165
      %p167 = pneg %p48
      %p168 = pneg %p45
      %p169 = pneg %p69
      %p170 = pneg %p66
      %p171 = pneg %p97
      %p172 = pneg %p94
      %s173 = smul.u32 2, %s20
      %p174 = scmp.lt.s32.totalorder %s19, 1
      %s175 = scalar_select %p174, %s19, 1
      %p176 = scmp.lt.s32.totalorder %s173, 3
      %s177 = scalar_select %p176, %s173, 3
      %s178 = smul.addr %s177, 8
      %s179 = smul.addr %s175, 32
      %s180 = sadd.s32 %s178, %s179
      %s181 = smul.addr %s180, 8
      %s182 = scalar_lea.vmem %s2, %s181
      %p183 = pneg %p125
      %p184 = pneg %p122
      %p185 = scmp.lt.s32.totalorder %s19, 1
      %s186 = scalar_select %p185, %s19, 1
      %p187 = scmp.lt.s32.totalorder %s20, 1
      %s188 = scalar_select %p187, %s20, 1
      %s189 = smul.addr %s186, 2
      %s190 = sadd.s32 %s188, %s189
      %s191 = smul.addr %s190, 2
      %s192 = scalar_lea.vmem %s3, %s191
      %p193 = scmp.lt.s32.totalorder %s19, 1
      %s194 = scalar_select %p193, %s19, 1
      %s195 = smul.addr %s194, 120
      %s196 = smul.addr %s195, 8
      %s197 = scalar_lea.vmem %s0, %s196
      %s198 = smul.u32 2, %s20
      %p199 = scmp.lt.s32.totalorder %s19, 1
      %s200 = scalar_select %p199, %s19, 1
      %p201 = scmp.lt.s32.totalorder %s198, 3
      %s202 = scalar_select %p201, %s198, 3
      %s203 = smul.addr %s202, 8
      %s204 = smul.addr %s200, 32
      %s205 = sadd.s32 %s203, %s204
      %s206 = smul.addr %s205, 8
      %s207 = scalar_lea.vmem %s2, %s206
      %s208 = smul.u32 2, %s20
      %p209 = scmp.lt.s32.totalorder %s19, 1
      %s210 = scalar_select %p209, %s19, 1
      %p211 = scmp.lt.s32.totalorder %s20, 1
      %s212 = scalar_select %p211, %s20, 1
      %s213 = smul.addr %s210, 2
      %s214 = sadd.s32 %s212, %s213
      %s215 = smul.addr %s214, 2
      %s216 = scalar_lea.vmem %s3, %s215
      %s217 = smul.u32 %s20, 2
      %s218 = smul.u32 %s217, 160
      %s219 = scalar_lea.vmem %s197, %s218
      %v220 = vld [vmem:[%s219] sm:$0xff]
      %v221 = vld [vmem:[%s219 + $0x10] sm:$0xff]
      %v222 = vld [vmem:[%s219 + $0x20] sm:$0xff]
      %v223 = vld [vmem:[%s219 + $0x30] sm:$0xff]
      %v224 = vld [vmem:[%s219 + $0x40] sm:$0xff]
      %v225 = vld [vmem:[%s219 + $0x50] sm:$0xff]
      %v226 = vld [vmem:[%s219 + $0x60] sm:$0xff]
      %v227 = vld [vmem:[%s219 + $0x70] sm:$0xff]
      %v228 = vld [vmem:[%s219 + $0xa0] sm:$0xff]
      %v229 = vld [vmem:[%s219 + $0xb0] sm:$0xff]
      %v230 = vld [vmem:[%s219 + $0xc0] sm:$0xff]
      %v231 = vld [vmem:[%s219 + $0xd0] sm:$0xff]
      %v232 = vld [vmem:[%s219 + $0xe0] sm:$0xff]
      %v233 = vld [vmem:[%s219 + $0xf0] sm:$0xff]
      %v234 = vld [vmem:[%s219 + $0x100] sm:$0xff]
      %v235 = vld [vmem:[%s219 + $0x110] sm:$0xff]
      %v236 = vld [vmem:[%s219 + $0x1] sm:$0xff]
      %v237 = vld [vmem:[%s219 + $0x11] sm:$0xff]
      %v238 = vld [vmem:[%s219 + $0x21] sm:$0xff]
      %v239 = vld [vmem:[%s219 + $0x31] sm:$0xff]
      %v240 = vld [vmem:[%s219 + $0x41] sm:$0xff]
      %v241 = vld [vmem:[%s219 + $0x51] sm:$0xff]
      %v242 = vld [vmem:[%s219 + $0x61] sm:$0xff]
      %v243 = vld [vmem:[%s219 + $0x71] sm:$0xff]
      %v244 = vld [vmem:[%s219 + $0xa1] sm:$0xff]
      %v245 = vld [vmem:[%s219 + $0xb1] sm:$0xff]
      %v246 = vld [vmem:[%s219 + $0xc1] sm:$0xff]
      %v247 = vld [vmem:[%s219 + $0xd1] sm:$0xff]
      %v248 = vld [vmem:[%s219 + $0xe1] sm:$0xff]
      %v249 = vld [vmem:[%s219 + $0xf1] sm:$0xff]
      %v250 = vld [vmem:[%s219 + $0x101] sm:$0xff]
      %v251 = vld [vmem:[%s219 + $0x111] sm:$0xff]
      %v252 = vld [vmem:[%s219 + $0x2] sm:$0xff]
      %v253 = vld [vmem:[%s219 + $0x12] sm:$0xff]
      %v254 = vld [vmem:[%s219 + $0x22] sm:$0xff]
      %v255 = vld [vmem:[%s219 + $0x32] sm:$0xff]
      %v256 = vld [vmem:[%s219 + $0x42] sm:$0xff]
      %v257 = vld [vmem:[%s219 + $0x52] sm:$0xff]
      %v258 = vld [vmem:[%s219 + $0x62] sm:$0xff]
      %v259 = vld [vmem:[%s219 + $0x72] sm:$0xff]
      %v260 = vld [vmem:[%s219 + $0xa2] sm:$0xff]
      %v261 = vld [vmem:[%s219 + $0xb2] sm:$0xff]
      %v262 = vld [vmem:[%s219 + $0xc2] sm:$0xff]
      %v263 = vld [vmem:[%s219 + $0xd2] sm:$0xff]
      %v264 = vld [vmem:[%s219 + $0xe2] sm:$0xff]
      %v265 = vld [vmem:[%s219 + $0xf2] sm:$0xff]
      %v266 = vld [vmem:[%s219 + $0x102] sm:$0xff]
      %v267 = vld [vmem:[%s219 + $0x112] sm:$0xff]
      %s268 = sadd.s32 16, %s218
      %s269 = scalar_lea.vmem %s197, %s268
      %v270 = vld [vmem:[%s269] sm:$0xff]
      %v271 = vld [vmem:[%s269 + $0x10] sm:$0xff]
      %v272 = vld [vmem:[%s269 + $0x20] sm:$0xff]
      %v273 = vld [vmem:[%s269 + $0x30] sm:$0xff]
      %v274 = vld [vmem:[%s269 + $0x40] sm:$0xff]
      %v275 = vld [vmem:[%s269 + $0x50] sm:$0xff]
      %v276 = vld [vmem:[%s269 + $0x60] sm:$0xff]
      %v277 = vld [vmem:[%s269 + $0x70] sm:$0xff]
      %v278 = vld [vmem:[%s269 + $0xa0] sm:$0xff]
      %v279 = vld [vmem:[%s269 + $0xb0] sm:$0xff]
      %v280 = vld [vmem:[%s269 + $0xc0] sm:$0xff]
      %v281 = vld [vmem:[%s269 + $0xd0] sm:$0xff]
      %v282 = vld [vmem:[%s269 + $0xe0] sm:$0xff]
      %v283 = vld [vmem:[%s269 + $0xf0] sm:$0xff]
      %v284 = vld [vmem:[%s269 + $0x100] sm:$0xff]
      %v285 = vld [vmem:[%s269 + $0x110] sm:$0xff]
      %v286 = vld [vmem:[%s269 + $0x1] sm:$0xff]
      %v287 = vld [vmem:[%s269 + $0x11] sm:$0xff]
      %v288 = vld [vmem:[%s269 + $0x21] sm:$0xff]
      %v289 = vld [vmem:[%s269 + $0x31] sm:$0xff]
      %v290 = vld [vmem:[%s269 + $0x41] sm:$0xff]
      %v291 = vld [vmem:[%s269 + $0x51] sm:$0xff]
      %v292 = vld [vmem:[%s269 + $0x61] sm:$0xff]
      %v293 = vld [vmem:[%s269 + $0x71] sm:$0xff]
      %v294 = vld [vmem:[%s269 + $0xa1] sm:$0xff]
      %v295 = vld [vmem:[%s269 + $0xb1] sm:$0xff]
      %v296 = vld [vmem:[%s269 + $0xc1] sm:$0xff]
      %v297 = vld [vmem:[%s269 + $0xd1] sm:$0xff]
      %v298 = vld [vmem:[%s269 + $0xe1] sm:$0xff]
      %v299 = vld [vmem:[%s269 + $0xf1] sm:$0xff]
      %v300 = vld [vmem:[%s269 + $0x101] sm:$0xff]
      %v301 = vld [vmem:[%s269 + $0x111] sm:$0xff]
      %v302 = vld [vmem:[%s269 + $0x2] sm:$0xff]
      %v303 = vld [vmem:[%s269 + $0x12] sm:$0xff]
      %v304 = vld [vmem:[%s269 + $0x22] sm:$0xff]
      %v305 = vld [vmem:[%s269 + $0x32] sm:$0xff]
      %v306 = vld [vmem:[%s269 + $0x42] sm:$0xff]
      %v307 = vld [vmem:[%s269 + $0x52] sm:$0xff]
      %v308 = vld [vmem:[%s269 + $0x62] sm:$0xff]
      %v309 = vld [vmem:[%s269 + $0x72] sm:$0xff]
      %v310 = vld [vmem:[%s269 + $0xa2] sm:$0xff]
      %v311 = vld [vmem:[%s269 + $0xb2] sm:$0xff]
      %v312 = vld [vmem:[%s269 + $0xc2] sm:$0xff]
      %v313 = vld [vmem:[%s269 + $0xd2] sm:$0xff]
      %v314 = vld [vmem:[%s269 + $0xe2] sm:$0xff]
      %v315 = vld [vmem:[%s269 + $0xf2] sm:$0xff]
      %v316 = vld [vmem:[%s269 + $0x102] sm:$0xff]
      %v317 = vld [vmem:[%s269 + $0x112] sm:$0xff]
      %s318 = sadd.s32 32, %s218
      %s319 = scalar_lea.vmem %s197, %s318
      %v320 = vld [vmem:[%s319] sm:$0xff]
      %v321 = vld [vmem:[%s319 + $0x10] sm:$0xff]
      %v322 = vld [vmem:[%s319 + $0x20] sm:$0xff]
      %v323 = vld [vmem:[%s319 + $0x30] sm:$0xff]
      %v324 = vld [vmem:[%s319 + $0x40] sm:$0xff]
      %v325 = vld [vmem:[%s319 + $0x50] sm:$0xff]
      %v326 = vld [vmem:[%s319 + $0x60] sm:$0xff]
      %v327 = vld [vmem:[%s319 + $0x70] sm:$0xff]
      %v328 = vld [vmem:[%s319 + $0xa0] sm:$0xff]
      %v329 = vld [vmem:[%s319 + $0xb0] sm:$0xff]
      %v330 = vld [vmem:[%s319 + $0xc0] sm:$0xff]
      %v331 = vld [vmem:[%s319 + $0xd0] sm:$0xff]
      %v332 = vld [vmem:[%s319 + $0xe0] sm:$0xff]
      %v333 = vld [vmem:[%s319 + $0xf0] sm:$0xff]
      %v334 = vld [vmem:[%s319 + $0x100] sm:$0xff]
      %v335 = vld [vmem:[%s319 + $0x110] sm:$0xff]
      %v336 = vld [vmem:[%s319 + $0x1] sm:$0xff]
      %v337 = vld [vmem:[%s319 + $0x11] sm:$0xff]
      %v338 = vld [vmem:[%s319 + $0x21] sm:$0xff]
      %v339 = vld [vmem:[%s319 + $0x31] sm:$0xff]
      %v340 = vld [vmem:[%s319 + $0x41] sm:$0xff]
      %v341 = vld [vmem:[%s319 + $0x51] sm:$0xff]
      %v342 = vld [vmem:[%s319 + $0x61] sm:$0xff]
      %v343 = vld [vmem:[%s319 + $0x71] sm:$0xff]
      %v344 = vld [vmem:[%s319 + $0xa1] sm:$0xff]
      %v345 = vld [vmem:[%s319 + $0xb1] sm:$0xff]
      %v346 = vld [vmem:[%s319 + $0xc1] sm:$0xff]
      %v347 = vld [vmem:[%s319 + $0xd1] sm:$0xff]
      %v348 = vld [vmem:[%s319 + $0xe1] sm:$0xff]
      %v349 = vld [vmem:[%s319 + $0xf1] sm:$0xff]
      %v350 = vld [vmem:[%s319 + $0x101] sm:$0xff]
      %v351 = vld [vmem:[%s319 + $0x111] sm:$0xff]
      %v352 = vld [vmem:[%s319 + $0x2] sm:$0xff]
      %v353 = vld [vmem:[%s319 + $0x12] sm:$0xff]
      %v354 = vld [vmem:[%s319 + $0x22] sm:$0xff]
      %v355 = vld [vmem:[%s319 + $0x32] sm:$0xff]
      %v356 = vld [vmem:[%s319 + $0x42] sm:$0xff]
      %v357 = vld [vmem:[%s319 + $0x52] sm:$0xff]
      %v358 = vld [vmem:[%s319 + $0x62] sm:$0xff]
      %v359 = vld [vmem:[%s319 + $0x72] sm:$0xff]
      %v360 = vld [vmem:[%s319 + $0xa2] sm:$0xff]
      %v361 = vld [vmem:[%s319 + $0xb2] sm:$0xff]
      %v362 = vld [vmem:[%s319 + $0xc2] sm:$0xff]
      %v363 = vld [vmem:[%s319 + $0xd2] sm:$0xff]
      %v364 = vld [vmem:[%s319 + $0xe2] sm:$0xff]
      %v365 = vld [vmem:[%s319 + $0xf2] sm:$0xff]
      %v366 = vld [vmem:[%s319 + $0x102] sm:$0xff]
      %v367 = vld [vmem:[%s319 + $0x112] sm:$0xff]
      %s368 = sadd.s32 %s217, 1
      %s369 = smul.u32 %s368, 160
      %s370 = scalar_lea.vmem %s197, %s369
      %v371 = vld [vmem:[%s370] sm:$0xff]
      %v372 = vld [vmem:[%s370 + $0x10] sm:$0xff]
      %v373 = vld [vmem:[%s370 + $0x20] sm:$0xff]
      %v374 = vld [vmem:[%s370 + $0x30] sm:$0xff]
      %v375 = vld [vmem:[%s370 + $0x40] sm:$0xff]
      %v376 = vld [vmem:[%s370 + $0x50] sm:$0xff]
      %v377 = vld [vmem:[%s370 + $0x60] sm:$0xff]
      %v378 = vld [vmem:[%s370 + $0x70] sm:$0xff]
      %v379 = vld [vmem:[%s370 + $0xa0] sm:$0xff]
      %v380 = vld [vmem:[%s370 + $0xb0] sm:$0xff]
      %v381 = vld [vmem:[%s370 + $0xc0] sm:$0xff]
      %v382 = vld [vmem:[%s370 + $0xd0] sm:$0xff]
      %v383 = vld [vmem:[%s370 + $0xe0] sm:$0xff]
      %v384 = vld [vmem:[%s370 + $0xf0] sm:$0xff]
      %v385 = vld [vmem:[%s370 + $0x100] sm:$0xff]
      %v386 = vld [vmem:[%s370 + $0x110] sm:$0xff]
      %v387 = vld [vmem:[%s370 + $0x1] sm:$0xff]
      %v388 = vld [vmem:[%s370 + $0x11] sm:$0xff]
      %v389 = vld [vmem:[%s370 + $0x21] sm:$0xff]
      %v390 = vld [vmem:[%s370 + $0x31] sm:$0xff]
      %v391 = vld [vmem:[%s370 + $0x41] sm:$0xff]
      %v392 = vld [vmem:[%s370 + $0x51] sm:$0xff]
      %v393 = vld [vmem:[%s370 + $0x61] sm:$0xff]
      %v394 = vld [vmem:[%s370 + $0x71] sm:$0xff]
      %v395 = vld [vmem:[%s370 + $0xa1] sm:$0xff]
      %v396 = vld [vmem:[%s370 + $0xb1] sm:$0xff]
      %v397 = vld [vmem:[%s370 + $0xc1] sm:$0xff]
      %v398 = vld [vmem:[%s370 + $0xd1] sm:$0xff]
      %v399 = vld [vmem:[%s370 + $0xe1] sm:$0xff]
      %v400 = vld [vmem:[%s370 + $0xf1] sm:$0xff]
      %v401 = vld [vmem:[%s370 + $0x101] sm:$0xff]
      %v402 = vld [vmem:[%s370 + $0x111] sm:$0xff]
      %v403 = vld [vmem:[%s370 + $0x2] sm:$0xff]
      %v404 = vld [vmem:[%s370 + $0x12] sm:$0xff]
      %v405 = vld [vmem:[%s370 + $0x22] sm:$0xff]
      %v406 = vld [vmem:[%s370 + $0x32] sm:$0xff]
      %v407 = vld [vmem:[%s370 + $0x42] sm:$0xff]
      %v408 = vld [vmem:[%s370 + $0x52] sm:$0xff]
      %v409 = vld [vmem:[%s370 + $0x62] sm:$0xff]
      %v410 = vld [vmem:[%s370 + $0x72] sm:$0xff]
      %v411 = vld [vmem:[%s370 + $0xa2] sm:$0xff]
      %v412 = vld [vmem:[%s370 + $0xb2] sm:$0xff]
      %v413 = vld [vmem:[%s370 + $0xc2] sm:$0xff]
      %v414 = vld [vmem:[%s370 + $0xd2] sm:$0xff]
      %v415 = vld [vmem:[%s370 + $0xe2] sm:$0xff]
      %v416 = vld [vmem:[%s370 + $0xf2] sm:$0xff]
      %v417 = vld [vmem:[%s370 + $0x102] sm:$0xff]
      %v418 = vld [vmem:[%s370 + $0x112] sm:$0xff]
      %s419 = sadd.s32 16, %s369
      %s420 = scalar_lea.vmem %s197, %s419
      %v421 = vld [vmem:[%s420] sm:$0xff]
      %v422 = vld [vmem:[%s420 + $0x10] sm:$0xff]
      %v423 = vld [vmem:[%s420 + $0x20] sm:$0xff]
      %v424 = vld [vmem:[%s420 + $0x30] sm:$0xff]
      %v425 = vld [vmem:[%s420 + $0x40] sm:$0xff]
      %v426 = vld [vmem:[%s420 + $0x50] sm:$0xff]
      %v427 = vld [vmem:[%s420 + $0x60] sm:$0xff]
      %v428 = vld [vmem:[%s420 + $0x70] sm:$0xff]
      %v429 = vld [vmem:[%s420 + $0xa0] sm:$0xff]
      %v430 = vld [vmem:[%s420 + $0xb0] sm:$0xff]
      %v431 = vld [vmem:[%s420 + $0xc0] sm:$0xff]
      %v432 = vld [vmem:[%s420 + $0xd0] sm:$0xff]
      %v433 = vld [vmem:[%s420 + $0xe0] sm:$0xff]
      %v434 = vld [vmem:[%s420 + $0xf0] sm:$0xff]
      %v435 = vld [vmem:[%s420 + $0x100] sm:$0xff]
      %v436 = vld [vmem:[%s420 + $0x110] sm:$0xff]
      %v437 = vld [vmem:[%s420 + $0x1] sm:$0xff]
      %v438 = vld [vmem:[%s420 + $0x11] sm:$0xff]
      %v439 = vld [vmem:[%s420 + $0x21] sm:$0xff]
      %v440 = vld [vmem:[%s420 + $0x31] sm:$0xff]
      %v441 = vld [vmem:[%s420 + $0x41] sm:$0xff]
      %v442 = vld [vmem:[%s420 + $0x51] sm:$0xff]
      %v443 = vld [vmem:[%s420 + $0x61] sm:$0xff]
      %v444 = vld [vmem:[%s420 + $0x71] sm:$0xff]
      %v445 = vld [vmem:[%s420 + $0xa1] sm:$0xff]
      %v446 = vld [vmem:[%s420 + $0xb1] sm:$0xff]
      %v447 = vld [vmem:[%s420 + $0xc1] sm:$0xff]
      %v448 = vld [vmem:[%s420 + $0xd1] sm:$0xff]
      %v449 = vld [vmem:[%s420 + $0xe1] sm:$0xff]
      %v450 = vld [vmem:[%s420 + $0xf1] sm:$0xff]
      %v451 = vld [vmem:[%s420 + $0x101] sm:$0xff]
      %v452 = vld [vmem:[%s420 + $0x111] sm:$0xff]
      %v453 = vld [vmem:[%s420 + $0x2] sm:$0xff]
      %v454 = vld [vmem:[%s420 + $0x12] sm:$0xff]
      %v455 = vld [vmem:[%s420 + $0x22] sm:$0xff]
      %v456 = vld [vmem:[%s420 + $0x32] sm:$0xff]
      %v457 = vld [vmem:[%s420 + $0x42] sm:$0xff]
      %v458 = vld [vmem:[%s420 + $0x52] sm:$0xff]
      %v459 = vld [vmem:[%s420 + $0x62] sm:$0xff]
      %v460 = vld [vmem:[%s420 + $0x72] sm:$0xff]
      %v461 = vld [vmem:[%s420 + $0xa2] sm:$0xff]
      %v462 = vld [vmem:[%s420 + $0xb2] sm:$0xff]
      %v463 = vld [vmem:[%s420 + $0xc2] sm:$0xff]
      %v464 = vld [vmem:[%s420 + $0xd2] sm:$0xff]
      %v465 = vld [vmem:[%s420 + $0xe2] sm:$0xff]
      %v466 = vld [vmem:[%s420 + $0xf2] sm:$0xff]
      %v467 = vld [vmem:[%s420 + $0x102] sm:$0xff]
      %v468 = vld [vmem:[%s420 + $0x112] sm:$0xff]
      %s469 = sadd.s32 32, %s369
      %s470 = scalar_lea.vmem %s197, %s469
      %v471 = vld [vmem:[%s470] sm:$0xff]
      %v472 = vld [vmem:[%s470 + $0x10] sm:$0xff]
      %v473 = vld [vmem:[%s470 + $0x20] sm:$0xff]
      %v474 = vld [vmem:[%s470 + $0x30] sm:$0xff]
      %v475 = vld [vmem:[%s470 + $0x40] sm:$0xff]
      %v476 = vld [vmem:[%s470 + $0x50] sm:$0xff]
      %v477 = vld [vmem:[%s470 + $0x60] sm:$0xff]
      %v478 = vld [vmem:[%s470 + $0x70] sm:$0xff]
      %v479 = vld [vmem:[%s470 + $0xa0] sm:$0xff]
      %v480 = vld [vmem:[%s470 + $0xb0] sm:$0xff]
      %v481 = vld [vmem:[%s470 + $0xc0] sm:$0xff]
      %v482 = vld [vmem:[%s470 + $0xd0] sm:$0xff]
      %v483 = vld [vmem:[%s470 + $0xe0] sm:$0xff]
      %v484 = vld [vmem:[%s470 + $0xf0] sm:$0xff]
      %v485 = vld [vmem:[%s470 + $0x100] sm:$0xff]
      %v486 = vld [vmem:[%s470 + $0x110] sm:$0xff]
      %v487 = vld [vmem:[%s470 + $0x1] sm:$0xff]
      %v488 = vld [vmem:[%s470 + $0x11] sm:$0xff]
      %v489 = vld [vmem:[%s470 + $0x21] sm:$0xff]
      %v490 = vld [vmem:[%s470 + $0x31] sm:$0xff]
      %v491 = vld [vmem:[%s470 + $0x41] sm:$0xff]
      %v492 = vld [vmem:[%s470 + $0x51] sm:$0xff]
      %v493 = vld [vmem:[%s470 + $0x61] sm:$0xff]
      %v494 = vld [vmem:[%s470 + $0x71] sm:$0xff]
      %v495 = vld [vmem:[%s470 + $0xa1] sm:$0xff]
      %v496 = vld [vmem:[%s470 + $0xb1] sm:$0xff]
      %v497 = vld [vmem:[%s470 + $0xc1] sm:$0xff]
      %v498 = vld [vmem:[%s470 + $0xd1] sm:$0xff]
      %v499 = vld [vmem:[%s470 + $0xe1] sm:$0xff]
      %v500 = vld [vmem:[%s470 + $0xf1] sm:$0xff]
      %v501 = vld [vmem:[%s470 + $0x101] sm:$0xff]
      %v502 = vld [vmem:[%s470 + $0x111] sm:$0xff]
      %v503 = vld [vmem:[%s470 + $0x2] sm:$0xff]
      %v504 = vld [vmem:[%s470 + $0x12] sm:$0xff]
      %v505 = vld [vmem:[%s470 + $0x22] sm:$0xff]
      %v506 = vld [vmem:[%s470 + $0x32] sm:$0xff]
      %v507 = vld [vmem:[%s470 + $0x42] sm:$0xff]
      %v508 = vld [vmem:[%s470 + $0x52] sm:$0xff]
      %v509 = vld [vmem:[%s470 + $0x62] sm:$0xff]
      %v510 = vld [vmem:[%s470 + $0x72] sm:$0xff]
      %v511 = vld [vmem:[%s470 + $0xa2] sm:$0xff]
      %v512 = vld [vmem:[%s470 + $0xb2] sm:$0xff]
      %v513 = vld [vmem:[%s470 + $0xc2] sm:$0xff]
      %v514 = vld [vmem:[%s470 + $0xd2] sm:$0xff]
      %v515 = vld [vmem:[%s470 + $0xe2] sm:$0xff]
      %v516 = vld [vmem:[%s470 + $0xf2] sm:$0xff]
      %v517 = vld [vmem:[%s470 + $0x102] sm:$0xff]
      %v518 = vld [vmem:[%s470 + $0x112] sm:$0xff]
      %s519 = sadd.s32 %s217, 2
      %s520 = smul.u32 %s519, 160
      %s521 = scalar_lea.vmem %s197, %s520
      %v522 = vld [vmem:[%s521] sm:$0xff]
      %v523 = vld [vmem:[%s521 + $0x10] sm:$0xff]
      %v524 = vld [vmem:[%s521 + $0x20] sm:$0xff]
      %v525 = vld [vmem:[%s521 + $0x30] sm:$0xff]
      %v526 = vld [vmem:[%s521 + $0x40] sm:$0xff]
      %v527 = vld [vmem:[%s521 + $0x50] sm:$0xff]
      %v528 = vld [vmem:[%s521 + $0x60] sm:$0xff]
      %v529 = vld [vmem:[%s521 + $0x70] sm:$0xff]
      %v530 = vld [vmem:[%s521 + $0xa0] sm:$0xff]
      %v531 = vld [vmem:[%s521 + $0xb0] sm:$0xff]
      %v532 = vld [vmem:[%s521 + $0xc0] sm:$0xff]
      %v533 = vld [vmem:[%s521 + $0xd0] sm:$0xff]
      %v534 = vld [vmem:[%s521 + $0xe0] sm:$0xff]
      %v535 = vld [vmem:[%s521 + $0xf0] sm:$0xff]
      %v536 = vld [vmem:[%s521 + $0x100] sm:$0xff]
      %v537 = vld [vmem:[%s521 + $0x110] sm:$0xff]
      %v538 = vld [vmem:[%s521 + $0x1] sm:$0xff]
      %v539 = vld [vmem:[%s521 + $0x11] sm:$0xff]
      %v540 = vld [vmem:[%s521 + $0x21] sm:$0xff]
      %v541 = vld [vmem:[%s521 + $0x31] sm:$0xff]
      %v542 = vld [vmem:[%s521 + $0x41] sm:$0xff]
      %v543 = vld [vmem:[%s521 + $0x51] sm:$0xff]
      %v544 = vld [vmem:[%s521 + $0x61] sm:$0xff]
      %v545 = vld [vmem:[%s521 + $0x71] sm:$0xff]
      %v546 = vld [vmem:[%s521 + $0xa1] sm:$0xff]
      %v547 = vld [vmem:[%s521 + $0xb1] sm:$0xff]
      %v548 = vld [vmem:[%s521 + $0xc1] sm:$0xff]
      %v549 = vld [vmem:[%s521 + $0xd1] sm:$0xff]
      %v550 = vld [vmem:[%s521 + $0xe1] sm:$0xff]
      %v551 = vld [vmem:[%s521 + $0xf1] sm:$0xff]
      %v552 = vld [vmem:[%s521 + $0x101] sm:$0xff]
      %v553 = vld [vmem:[%s521 + $0x111] sm:$0xff]
      %v554 = vld [vmem:[%s521 + $0x2] sm:$0xff]
      %v555 = vld [vmem:[%s521 + $0x12] sm:$0xff]
      %v556 = vld [vmem:[%s521 + $0x22] sm:$0xff]
      %v557 = vld [vmem:[%s521 + $0x32] sm:$0xff]
      %v558 = vld [vmem:[%s521 + $0x42] sm:$0xff]
      %v559 = vld [vmem:[%s521 + $0x52] sm:$0xff]
      %v560 = vld [vmem:[%s521 + $0x62] sm:$0xff]
      %v561 = vld [vmem:[%s521 + $0x72] sm:$0xff]
      %v562 = vld [vmem:[%s521 + $0xa2] sm:$0xff]
      %v563 = vld [vmem:[%s521 + $0xb2] sm:$0xff]
      %v564 = vld [vmem:[%s521 + $0xc2] sm:$0xff]
      %v565 = vld [vmem:[%s521 + $0xd2] sm:$0xff]
      %v566 = vld [vmem:[%s521 + $0xe2] sm:$0xff]
      %v567 = vld [vmem:[%s521 + $0xf2] sm:$0xff]
      %v568 = vld [vmem:[%s521 + $0x102] sm:$0xff]
      %v569 = vld [vmem:[%s521 + $0x112] sm:$0xff]
      %s570 = sadd.s32 16, %s520
      %s571 = scalar_lea.vmem %s197, %s570
      %v572 = vld [vmem:[%s571] sm:$0xff]
      %v573 = vld [vmem:[%s571 + $0x10] sm:$0xff]
      %v574 = vld [vmem:[%s571 + $0x20] sm:$0xff]
      %v575 = vld [vmem:[%s571 + $0x30] sm:$0xff]
      %v576 = vld [vmem:[%s571 + $0x40] sm:$0xff]
      %v577 = vld [vmem:[%s571 + $0x50] sm:$0xff]
      %v578 = vld [vmem:[%s571 + $0x60] sm:$0xff]
      %v579 = vld [vmem:[%s571 + $0x70] sm:$0xff]
      %v580 = vld [vmem:[%s571 + $0xa0] sm:$0xff]
      %v581 = vld [vmem:[%s571 + $0xb0] sm:$0xff]
      %v582 = vld [vmem:[%s571 + $0xc0] sm:$0xff]
      %v583 = vld [vmem:[%s571 + $0xd0] sm:$0xff]
      %v584 = vld [vmem:[%s571 + $0xe0] sm:$0xff]
      %v585 = vld [vmem:[%s571 + $0xf0] sm:$0xff]
      %v586 = vld [vmem:[%s571 + $0x100] sm:$0xff]
      %v587 = vld [vmem:[%s571 + $0x110] sm:$0xff]
      %v588 = vld [vmem:[%s571 + $0x1] sm:$0xff]
      %v589 = vld [vmem:[%s571 + $0x11] sm:$0xff]
      %v590 = vld [vmem:[%s571 + $0x21] sm:$0xff]
      %v591 = vld [vmem:[%s571 + $0x31] sm:$0xff]
      %v592 = vld [vmem:[%s571 + $0x41] sm:$0xff]
      %v593 = vld [vmem:[%s571 + $0x51] sm:$0xff]
      %v594 = vld [vmem:[%s571 + $0x61] sm:$0xff]
      %v595 = vld [vmem:[%s571 + $0x71] sm:$0xff]
      %v596 = vld [vmem:[%s571 + $0xa1] sm:$0xff]
      %v597 = vld [vmem:[%s571 + $0xb1] sm:$0xff]
      %v598 = vld [vmem:[%s571 + $0xc1] sm:$0xff]
      %v599 = vld [vmem:[%s571 + $0xd1] sm:$0xff]
      %v600 = vld [vmem:[%s571 + $0xe1] sm:$0xff]
      %v601 = vld [vmem:[%s571 + $0xf1] sm:$0xff]
      %v602 = vld [vmem:[%s571 + $0x101] sm:$0xff]
      %v603 = vld [vmem:[%s571 + $0x111] sm:$0xff]
      %v604 = vld [vmem:[%s571 + $0x2] sm:$0xff]
      %v605 = vld [vmem:[%s571 + $0x12] sm:$0xff]
      %v606 = vld [vmem:[%s571 + $0x22] sm:$0xff]
      %v607 = vld [vmem:[%s571 + $0x32] sm:$0xff]
      %v608 = vld [vmem:[%s571 + $0x42] sm:$0xff]
      %v609 = vld [vmem:[%s571 + $0x52] sm:$0xff]
      %v610 = vld [vmem:[%s571 + $0x62] sm:$0xff]
      %v611 = vld [vmem:[%s571 + $0x72] sm:$0xff]
      %v612 = vld [vmem:[%s571 + $0xa2] sm:$0xff]
      %v613 = vld [vmem:[%s571 + $0xb2] sm:$0xff]
      %v614 = vld [vmem:[%s571 + $0xc2] sm:$0xff]
      %v615 = vld [vmem:[%s571 + $0xd2] sm:$0xff]
      %v616 = vld [vmem:[%s571 + $0xe2] sm:$0xff]
      %v617 = vld [vmem:[%s571 + $0xf2] sm:$0xff]
      %v618 = vld [vmem:[%s571 + $0x102] sm:$0xff]
      %v619 = vld [vmem:[%s571 + $0x112] sm:$0xff]
      %s620 = sadd.s32 32, %s520
      %s621 = scalar_lea.vmem %s197, %s620
      %v622 = vld [vmem:[%s621] sm:$0xff]
      %v623 = vld [vmem:[%s621 + $0x10] sm:$0xff]
      %v624 = vld [vmem:[%s621 + $0x20] sm:$0xff]
      %v625 = vld [vmem:[%s621 + $0x30] sm:$0xff]
      %v626 = vld [vmem:[%s621 + $0x40] sm:$0xff]
      %v627 = vld [vmem:[%s621 + $0x50] sm:$0xff]
      %v628 = vld [vmem:[%s621 + $0x60] sm:$0xff]
      %v629 = vld [vmem:[%s621 + $0x70] sm:$0xff]
      %v630 = vld [vmem:[%s621 + $0xa0] sm:$0xff]
      %v631 = vld [vmem:[%s621 + $0xb0] sm:$0xff]
      %v632 = vld [vmem:[%s621 + $0xc0] sm:$0xff]
      %v633 = vld [vmem:[%s621 + $0xd0] sm:$0xff]
      %v634 = vld [vmem:[%s621 + $0xe0] sm:$0xff]
      %v635 = vld [vmem:[%s621 + $0xf0] sm:$0xff]
      %v636 = vld [vmem:[%s621 + $0x100] sm:$0xff]
      %v637 = vld [vmem:[%s621 + $0x110] sm:$0xff]
      %v638 = vld [vmem:[%s621 + $0x1] sm:$0xff]
      %v639 = vld [vmem:[%s621 + $0x11] sm:$0xff]
      %v640 = vld [vmem:[%s621 + $0x21] sm:$0xff]
      %v641 = vld [vmem:[%s621 + $0x31] sm:$0xff]
      %v642 = vld [vmem:[%s621 + $0x41] sm:$0xff]
      %v643 = vld [vmem:[%s621 + $0x51] sm:$0xff]
      %v644 = vld [vmem:[%s621 + $0x61] sm:$0xff]
      %v645 = vld [vmem:[%s621 + $0x71] sm:$0xff]
      %v646 = vld [vmem:[%s621 + $0xa1] sm:$0xff]
      %v647 = vld [vmem:[%s621 + $0xb1] sm:$0xff]
      %v648 = vld [vmem:[%s621 + $0xc1] sm:$0xff]
      %v649 = vld [vmem:[%s621 + $0xd1] sm:$0xff]
      %v650 = vld [vmem:[%s621 + $0xe1] sm:$0xff]
      %v651 = vld [vmem:[%s621 + $0xf1] sm:$0xff]
      %v652 = vld [vmem:[%s621 + $0x101] sm:$0xff]
      %v653 = vld [vmem:[%s621 + $0x111] sm:$0xff]
      %v654 = vld [vmem:[%s621 + $0x2] sm:$0xff]
      %v655 = vld [vmem:[%s621 + $0x12] sm:$0xff]
      %v656 = vld [vmem:[%s621 + $0x22] sm:$0xff]
      %v657 = vld [vmem:[%s621 + $0x32] sm:$0xff]
      %v658 = vld [vmem:[%s621 + $0x42] sm:$0xff]
      %v659 = vld [vmem:[%s621 + $0x52] sm:$0xff]
      %v660 = vld [vmem:[%s621 + $0x62] sm:$0xff]
      %v661 = vld [vmem:[%s621 + $0x72] sm:$0xff]
      %v662 = vld [vmem:[%s621 + $0xa2] sm:$0xff]
      %v663 = vld [vmem:[%s621 + $0xb2] sm:$0xff]
      %v664 = vld [vmem:[%s621 + $0xc2] sm:$0xff]
      %v665 = vld [vmem:[%s621 + $0xd2] sm:$0xff]
      %v666 = vld [vmem:[%s621 + $0xe2] sm:$0xff]
      %v667 = vld [vmem:[%s621 + $0xf2] sm:$0xff]
      %v668 = vld [vmem:[%s621 + $0x102] sm:$0xff]
      %v669 = vld [vmem:[%s621 + $0x112] sm:$0xff]
      %686 = vrot.lane.b32.xlu0 %v236, 8
      %v687 = vpop.permute.xlu0 %686
      %688 = vrot.lane.b32.xlu0 %v237, 8
      %v689 = vpop.permute.xlu0 %688
      %690 = vrot.lane.b32.xlu0 %v238, 8
      %v691 = vpop.permute.xlu0 %690
      %692 = vrot.lane.b32.xlu0 %v239, 8
      %v693 = vpop.permute.xlu0 %692
      %694 = vrot.lane.b32.xlu0 %v240, 8
      %v695 = vpop.permute.xlu0 %694
      %696 = vrot.lane.b32.xlu0 %v241, 8
      %v697 = vpop.permute.xlu0 %696
      %698 = vrot.lane.b32.xlu0 %v242, 8
      %v699 = vpop.permute.xlu0 %698
      %700 = vrot.lane.b32.xlu0 %v243, 8
      %v701 = vpop.permute.xlu0 %700
      %702 = vrot.lane.b32.xlu0 %v244, 8
      %v703 = vpop.permute.xlu0 %702
      %704 = vrot.lane.b32.xlu0 %v245, 8
      %v705 = vpop.permute.xlu0 %704
      %706 = vrot.lane.b32.xlu0 %v246, 8
      %v707 = vpop.permute.xlu0 %706
      %708 = vrot.lane.b32.xlu0 %v247, 8
      %v709 = vpop.permute.xlu0 %708
      %710 = vrot.lane.b32.xlu0 %v248, 8
      %v711 = vpop.permute.xlu0 %710
      %712 = vrot.lane.b32.xlu0 %v249, 8
      %v713 = vpop.permute.xlu0 %712
      %714 = vrot.lane.b32.xlu0 %v250, 8
      %v715 = vpop.permute.xlu0 %714
      %716 = vrot.lane.b32.xlu0 %v251, 8
      %v717 = vpop.permute.xlu0 %716
      %750 = vrot.lane.b32.xlu0 %v252, 16
      %v751 = vpop.permute.xlu0 %750
      %752 = vrot.lane.b32.xlu0 %v253, 16
      %v753 = vpop.permute.xlu0 %752
      %754 = vrot.lane.b32.xlu0 %v254, 16
      %v755 = vpop.permute.xlu0 %754
      %756 = vrot.lane.b32.xlu0 %v255, 16
      %v757 = vpop.permute.xlu0 %756
      %758 = vrot.lane.b32.xlu0 %v256, 16
      %v759 = vpop.permute.xlu0 %758
      %760 = vrot.lane.b32.xlu0 %v257, 16
      %v761 = vpop.permute.xlu0 %760
      %762 = vrot.lane.b32.xlu0 %v258, 16
      %v763 = vpop.permute.xlu0 %762
      %764 = vrot.lane.b32.xlu0 %v259, 16
      %v765 = vpop.permute.xlu0 %764
      %766 = vrot.lane.b32.xlu0 %v260, 16
      %v767 = vpop.permute.xlu0 %766
      %768 = vrot.lane.b32.xlu0 %v261, 16
      %v769 = vpop.permute.xlu0 %768
      %770 = vrot.lane.b32.xlu0 %v262, 16
      %v771 = vpop.permute.xlu0 %770
      %772 = vrot.lane.b32.xlu0 %v263, 16
      %v773 = vpop.permute.xlu0 %772
      %774 = vrot.lane.b32.xlu0 %v264, 16
      %v775 = vpop.permute.xlu0 %774
      %776 = vrot.lane.b32.xlu0 %v265, 16
      %v777 = vpop.permute.xlu0 %776
      %778 = vrot.lane.b32.xlu0 %v266, 16
      %v779 = vpop.permute.xlu0 %778
      %780 = vrot.lane.b32.xlu0 %v267, 16
      %v781 = vpop.permute.xlu0 %780
      %814 = vrot.lane.b32.xlu0 %v270, 24
      %v815 = vpop.permute.xlu0 %814
      %816 = vrot.lane.b32.xlu0 %v271, 24
      %v817 = vpop.permute.xlu0 %816
      %818 = vrot.lane.b32.xlu0 %v272, 24
      %v819 = vpop.permute.xlu0 %818
      %820 = vrot.lane.b32.xlu0 %v273, 24
      %v821 = vpop.permute.xlu0 %820
      %822 = vrot.lane.b32.xlu0 %v274, 24
      %v823 = vpop.permute.xlu0 %822
      %824 = vrot.lane.b32.xlu0 %v275, 24
      %v825 = vpop.permute.xlu0 %824
      %826 = vrot.lane.b32.xlu0 %v276, 24
      %v827 = vpop.permute.xlu0 %826
      %828 = vrot.lane.b32.xlu0 %v277, 24
      %v829 = vpop.permute.xlu0 %828
      %830 = vrot.lane.b32.xlu0 %v278, 24
      %v831 = vpop.permute.xlu0 %830
      %832 = vrot.lane.b32.xlu0 %v279, 24
      %v833 = vpop.permute.xlu0 %832
      %834 = vrot.lane.b32.xlu0 %v280, 24
      %v835 = vpop.permute.xlu0 %834
      %836 = vrot.lane.b32.xlu0 %v281, 24
      %v837 = vpop.permute.xlu0 %836
      %838 = vrot.lane.b32.xlu0 %v282, 24
      %v839 = vpop.permute.xlu0 %838
      %840 = vrot.lane.b32.xlu0 %v283, 24
      %v841 = vpop.permute.xlu0 %840
      %842 = vrot.lane.b32.xlu0 %v284, 24
      %v843 = vpop.permute.xlu0 %842
      %844 = vrot.lane.b32.xlu0 %v285, 24
      %v845 = vpop.permute.xlu0 %844
      %878 = vrot.lane.b32.xlu0 %v286, 32
      %v879 = vpop.permute.xlu0 %878
      %880 = vrot.lane.b32.xlu0 %v287, 32
      %v881 = vpop.permute.xlu0 %880
      %882 = vrot.lane.b32.xlu0 %v288, 32
      %v883 = vpop.permute.xlu0 %882
      %884 = vrot.lane.b32.xlu0 %v289, 32
      %v885 = vpop.permute.xlu0 %884
      %886 = vrot.lane.b32.xlu0 %v290, 32
      %v887 = vpop.permute.xlu0 %886
      %888 = vrot.lane.b32.xlu0 %v291, 32
      %v889 = vpop.permute.xlu0 %888
      %890 = vrot.lane.b32.xlu0 %v292, 32
      %v891 = vpop.permute.xlu0 %890
      %892 = vrot.lane.b32.xlu0 %v293, 32
      %v893 = vpop.permute.xlu0 %892
      %894 = vrot.lane.b32.xlu0 %v294, 32
      %v895 = vpop.permute.xlu0 %894
      %896 = vrot.lane.b32.xlu0 %v295, 32
      %v897 = vpop.permute.xlu0 %896
      %898 = vrot.lane.b32.xlu0 %v296, 32
      %v899 = vpop.permute.xlu0 %898
      %900 = vrot.lane.b32.xlu0 %v297, 32
      %v901 = vpop.permute.xlu0 %900
      %902 = vrot.lane.b32.xlu0 %v298, 32
      %v903 = vpop.permute.xlu0 %902
      %904 = vrot.lane.b32.xlu0 %v299, 32
      %v905 = vpop.permute.xlu0 %904
      %906 = vrot.lane.b32.xlu0 %v300, 32
      %v907 = vpop.permute.xlu0 %906
      %908 = vrot.lane.b32.xlu0 %v301, 32
      %v909 = vpop.permute.xlu0 %908
      %942 = vrot.lane.b32.xlu0 %v302, 40
      %v943 = vpop.permute.xlu0 %942
      %944 = vrot.lane.b32.xlu0 %v303, 40
      %v945 = vpop.permute.xlu0 %944
      %946 = vrot.lane.b32.xlu0 %v304, 40
      %v947 = vpop.permute.xlu0 %946
      %948 = vrot.lane.b32.xlu0 %v305, 40
      %v949 = vpop.permute.xlu0 %948
      %950 = vrot.lane.b32.xlu0 %v306, 40
      %v951 = vpop.permute.xlu0 %950
      %952 = vrot.lane.b32.xlu0 %v307, 40
      %v953 = vpop.permute.xlu0 %952
      %954 = vrot.lane.b32.xlu0 %v308, 40
      %v955 = vpop.permute.xlu0 %954
      %956 = vrot.lane.b32.xlu0 %v309, 40
      %v957 = vpop.permute.xlu0 %956
      %958 = vrot.lane.b32.xlu0 %v310, 40
      %v959 = vpop.permute.xlu0 %958
      %960 = vrot.lane.b32.xlu0 %v311, 40
      %v961 = vpop.permute.xlu0 %960
      %962 = vrot.lane.b32.xlu0 %v312, 40
      %v963 = vpop.permute.xlu0 %962
      %964 = vrot.lane.b32.xlu0 %v313, 40
      %v965 = vpop.permute.xlu0 %964
      %966 = vrot.lane.b32.xlu0 %v314, 40
      %v967 = vpop.permute.xlu0 %966
      %968 = vrot.lane.b32.xlu0 %v315, 40
      %v969 = vpop.permute.xlu0 %968
      %970 = vrot.lane.b32.xlu0 %v316, 40
      %v971 = vpop.permute.xlu0 %970
      %972 = vrot.lane.b32.xlu0 %v317, 40
      %v973 = vpop.permute.xlu0 %972
      %1006 = vrot.lane.b32.xlu0 %v320, 48
      %v1007 = vpop.permute.xlu0 %1006
      %1008 = vrot.lane.b32.xlu0 %v321, 48
      %v1009 = vpop.permute.xlu0 %1008
      %1010 = vrot.lane.b32.xlu0 %v322, 48
      %v1011 = vpop.permute.xlu0 %1010
      %1012 = vrot.lane.b32.xlu0 %v323, 48
      %v1013 = vpop.permute.xlu0 %1012
      %1014 = vrot.lane.b32.xlu0 %v324, 48
      %v1015 = vpop.permute.xlu0 %1014
      %1016 = vrot.lane.b32.xlu0 %v325, 48
      %v1017 = vpop.permute.xlu0 %1016
      %1018 = vrot.lane.b32.xlu0 %v326, 48
      %v1019 = vpop.permute.xlu0 %1018
      %1020 = vrot.lane.b32.xlu0 %v327, 48
      %v1021 = vpop.permute.xlu0 %1020
      %1022 = vrot.lane.b32.xlu0 %v328, 48
      %v1023 = vpop.permute.xlu0 %1022
      %1024 = vrot.lane.b32.xlu0 %v329, 48
      %v1025 = vpop.permute.xlu0 %1024
      %1026 = vrot.lane.b32.xlu0 %v330, 48
      %v1027 = vpop.permute.xlu0 %1026
      %1028 = vrot.lane.b32.xlu0 %v331, 48
      %v1029 = vpop.permute.xlu0 %1028
      %1030 = vrot.lane.b32.xlu0 %v332, 48
      %v1031 = vpop.permute.xlu0 %1030
      %1032 = vrot.lane.b32.xlu0 %v333, 48
      %v1033 = vpop.permute.xlu0 %1032
      %1034 = vrot.lane.b32.xlu0 %v334, 48
      %v1035 = vpop.permute.xlu0 %1034
      %1036 = vrot.lane.b32.xlu0 %v335, 48
      %v1037 = vpop.permute.xlu0 %1036
      %1070 = vrot.lane.b32.xlu0 %v336, 56
      %v1071 = vpop.permute.xlu0 %1070
      %1072 = vrot.lane.b32.xlu0 %v337, 56
      %v1073 = vpop.permute.xlu0 %1072
      %1074 = vrot.lane.b32.xlu0 %v338, 56
      %v1075 = vpop.permute.xlu0 %1074
      %1076 = vrot.lane.b32.xlu0 %v339, 56
      %v1077 = vpop.permute.xlu0 %1076
      %1078 = vrot.lane.b32.xlu0 %v340, 56
      %v1079 = vpop.permute.xlu0 %1078
      %1080 = vrot.lane.b32.xlu0 %v341, 56
      %v1081 = vpop.permute.xlu0 %1080
      %1082 = vrot.lane.b32.xlu0 %v342, 56
      %v1083 = vpop.permute.xlu0 %1082
      %1084 = vrot.lane.b32.xlu0 %v343, 56
      %v1085 = vpop.permute.xlu0 %1084
      %1086 = vrot.lane.b32.xlu0 %v344, 56
      %v1087 = vpop.permute.xlu0 %1086
      %1088 = vrot.lane.b32.xlu0 %v345, 56
      %v1089 = vpop.permute.xlu0 %1088
      %1090 = vrot.lane.b32.xlu0 %v346, 56
      %v1091 = vpop.permute.xlu0 %1090
      %1092 = vrot.lane.b32.xlu0 %v347, 56
      %v1093 = vpop.permute.xlu0 %1092
      %1094 = vrot.lane.b32.xlu0 %v348, 56
      %v1095 = vpop.permute.xlu0 %1094
      %1096 = vrot.lane.b32.xlu0 %v349, 56
      %v1097 = vpop.permute.xlu0 %1096
      %1098 = vrot.lane.b32.xlu0 %v350, 56
      %v1099 = vpop.permute.xlu0 %1098
      %1100 = vrot.lane.b32.xlu0 %v351, 56
      %v1101 = vpop.permute.xlu0 %1100
      %1134 = vrot.lane.b32.xlu0 %v352, 64
      %v1135 = vpop.permute.xlu0 %1134
      %1136 = vrot.lane.b32.xlu0 %v353, 64
      %v1137 = vpop.permute.xlu0 %1136
      %1138 = vrot.lane.b32.xlu0 %v354, 64
      %v1139 = vpop.permute.xlu0 %1138
      %1140 = vrot.lane.b32.xlu0 %v355, 64
      %v1141 = vpop.permute.xlu0 %1140
      %1142 = vrot.lane.b32.xlu0 %v356, 64
      %v1143 = vpop.permute.xlu0 %1142
      %1144 = vrot.lane.b32.xlu0 %v357, 64
      %v1145 = vpop.permute.xlu0 %1144
      %1146 = vrot.lane.b32.xlu0 %v358, 64
      %v1147 = vpop.permute.xlu0 %1146
      %1148 = vrot.lane.b32.xlu0 %v359, 64
      %v1149 = vpop.permute.xlu0 %1148
      %1150 = vrot.lane.b32.xlu0 %v360, 64
      %v1151 = vpop.permute.xlu0 %1150
      %1152 = vrot.lane.b32.xlu0 %v361, 64
      %v1153 = vpop.permute.xlu0 %1152
      %1154 = vrot.lane.b32.xlu0 %v362, 64
      %v1155 = vpop.permute.xlu0 %1154
      %1156 = vrot.lane.b32.xlu0 %v363, 64
      %v1157 = vpop.permute.xlu0 %1156
      %1158 = vrot.lane.b32.xlu0 %v364, 64
      %v1159 = vpop.permute.xlu0 %1158
      %1160 = vrot.lane.b32.xlu0 %v365, 64
      %v1161 = vpop.permute.xlu0 %1160
      %1162 = vrot.lane.b32.xlu0 %v366, 64
      %v1163 = vpop.permute.xlu0 %1162
      %1164 = vrot.lane.b32.xlu0 %v367, 64
      %v1165 = vpop.permute.xlu0 %1164
      %1198 = vrot.lane.b32.xlu0 %v371, 72
      %v1199 = vpop.permute.xlu0 %1198
      %1200 = vrot.lane.b32.xlu0 %v372, 72
      %v1201 = vpop.permute.xlu0 %1200
      %1202 = vrot.lane.b32.xlu0 %v373, 72
      %v1203 = vpop.permute.xlu0 %1202
      %1204 = vrot.lane.b32.xlu0 %v374, 72
      %v1205 = vpop.permute.xlu0 %1204
      %1206 = vrot.lane.b32.xlu0 %v375, 72
      %v1207 = vpop.permute.xlu0 %1206
      %1208 = vrot.lane.b32.xlu0 %v376, 72
      %v1209 = vpop.permute.xlu0 %1208
      %1210 = vrot.lane.b32.xlu0 %v377, 72
      %v1211 = vpop.permute.xlu0 %1210
      %1212 = vrot.lane.b32.xlu0 %v378, 72
      %v1213 = vpop.permute.xlu0 %1212
      %1214 = vrot.lane.b32.xlu0 %v379, 72
      %v1215 = vpop.permute.xlu0 %1214
      %1216 = vrot.lane.b32.xlu0 %v380, 72
      %v1217 = vpop.permute.xlu0 %1216
      %1218 = vrot.lane.b32.xlu0 %v381, 72
      %v1219 = vpop.permute.xlu0 %1218
      %1220 = vrot.lane.b32.xlu0 %v382, 72
      %v1221 = vpop.permute.xlu0 %1220
      %1222 = vrot.lane.b32.xlu0 %v383, 72
      %v1223 = vpop.permute.xlu0 %1222
      %1224 = vrot.lane.b32.xlu0 %v384, 72
      %v1225 = vpop.permute.xlu0 %1224
      %1226 = vrot.lane.b32.xlu0 %v385, 72
      %v1227 = vpop.permute.xlu0 %1226
      %1228 = vrot.lane.b32.xlu0 %v386, 72
      %v1229 = vpop.permute.xlu0 %1228
      %1262 = vrot.lane.b32.xlu0 %v387, 80
      %v1263 = vpop.permute.xlu0 %1262
      %1264 = vrot.lane.b32.xlu0 %v388, 80
      %v1265 = vpop.permute.xlu0 %1264
      %1266 = vrot.lane.b32.xlu0 %v389, 80
      %v1267 = vpop.permute.xlu0 %1266
      %1268 = vrot.lane.b32.xlu0 %v390, 80
      %v1269 = vpop.permute.xlu0 %1268
      %1270 = vrot.lane.b32.xlu0 %v391, 80
      %v1271 = vpop.permute.xlu0 %1270
      %1272 = vrot.lane.b32.xlu0 %v392, 80
      %v1273 = vpop.permute.xlu0 %1272
      %1274 = vrot.lane.b32.xlu0 %v393, 80
      %v1275 = vpop.permute.xlu0 %1274
      %1276 = vrot.lane.b32.xlu0 %v394, 80
      %v1277 = vpop.permute.xlu0 %1276
      %1278 = vrot.lane.b32.xlu0 %v395, 80
      %v1279 = vpop.permute.xlu0 %1278
      %1280 = vrot.lane.b32.xlu0 %v396, 80
      %v1281 = vpop.permute.xlu0 %1280
      %1282 = vrot.lane.b32.xlu0 %v397, 80
      %v1283 = vpop.permute.xlu0 %1282
      %1284 = vrot.lane.b32.xlu0 %v398, 80
      %v1285 = vpop.permute.xlu0 %1284
      %1286 = vrot.lane.b32.xlu0 %v399, 80
      %v1287 = vpop.permute.xlu0 %1286
      %1288 = vrot.lane.b32.xlu0 %v400, 80
      %v1289 = vpop.permute.xlu0 %1288
      %1290 = vrot.lane.b32.xlu0 %v401, 80
      %v1291 = vpop.permute.xlu0 %1290
      %1292 = vrot.lane.b32.xlu0 %v402, 80
      %v1293 = vpop.permute.xlu0 %1292
      %1326 = vrot.lane.b32.xlu0 %v403, 88
      %v1327 = vpop.permute.xlu0 %1326
      %1328 = vrot.lane.b32.xlu0 %v404, 88
      %v1329 = vpop.permute.xlu0 %1328
      %1330 = vrot.lane.b32.xlu0 %v405, 88
      %v1331 = vpop.permute.xlu0 %1330
      %1332 = vrot.lane.b32.xlu0 %v406, 88
      %v1333 = vpop.permute.xlu0 %1332
      %1334 = vrot.lane.b32.xlu0 %v407, 88
      %v1335 = vpop.permute.xlu0 %1334
      %1336 = vrot.lane.b32.xlu0 %v408, 88
      %v1337 = vpop.permute.xlu0 %1336
      %1338 = vrot.lane.b32.xlu0 %v409, 88
      %v1339 = vpop.permute.xlu0 %1338
      %1340 = vrot.lane.b32.xlu0 %v410, 88
      %v1341 = vpop.permute.xlu0 %1340
      %1342 = vrot.lane.b32.xlu0 %v411, 88
      %v1343 = vpop.permute.xlu0 %1342
      %1344 = vrot.lane.b32.xlu0 %v412, 88
      %v1345 = vpop.permute.xlu0 %1344
      %1346 = vrot.lane.b32.xlu0 %v413, 88
      %v1347 = vpop.permute.xlu0 %1346
      %1348 = vrot.lane.b32.xlu0 %v414, 88
      %v1349 = vpop.permute.xlu0 %1348
      %1350 = vrot.lane.b32.xlu0 %v415, 88
      %v1351 = vpop.permute.xlu0 %1350
      %1352 = vrot.lane.b32.xlu0 %v416, 88
      %v1353 = vpop.permute.xlu0 %1352
      %1354 = vrot.lane.b32.xlu0 %v417, 88
      %v1355 = vpop.permute.xlu0 %1354
      %1356 = vrot.lane.b32.xlu0 %v418, 88
      %v1357 = vpop.permute.xlu0 %1356
      %1390 = vrot.lane.b32.xlu0 %v421, 96
      %v1391 = vpop.permute.xlu0 %1390
      %1392 = vrot.lane.b32.xlu0 %v422, 96
      %v1393 = vpop.permute.xlu0 %1392
      %1394 = vrot.lane.b32.xlu0 %v423, 96
      %v1395 = vpop.permute.xlu0 %1394
      %1396 = vrot.lane.b32.xlu0 %v424, 96
      %v1397 = vpop.permute.xlu0 %1396
      %1398 = vrot.lane.b32.xlu0 %v425, 96
      %v1399 = vpop.permute.xlu0 %1398
      %1400 = vrot.lane.b32.xlu0 %v426, 96
      %v1401 = vpop.permute.xlu0 %1400
      %1402 = vrot.lane.b32.xlu0 %v427, 96
      %v1403 = vpop.permute.xlu0 %1402
      %1404 = vrot.lane.b32.xlu0 %v428, 96
      %v1405 = vpop.permute.xlu0 %1404
      %1406 = vrot.lane.b32.xlu0 %v429, 96
      %v1407 = vpop.permute.xlu0 %1406
      %1408 = vrot.lane.b32.xlu0 %v430, 96
      %v1409 = vpop.permute.xlu0 %1408
      %1410 = vrot.lane.b32.xlu0 %v431, 96
      %v1411 = vpop.permute.xlu0 %1410
      %1412 = vrot.lane.b32.xlu0 %v432, 96
      %v1413 = vpop.permute.xlu0 %1412
      %1414 = vrot.lane.b32.xlu0 %v433, 96
      %v1415 = vpop.permute.xlu0 %1414
      %1416 = vrot.lane.b32.xlu0 %v434, 96
      %v1417 = vpop.permute.xlu0 %1416
      %1418 = vrot.lane.b32.xlu0 %v435, 96
      %v1419 = vpop.permute.xlu0 %1418
      %1420 = vrot.lane.b32.xlu0 %v436, 96
      %v1421 = vpop.permute.xlu0 %1420
      %1454 = vrot.lane.b32.xlu0 %v437, 104
      %v1455 = vpop.permute.xlu0 %1454
      %1456 = vrot.lane.b32.xlu0 %v438, 104
      %v1457 = vpop.permute.xlu0 %1456
      %1458 = vrot.lane.b32.xlu0 %v439, 104
      %v1459 = vpop.permute.xlu0 %1458
      %1460 = vrot.lane.b32.xlu0 %v440, 104
      %v1461 = vpop.permute.xlu0 %1460
      %1462 = vrot.lane.b32.xlu0 %v441, 104
      %v1463 = vpop.permute.xlu0 %1462
      %1464 = vrot.lane.b32.xlu0 %v442, 104
      %v1465 = vpop.permute.xlu0 %1464
      %1466 = vrot.lane.b32.xlu0 %v443, 104
      %v1467 = vpop.permute.xlu0 %1466
      %1468 = vrot.lane.b32.xlu0 %v444, 104
      %v1469 = vpop.permute.xlu0 %1468
      %1470 = vrot.lane.b32.xlu0 %v445, 104
      %v1471 = vpop.permute.xlu0 %1470
      %1472 = vrot.lane.b32.xlu0 %v446, 104
      %v1473 = vpop.permute.xlu0 %1472
      %1474 = vrot.lane.b32.xlu0 %v447, 104
      %v1475 = vpop.permute.xlu0 %1474
      %1476 = vrot.lane.b32.xlu0 %v448, 104
      %v1477 = vpop.permute.xlu0 %1476
      %1478 = vrot.lane.b32.xlu0 %v449, 104
      %v1479 = vpop.permute.xlu0 %1478
      %1480 = vrot.lane.b32.xlu0 %v450, 104
      %v1481 = vpop.permute.xlu0 %1480
      %1482 = vrot.lane.b32.xlu0 %v451, 104
      %v1483 = vpop.permute.xlu0 %1482
      %1484 = vrot.lane.b32.xlu0 %v452, 104
      %v1485 = vpop.permute.xlu0 %1484
      %1518 = vrot.lane.b32.xlu0 %v453, 112
      %v1519 = vpop.permute.xlu0 %1518
      %1520 = vrot.lane.b32.xlu0 %v454, 112
      %v1521 = vpop.permute.xlu0 %1520
      %1522 = vrot.lane.b32.xlu0 %v455, 112
      %v1523 = vpop.permute.xlu0 %1522
      %1524 = vrot.lane.b32.xlu0 %v456, 112
      %v1525 = vpop.permute.xlu0 %1524
      %1526 = vrot.lane.b32.xlu0 %v457, 112
      %v1527 = vpop.permute.xlu0 %1526
      %1528 = vrot.lane.b32.xlu0 %v458, 112
      %v1529 = vpop.permute.xlu0 %1528
      %1530 = vrot.lane.b32.xlu0 %v459, 112
      %v1531 = vpop.permute.xlu0 %1530
      %1532 = vrot.lane.b32.xlu0 %v460, 112
      %v1533 = vpop.permute.xlu0 %1532
      %1534 = vrot.lane.b32.xlu0 %v461, 112
      %v1535 = vpop.permute.xlu0 %1534
      %1536 = vrot.lane.b32.xlu0 %v462, 112
      %v1537 = vpop.permute.xlu0 %1536
      %1538 = vrot.lane.b32.xlu0 %v463, 112
      %v1539 = vpop.permute.xlu0 %1538
      %1540 = vrot.lane.b32.xlu0 %v464, 112
      %v1541 = vpop.permute.xlu0 %1540
      %1542 = vrot.lane.b32.xlu0 %v465, 112
      %v1543 = vpop.permute.xlu0 %1542
      %1544 = vrot.lane.b32.xlu0 %v466, 112
      %v1545 = vpop.permute.xlu0 %1544
      %1546 = vrot.lane.b32.xlu0 %v467, 112
      %v1547 = vpop.permute.xlu0 %1546
      %1548 = vrot.lane.b32.xlu0 %v468, 112
      %v1549 = vpop.permute.xlu0 %1548
      %1582 = vrot.lane.b32.xlu0 %v471, 120
      %v1583 = vpop.permute.xlu0 %1582
      %1584 = vrot.lane.b32.xlu0 %v472, 120
      %v1585 = vpop.permute.xlu0 %1584
      %1586 = vrot.lane.b32.xlu0 %v473, 120
      %v1587 = vpop.permute.xlu0 %1586
      %1588 = vrot.lane.b32.xlu0 %v474, 120
      %v1589 = vpop.permute.xlu0 %1588
      %1590 = vrot.lane.b32.xlu0 %v475, 120
      %v1591 = vpop.permute.xlu0 %1590
      %1592 = vrot.lane.b32.xlu0 %v476, 120
      %v1593 = vpop.permute.xlu0 %1592
      %1594 = vrot.lane.b32.xlu0 %v477, 120
      %v1595 = vpop.permute.xlu0 %1594
      %1596 = vrot.lane.b32.xlu0 %v478, 120
      %v1597 = vpop.permute.xlu0 %1596
      %1598 = vrot.lane.b32.xlu0 %v479, 120
      %v1599 = vpop.permute.xlu0 %1598
      %1600 = vrot.lane.b32.xlu0 %v480, 120
      %v1601 = vpop.permute.xlu0 %1600
      %1602 = vrot.lane.b32.xlu0 %v481, 120
      %v1603 = vpop.permute.xlu0 %1602
      %1604 = vrot.lane.b32.xlu0 %v482, 120
      %v1605 = vpop.permute.xlu0 %1604
      %1606 = vrot.lane.b32.xlu0 %v483, 120
      %v1607 = vpop.permute.xlu0 %1606
      %1608 = vrot.lane.b32.xlu0 %v484, 120
      %v1609 = vpop.permute.xlu0 %1608
      %1610 = vrot.lane.b32.xlu0 %v485, 120
      %v1611 = vpop.permute.xlu0 %1610
      %1612 = vrot.lane.b32.xlu0 %v486, 120
      %v1613 = vpop.permute.xlu0 %1612
      %vm1630 = vcmask 64512
      %v1631 = vsel %vm1630, %v220, %v687
      %v1632 = vsel %vm1630, %v221, %v689
      %v1633 = vsel %vm1630, %v222, %v691
      %v1634 = vsel %vm1630, %v223, %v693
      %v1635 = vsel %vm1630, %v224, %v695
      %v1636 = vsel %vm1630, %v225, %v697
      %v1637 = vsel %vm1630, %v226, %v699
      %v1638 = vsel %vm1630, %v227, %v701
      %v1639 = vsel %vm1630, %v228, %v703
      %v1640 = vsel %vm1630, %v229, %v705
      %v1641 = vsel %vm1630, %v230, %v707
      %v1642 = vsel %vm1630, %v231, %v709
      %v1643 = vsel %vm1630, %v232, %v711
      %v1644 = vsel %vm1630, %v233, %v713
      %v1645 = vsel %vm1630, %v234, %v715
      %v1646 = vsel %vm1630, %v235, %v717
      %vm1647 = vcmask 130048
      %v1648 = vsel %vm1647, %v1631, %v751
      %v1649 = vsel %vm1647, %v1632, %v753
      %v1650 = vsel %vm1647, %v1633, %v755
      %v1651 = vsel %vm1647, %v1634, %v757
      %v1652 = vsel %vm1647, %v1635, %v759
      %v1653 = vsel %vm1647, %v1636, %v761
      %v1654 = vsel %vm1647, %v1637, %v763
      %v1655 = vsel %vm1647, %v1638, %v765
      %v1656 = vsel %vm1647, %v1639, %v767
      %v1657 = vsel %vm1647, %v1640, %v769
      %v1658 = vsel %vm1647, %v1641, %v771
      %v1659 = vsel %vm1647, %v1642, %v773
      %v1660 = vsel %vm1647, %v1643, %v775
      %v1661 = vsel %vm1647, %v1644, %v777
      %v1662 = vsel %vm1647, %v1645, %v779
      %v1663 = vsel %vm1647, %v1646, %v781
      %vm1664 = vcmask 195584
      %v1665 = vsel %vm1664, %v1648, %v815
      %v1666 = vsel %vm1664, %v1649, %v817
      %v1667 = vsel %vm1664, %v1650, %v819
      %v1668 = vsel %vm1664, %v1651, %v821
      %v1669 = vsel %vm1664, %v1652, %v823
      %v1670 = vsel %vm1664, %v1653, %v825
      %v1671 = vsel %vm1664, %v1654, %v827
      %v1672 = vsel %vm1664, %v1655, %v829
      %v1673 = vsel %vm1664, %v1656, %v831
      %v1674 = vsel %vm1664, %v1657, %v833
      %v1675 = vsel %vm1664, %v1658, %v835
      %v1676 = vsel %vm1664, %v1659, %v837
      %v1677 = vsel %vm1664, %v1660, %v839
      %v1678 = vsel %vm1664, %v1661, %v841
      %v1679 = vsel %vm1664, %v1662, %v843
      %v1680 = vsel %vm1664, %v1663, %v845
      %vm1681 = vcmask 261120
      %v1682 = vsel %vm1681, %v1665, %v879
      %v1683 = vsel %vm1681, %v1666, %v881
      %v1684 = vsel %vm1681, %v1667, %v883
      %v1685 = vsel %vm1681, %v1668, %v885
      %v1686 = vsel %vm1681, %v1669, %v887
      %v1687 = vsel %vm1681, %v1670, %v889
      %v1688 = vsel %vm1681, %v1671, %v891
      %v1689 = vsel %vm1681, %v1672, %v893
      %v1690 = vsel %vm1681, %v1673, %v895
      %v1691 = vsel %vm1681, %v1674, %v897
      %v1692 = vsel %vm1681, %v1675, %v899
      %v1693 = vsel %vm1681, %v1676, %v901
      %v1694 = vsel %vm1681, %v1677, %v903
      %v1695 = vsel %vm1681, %v1678, %v905
      %v1696 = vsel %vm1681, %v1679, %v907
      %v1697 = vsel %vm1681, %v1680, %v909
      %vm1698 = vcmask 326656
      %v1699 = vsel %vm1698, %v1682, %v943
      %v1700 = vsel %vm1698, %v1683, %v945
      %v1701 = vsel %vm1698, %v1684, %v947
      %v1702 = vsel %vm1698, %v1685, %v949
      %v1703 = vsel %vm1698, %v1686, %v951
      %v1704 = vsel %vm1698, %v1687, %v953
      %v1705 = vsel %vm1698, %v1688, %v955
      %v1706 = vsel %vm1698, %v1689, %v957
      %v1707 = vsel %vm1698, %v1690, %v959
      %v1708 = vsel %vm1698, %v1691, %v961
      %v1709 = vsel %vm1698, %v1692, %v963
      %v1710 = vsel %vm1698, %v1693, %v965
      %v1711 = vsel %vm1698, %v1694, %v967
      %v1712 = vsel %vm1698, %v1695, %v969
      %v1713 = vsel %vm1698, %v1696, %v971
      %v1714 = vsel %vm1698, %v1697, %v973
      %vm1715 = vcmask 392192
      %v1716 = vsel %vm1715, %v1699, %v1007
      %v1717 = vsel %vm1715, %v1700, %v1009
      %v1718 = vsel %vm1715, %v1701, %v1011
      %v1719 = vsel %vm1715, %v1702, %v1013
      %v1720 = vsel %vm1715, %v1703, %v1015
      %v1721 = vsel %vm1715, %v1704, %v1017
      %v1722 = vsel %vm1715, %v1705, %v1019
      %v1723 = vsel %vm1715, %v1706, %v1021
      %v1724 = vsel %vm1715, %v1707, %v1023
      %v1725 = vsel %vm1715, %v1708, %v1025
      %v1726 = vsel %vm1715, %v1709, %v1027
      %v1727 = vsel %vm1715, %v1710, %v1029
      %v1728 = vsel %vm1715, %v1711, %v1031
      %v1729 = vsel %vm1715, %v1712, %v1033
      %v1730 = vsel %vm1715, %v1713, %v1035
      %v1731 = vsel %vm1715, %v1714, %v1037
      %vm1732 = vcmask 457728
      %v1733 = vsel %vm1732, %v1716, %v1071
      %v1734 = vsel %vm1732, %v1717, %v1073
      %v1735 = vsel %vm1732, %v1718, %v1075
      %v1736 = vsel %vm1732, %v1719, %v1077
      %v1737 = vsel %vm1732, %v1720, %v1079
      %v1738 = vsel %vm1732, %v1721, %v1081
      %v1739 = vsel %vm1732, %v1722, %v1083
      %v1740 = vsel %vm1732, %v1723, %v1085
      %v1741 = vsel %vm1732, %v1724, %v1087
      %v1742 = vsel %vm1732, %v1725, %v1089
      %v1743 = vsel %vm1732, %v1726, %v1091
      %v1744 = vsel %vm1732, %v1727, %v1093
      %v1745 = vsel %vm1732, %v1728, %v1095
      %v1746 = vsel %vm1732, %v1729, %v1097
      %v1747 = vsel %vm1732, %v1730, %v1099
      %v1748 = vsel %vm1732, %v1731, %v1101
      %vm1749 = vcmask 523264
      %v1750 = vsel %vm1749, %v1733, %v1135
      %v1751 = vsel %vm1749, %v1734, %v1137
      %v1752 = vsel %vm1749, %v1735, %v1139
      %v1753 = vsel %vm1749, %v1736, %v1141
      %v1754 = vsel %vm1749, %v1737, %v1143
      %v1755 = vsel %vm1749, %v1738, %v1145
      %v1756 = vsel %vm1749, %v1739, %v1147
      %v1757 = vsel %vm1749, %v1740, %v1149
      %v1758 = vsel %vm1749, %v1741, %v1151
      %v1759 = vsel %vm1749, %v1742, %v1153
      %v1760 = vsel %vm1749, %v1743, %v1155
      %v1761 = vsel %vm1749, %v1744, %v1157
      %v1762 = vsel %vm1749, %v1745, %v1159
      %v1763 = vsel %vm1749, %v1746, %v1161
      %v1764 = vsel %vm1749, %v1747, %v1163
      %v1765 = vsel %vm1749, %v1748, %v1165
      %vm1766 = vcmask 588800
      %v1767 = vsel %vm1766, %v1750, %v1199
      %v1768 = vsel %vm1766, %v1751, %v1201
      %v1769 = vsel %vm1766, %v1752, %v1203
      %v1770 = vsel %vm1766, %v1753, %v1205
      %v1771 = vsel %vm1766, %v1754, %v1207
      %v1772 = vsel %vm1766, %v1755, %v1209
      %v1773 = vsel %vm1766, %v1756, %v1211
      %v1774 = vsel %vm1766, %v1757, %v1213
      %v1775 = vsel %vm1766, %v1758, %v1215
      %v1776 = vsel %vm1766, %v1759, %v1217
      %v1777 = vsel %vm1766, %v1760, %v1219
      %v1778 = vsel %vm1766, %v1761, %v1221
      %v1779 = vsel %vm1766, %v1762, %v1223
      %v1780 = vsel %vm1766, %v1763, %v1225
      %v1781 = vsel %vm1766, %v1764, %v1227
      %v1782 = vsel %vm1766, %v1765, %v1229
      %vm1783 = vcmask 654336
      %v1784 = vsel %vm1783, %v1767, %v1263
      %v1785 = vsel %vm1783, %v1768, %v1265
      %v1786 = vsel %vm1783, %v1769, %v1267
      %v1787 = vsel %vm1783, %v1770, %v1269
      %v1788 = vsel %vm1783, %v1771, %v1271
      %v1789 = vsel %vm1783, %v1772, %v1273
      %v1790 = vsel %vm1783, %v1773, %v1275
      %v1791 = vsel %vm1783, %v1774, %v1277
      %v1792 = vsel %vm1783, %v1775, %v1279
      %v1793 = vsel %vm1783, %v1776, %v1281
      %v1794 = vsel %vm1783, %v1777, %v1283
      %v1795 = vsel %vm1783, %v1778, %v1285
      %v1796 = vsel %vm1783, %v1779, %v1287
      %v1797 = vsel %vm1783, %v1780, %v1289
      %v1798 = vsel %vm1783, %v1781, %v1291
      %v1799 = vsel %vm1783, %v1782, %v1293
      %vm1800 = vcmask 719872
      %v1801 = vsel %vm1800, %v1784, %v1327
      %v1802 = vsel %vm1800, %v1785, %v1329
      %v1803 = vsel %vm1800, %v1786, %v1331
      %v1804 = vsel %vm1800, %v1787, %v1333
      %v1805 = vsel %vm1800, %v1788, %v1335
      %v1806 = vsel %vm1800, %v1789, %v1337
      %v1807 = vsel %vm1800, %v1790, %v1339
      %v1808 = vsel %vm1800, %v1791, %v1341
      %v1809 = vsel %vm1800, %v1792, %v1343
      %v1810 = vsel %vm1800, %v1793, %v1345
      %v1811 = vsel %vm1800, %v1794, %v1347
      %v1812 = vsel %vm1800, %v1795, %v1349
      %v1813 = vsel %vm1800, %v1796, %v1351
      %v1814 = vsel %vm1800, %v1797, %v1353
      %v1815 = vsel %vm1800, %v1798, %v1355
      %v1816 = vsel %vm1800, %v1799, %v1357
      %vm1817 = vcmask 785408
      %v1818 = vsel %vm1817, %v1801, %v1391
      %v1819 = vsel %vm1817, %v1802, %v1393
      %v1820 = vsel %vm1817, %v1803, %v1395
      %v1821 = vsel %vm1817, %v1804, %v1397
      %v1822 = vsel %vm1817, %v1805, %v1399
      %v1823 = vsel %vm1817, %v1806, %v1401
      %v1824 = vsel %vm1817, %v1807, %v1403
      %v1825 = vsel %vm1817, %v1808, %v1405
      %v1826 = vsel %vm1817, %v1809, %v1407
      %v1827 = vsel %vm1817, %v1810, %v1409
      %v1828 = vsel %vm1817, %v1811, %v1411
      %v1829 = vsel %vm1817, %v1812, %v1413
      %v1830 = vsel %vm1817, %v1813, %v1415
      %v1831 = vsel %vm1817, %v1814, %v1417
      %v1832 = vsel %vm1817, %v1815, %v1419
      %v1833 = vsel %vm1817, %v1816, %v1421
      %vm1834 = vcmask 850944
      %v1835 = vsel %vm1834, %v1818, %v1455
      %v1836 = vsel %vm1834, %v1819, %v1457
      %v1837 = vsel %vm1834, %v1820, %v1459
      %v1838 = vsel %vm1834, %v1821, %v1461
      %v1839 = vsel %vm1834, %v1822, %v1463
      %v1840 = vsel %vm1834, %v1823, %v1465
      %v1841 = vsel %vm1834, %v1824, %v1467
      %v1842 = vsel %vm1834, %v1825, %v1469
      %v1843 = vsel %vm1834, %v1826, %v1471
      %v1844 = vsel %vm1834, %v1827, %v1473
      %v1845 = vsel %vm1834, %v1828, %v1475
      %v1846 = vsel %vm1834, %v1829, %v1477
      %v1847 = vsel %vm1834, %v1830, %v1479
      %v1848 = vsel %vm1834, %v1831, %v1481
      %v1849 = vsel %vm1834, %v1832, %v1483
      %v1850 = vsel %vm1834, %v1833, %v1485
      %vm1851 = vcmask 916480
      %v1852 = vsel %vm1851, %v1835, %v1519
      %v1853 = vsel %vm1851, %v1836, %v1521
      %v1854 = vsel %vm1851, %v1837, %v1523
      %v1855 = vsel %vm1851, %v1838, %v1525
      %v1856 = vsel %vm1851, %v1839, %v1527
      %v1857 = vsel %vm1851, %v1840, %v1529
      %v1858 = vsel %vm1851, %v1841, %v1531
      %v1859 = vsel %vm1851, %v1842, %v1533
      %v1860 = vsel %vm1851, %v1843, %v1535
      %v1861 = vsel %vm1851, %v1844, %v1537
      %v1862 = vsel %vm1851, %v1845, %v1539
      %v1863 = vsel %vm1851, %v1846, %v1541
      %v1864 = vsel %vm1851, %v1847, %v1543
      %v1865 = vsel %vm1851, %v1848, %v1545
      %v1866 = vsel %vm1851, %v1849, %v1547
      %v1867 = vsel %vm1851, %v1850, %v1549
      %vm1868 = vcmask 982016
      %v1869 = vsel %vm1868, %v1852, %v1583
      %v1870 = vsel %vm1868, %v1853, %v1585
      %v1871 = vsel %vm1868, %v1854, %v1587
      %v1872 = vsel %vm1868, %v1855, %v1589
      %v1873 = vsel %vm1868, %v1856, %v1591
      %v1874 = vsel %vm1868, %v1857, %v1593
      %v1875 = vsel %vm1868, %v1858, %v1595
      %v1876 = vsel %vm1868, %v1859, %v1597
      %v1877 = vsel %vm1868, %v1860, %v1599
      %v1878 = vsel %vm1868, %v1861, %v1601
      %v1879 = vsel %vm1868, %v1862, %v1603
      %v1880 = vsel %vm1868, %v1863, %v1605
      %v1881 = vsel %vm1868, %v1864, %v1607
      %v1882 = vsel %vm1868, %v1865, %v1609
      %v1883 = vsel %vm1868, %v1866, %v1611
      %v1884 = vsel %vm1868, %v1867, %v1613
      %1901 = vrot.lane.b32.xlu0 %v503, 8
      %v1902 = vpop.permute.xlu0 %1901
      %1903 = vrot.lane.b32.xlu0 %v504, 8
      %v1904 = vpop.permute.xlu0 %1903
      %1905 = vrot.lane.b32.xlu0 %v505, 8
      %v1906 = vpop.permute.xlu0 %1905
      %1907 = vrot.lane.b32.xlu0 %v506, 8
      %v1908 = vpop.permute.xlu0 %1907
      %1909 = vrot.lane.b32.xlu0 %v507, 8
      %v1910 = vpop.permute.xlu0 %1909
      %1911 = vrot.lane.b32.xlu0 %v508, 8
      %v1912 = vpop.permute.xlu0 %1911
      %1913 = vrot.lane.b32.xlu0 %v509, 8
      %v1914 = vpop.permute.xlu0 %1913
      %1915 = vrot.lane.b32.xlu0 %v510, 8
      %v1916 = vpop.permute.xlu0 %1915
      %1917 = vrot.lane.b32.xlu0 %v511, 8
      %v1918 = vpop.permute.xlu0 %1917
      %1919 = vrot.lane.b32.xlu0 %v512, 8
      %v1920 = vpop.permute.xlu0 %1919
      %1921 = vrot.lane.b32.xlu0 %v513, 8
      %v1922 = vpop.permute.xlu0 %1921
      %1923 = vrot.lane.b32.xlu0 %v514, 8
      %v1924 = vpop.permute.xlu0 %1923
      %1925 = vrot.lane.b32.xlu0 %v515, 8
      %v1926 = vpop.permute.xlu0 %1925
      %1927 = vrot.lane.b32.xlu0 %v516, 8
      %v1928 = vpop.permute.xlu0 %1927
      %1929 = vrot.lane.b32.xlu0 %v517, 8
      %v1930 = vpop.permute.xlu0 %1929
      %1931 = vrot.lane.b32.xlu0 %v518, 8
      %v1932 = vpop.permute.xlu0 %1931
      %1965 = vrot.lane.b32.xlu0 %v522, 16
      %v1966 = vpop.permute.xlu0 %1965
      %1967 = vrot.lane.b32.xlu0 %v523, 16
      %v1968 = vpop.permute.xlu0 %1967
      %1969 = vrot.lane.b32.xlu0 %v524, 16
      %v1970 = vpop.permute.xlu0 %1969
      %1971 = vrot.lane.b32.xlu0 %v525, 16
      %v1972 = vpop.permute.xlu0 %1971
      %1973 = vrot.lane.b32.xlu0 %v526, 16
      %v1974 = vpop.permute.xlu0 %1973
      %1975 = vrot.lane.b32.xlu0 %v527, 16
      %v1976 = vpop.permute.xlu0 %1975
      %1977 = vrot.lane.b32.xlu0 %v528, 16
      %v1978 = vpop.permute.xlu0 %1977
      %1979 = vrot.lane.b32.xlu0 %v529, 16
      %v1980 = vpop.permute.xlu0 %1979
      %1981 = vrot.lane.b32.xlu0 %v530, 16
      %v1982 = vpop.permute.xlu0 %1981
      %1983 = vrot.lane.b32.xlu0 %v531, 16
      %v1984 = vpop.permute.xlu0 %1983
      %1985 = vrot.lane.b32.xlu0 %v532, 16
      %v1986 = vpop.permute.xlu0 %1985
      %1987 = vrot.lane.b32.xlu0 %v533, 16
      %v1988 = vpop.permute.xlu0 %1987
      %1989 = vrot.lane.b32.xlu0 %v534, 16
      %v1990 = vpop.permute.xlu0 %1989
      %1991 = vrot.lane.b32.xlu0 %v535, 16
      %v1992 = vpop.permute.xlu0 %1991
      %1993 = vrot.lane.b32.xlu0 %v536, 16
      %v1994 = vpop.permute.xlu0 %1993
      %1995 = vrot.lane.b32.xlu0 %v537, 16
      %v1996 = vpop.permute.xlu0 %1995
      %2029 = vrot.lane.b32.xlu0 %v538, 24
      %v2030 = vpop.permute.xlu0 %2029
      %2031 = vrot.lane.b32.xlu0 %v539, 24
      %v2032 = vpop.permute.xlu0 %2031
      %2033 = vrot.lane.b32.xlu0 %v540, 24
      %v2034 = vpop.permute.xlu0 %2033
      %2035 = vrot.lane.b32.xlu0 %v541, 24
      %v2036 = vpop.permute.xlu0 %2035
      %2037 = vrot.lane.b32.xlu0 %v542, 24
      %v2038 = vpop.permute.xlu0 %2037
      %2039 = vrot.lane.b32.xlu0 %v543, 24
      %v2040 = vpop.permute.xlu0 %2039
      %2041 = vrot.lane.b32.xlu0 %v544, 24
      %v2042 = vpop.permute.xlu0 %2041
      %2043 = vrot.lane.b32.xlu0 %v545, 24
      %v2044 = vpop.permute.xlu0 %2043
      %2045 = vrot.lane.b32.xlu0 %v546, 24
      %v2046 = vpop.permute.xlu0 %2045
      %2047 = vrot.lane.b32.xlu0 %v547, 24
      %v2048 = vpop.permute.xlu0 %2047
      %2049 = vrot.lane.b32.xlu0 %v548, 24
      %v2050 = vpop.permute.xlu0 %2049
      %2051 = vrot.lane.b32.xlu0 %v549, 24
      %v2052 = vpop.permute.xlu0 %2051
      %2053 = vrot.lane.b32.xlu0 %v550, 24
      %v2054 = vpop.permute.xlu0 %2053
      %2055 = vrot.lane.b32.xlu0 %v551, 24
      %v2056 = vpop.permute.xlu0 %2055
      %2057 = vrot.lane.b32.xlu0 %v552, 24
      %v2058 = vpop.permute.xlu0 %2057
      %2059 = vrot.lane.b32.xlu0 %v553, 24
      %v2060 = vpop.permute.xlu0 %2059
      %2093 = vrot.lane.b32.xlu0 %v554, 32
      %v2094 = vpop.permute.xlu0 %2093
      %2095 = vrot.lane.b32.xlu0 %v555, 32
      %v2096 = vpop.permute.xlu0 %2095
      %2097 = vrot.lane.b32.xlu0 %v556, 32
      %v2098 = vpop.permute.xlu0 %2097
      %2099 = vrot.lane.b32.xlu0 %v557, 32
      %v2100 = vpop.permute.xlu0 %2099
      %2101 = vrot.lane.b32.xlu0 %v558, 32
      %v2102 = vpop.permute.xlu0 %2101
      %2103 = vrot.lane.b32.xlu0 %v559, 32
      %v2104 = vpop.permute.xlu0 %2103
      %2105 = vrot.lane.b32.xlu0 %v560, 32
      %v2106 = vpop.permute.xlu0 %2105
      %2107 = vrot.lane.b32.xlu0 %v561, 32
      %v2108 = vpop.permute.xlu0 %2107
      %2109 = vrot.lane.b32.xlu0 %v562, 32
      %v2110 = vpop.permute.xlu0 %2109
      %2111 = vrot.lane.b32.xlu0 %v563, 32
      %v2112 = vpop.permute.xlu0 %2111
      %2113 = vrot.lane.b32.xlu0 %v564, 32
      %v2114 = vpop.permute.xlu0 %2113
      %2115 = vrot.lane.b32.xlu0 %v565, 32
      %v2116 = vpop.permute.xlu0 %2115
      %2117 = vrot.lane.b32.xlu0 %v566, 32
      %v2118 = vpop.permute.xlu0 %2117
      %2119 = vrot.lane.b32.xlu0 %v567, 32
      %v2120 = vpop.permute.xlu0 %2119
      %2121 = vrot.lane.b32.xlu0 %v568, 32
      %v2122 = vpop.permute.xlu0 %2121
      %2123 = vrot.lane.b32.xlu0 %v569, 32
      %v2124 = vpop.permute.xlu0 %2123
      %2157 = vrot.lane.b32.xlu0 %v572, 40
      %v2158 = vpop.permute.xlu0 %2157
      %2159 = vrot.lane.b32.xlu0 %v573, 40
      %v2160 = vpop.permute.xlu0 %2159
      %2161 = vrot.lane.b32.xlu0 %v574, 40
      %v2162 = vpop.permute.xlu0 %2161
      %2163 = vrot.lane.b32.xlu0 %v575, 40
      %v2164 = vpop.permute.xlu0 %2163
      %2165 = vrot.lane.b32.xlu0 %v576, 40
      %v2166 = vpop.permute.xlu0 %2165
      %2167 = vrot.lane.b32.xlu0 %v577, 40
      %v2168 = vpop.permute.xlu0 %2167
      %2169 = vrot.lane.b32.xlu0 %v578, 40
      %v2170 = vpop.permute.xlu0 %2169
      %2171 = vrot.lane.b32.xlu0 %v579, 40
      %v2172 = vpop.permute.xlu0 %2171
      %2173 = vrot.lane.b32.xlu0 %v580, 40
      %v2174 = vpop.permute.xlu0 %2173
      %2175 = vrot.lane.b32.xlu0 %v581, 40
      %v2176 = vpop.permute.xlu0 %2175
      %2177 = vrot.lane.b32.xlu0 %v582, 40
      %v2178 = vpop.permute.xlu0 %2177
      %2179 = vrot.lane.b32.xlu0 %v583, 40
      %v2180 = vpop.permute.xlu0 %2179
      %2181 = vrot.lane.b32.xlu0 %v584, 40
      %v2182 = vpop.permute.xlu0 %2181
      %2183 = vrot.lane.b32.xlu0 %v585, 40
      %v2184 = vpop.permute.xlu0 %2183
      %2185 = vrot.lane.b32.xlu0 %v586, 40
      %v2186 = vpop.permute.xlu0 %2185
      %2187 = vrot.lane.b32.xlu0 %v587, 40
      %v2188 = vpop.permute.xlu0 %2187
      %2221 = vrot.lane.b32.xlu0 %v588, 48
      %v2222 = vpop.permute.xlu0 %2221
      %2223 = vrot.lane.b32.xlu0 %v589, 48
      %v2224 = vpop.permute.xlu0 %2223
      %2225 = vrot.lane.b32.xlu0 %v590, 48
      %v2226 = vpop.permute.xlu0 %2225
      %2227 = vrot.lane.b32.xlu0 %v591, 48
      %v2228 = vpop.permute.xlu0 %2227
      %2229 = vrot.lane.b32.xlu0 %v592, 48
      %v2230 = vpop.permute.xlu0 %2229
      %2231 = vrot.lane.b32.xlu0 %v593, 48
      %v2232 = vpop.permute.xlu0 %2231
      %2233 = vrot.lane.b32.xlu0 %v594, 48
      %v2234 = vpop.permute.xlu0 %2233
      %2235 = vrot.lane.b32.xlu0 %v595, 48
      %v2236 = vpop.permute.xlu0 %2235
      %2237 = vrot.lane.b32.xlu0 %v596, 48
      %v2238 = vpop.permute.xlu0 %2237
      %2239 = vrot.lane.b32.xlu0 %v597, 48
      %v2240 = vpop.permute.xlu0 %2239
      %2241 = vrot.lane.b32.xlu0 %v598, 48
      %v2242 = vpop.permute.xlu0 %2241
      %2243 = vrot.lane.b32.xlu0 %v599, 48
      %v2244 = vpop.permute.xlu0 %2243
      %2245 = vrot.lane.b32.xlu0 %v600, 48
      %v2246 = vpop.permute.xlu0 %2245
      %2247 = vrot.lane.b32.xlu0 %v601, 48
      %v2248 = vpop.permute.xlu0 %2247
      %2249 = vrot.lane.b32.xlu0 %v602, 48
      %v2250 = vpop.permute.xlu0 %2249
      %2251 = vrot.lane.b32.xlu0 %v603, 48
      %v2252 = vpop.permute.xlu0 %2251
      %2285 = vrot.lane.b32.xlu0 %v604, 56
      %v2286 = vpop.permute.xlu0 %2285
      %2287 = vrot.lane.b32.xlu0 %v605, 56
      %v2288 = vpop.permute.xlu0 %2287
      %2289 = vrot.lane.b32.xlu0 %v606, 56
      %v2290 = vpop.permute.xlu0 %2289
      %2291 = vrot.lane.b32.xlu0 %v607, 56
      %v2292 = vpop.permute.xlu0 %2291
      %2293 = vrot.lane.b32.xlu0 %v608, 56
      %v2294 = vpop.permute.xlu0 %2293
      %2295 = vrot.lane.b32.xlu0 %v609, 56
      %v2296 = vpop.permute.xlu0 %2295
      %2297 = vrot.lane.b32.xlu0 %v610, 56
      %v2298 = vpop.permute.xlu0 %2297
      %2299 = vrot.lane.b32.xlu0 %v611, 56
      %v2300 = vpop.permute.xlu0 %2299
      %2301 = vrot.lane.b32.xlu0 %v612, 56
      %v2302 = vpop.permute.xlu0 %2301
      %2303 = vrot.lane.b32.xlu0 %v613, 56
      %v2304 = vpop.permute.xlu0 %2303
      %2305 = vrot.lane.b32.xlu0 %v614, 56
      %v2306 = vpop.permute.xlu0 %2305
      %2307 = vrot.lane.b32.xlu0 %v615, 56
      %v2308 = vpop.permute.xlu0 %2307
      %2309 = vrot.lane.b32.xlu0 %v616, 56
      %v2310 = vpop.permute.xlu0 %2309
      %2311 = vrot.lane.b32.xlu0 %v617, 56
      %v2312 = vpop.permute.xlu0 %2311
      %2313 = vrot.lane.b32.xlu0 %v618, 56
      %v2314 = vpop.permute.xlu0 %2313
      %2315 = vrot.lane.b32.xlu0 %v619, 56
      %v2316 = vpop.permute.xlu0 %2315
      %2349 = vrot.lane.b32.xlu0 %v622, 64
      %v2350 = vpop.permute.xlu0 %2349
      %2351 = vrot.lane.b32.xlu0 %v623, 64
      %v2352 = vpop.permute.xlu0 %2351
      %2353 = vrot.lane.b32.xlu0 %v624, 64
      %v2354 = vpop.permute.xlu0 %2353
      %2355 = vrot.lane.b32.xlu0 %v625, 64
      %v2356 = vpop.permute.xlu0 %2355
      %2357 = vrot.lane.b32.xlu0 %v626, 64
      %v2358 = vpop.permute.xlu0 %2357
      %2359 = vrot.lane.b32.xlu0 %v627, 64
      %v2360 = vpop.permute.xlu0 %2359
      %2361 = vrot.lane.b32.xlu0 %v628, 64
      %v2362 = vpop.permute.xlu0 %2361
      %2363 = vrot.lane.b32.xlu0 %v629, 64
      %v2364 = vpop.permute.xlu0 %2363
      %2365 = vrot.lane.b32.xlu0 %v630, 64
      %v2366 = vpop.permute.xlu0 %2365
      %2367 = vrot.lane.b32.xlu0 %v631, 64
      %v2368 = vpop.permute.xlu0 %2367
      %2369 = vrot.lane.b32.xlu0 %v632, 64
      %v2370 = vpop.permute.xlu0 %2369
      %2371 = vrot.lane.b32.xlu0 %v633, 64
      %v2372 = vpop.permute.xlu0 %2371
      %2373 = vrot.lane.b32.xlu0 %v634, 64
      %v2374 = vpop.permute.xlu0 %2373
      %2375 = vrot.lane.b32.xlu0 %v635, 64
      %v2376 = vpop.permute.xlu0 %2375
      %2377 = vrot.lane.b32.xlu0 %v636, 64
      %v2378 = vpop.permute.xlu0 %2377
      %2379 = vrot.lane.b32.xlu0 %v637, 64
      %v2380 = vpop.permute.xlu0 %2379
      %2413 = vrot.lane.b32.xlu0 %v638, 72
      %v2414 = vpop.permute.xlu0 %2413
      %2415 = vrot.lane.b32.xlu0 %v639, 72
      %v2416 = vpop.permute.xlu0 %2415
      %2417 = vrot.lane.b32.xlu0 %v640, 72
      %v2418 = vpop.permute.xlu0 %2417
      %2419 = vrot.lane.b32.xlu0 %v641, 72
      %v2420 = vpop.permute.xlu0 %2419
      %2421 = vrot.lane.b32.xlu0 %v642, 72
      %v2422 = vpop.permute.xlu0 %2421
      %2423 = vrot.lane.b32.xlu0 %v643, 72
      %v2424 = vpop.permute.xlu0 %2423
      %2425 = vrot.lane.b32.xlu0 %v644, 72
      %v2426 = vpop.permute.xlu0 %2425
      %2427 = vrot.lane.b32.xlu0 %v645, 72
      %v2428 = vpop.permute.xlu0 %2427
      %2429 = vrot.lane.b32.xlu0 %v646, 72
      %v2430 = vpop.permute.xlu0 %2429
      %2431 = vrot.lane.b32.xlu0 %v647, 72
      %v2432 = vpop.permute.xlu0 %2431
      %2433 = vrot.lane.b32.xlu0 %v648, 72
      %v2434 = vpop.permute.xlu0 %2433
      %2435 = vrot.lane.b32.xlu0 %v649, 72
      %v2436 = vpop.permute.xlu0 %2435
      %2437 = vrot.lane.b32.xlu0 %v650, 72
      %v2438 = vpop.permute.xlu0 %2437
      %2439 = vrot.lane.b32.xlu0 %v651, 72
      %v2440 = vpop.permute.xlu0 %2439
      %2441 = vrot.lane.b32.xlu0 %v652, 72
      %v2442 = vpop.permute.xlu0 %2441
      %2443 = vrot.lane.b32.xlu0 %v653, 72
      %v2444 = vpop.permute.xlu0 %2443
      %2477 = vrot.lane.b32.xlu0 %v654, 80
      %v2478 = vpop.permute.xlu0 %2477
      %2479 = vrot.lane.b32.xlu0 %v655, 80
      %v2480 = vpop.permute.xlu0 %2479
      %2481 = vrot.lane.b32.xlu0 %v656, 80
      %v2482 = vpop.permute.xlu0 %2481
      %2483 = vrot.lane.b32.xlu0 %v657, 80
      %v2484 = vpop.permute.xlu0 %2483
      %2485 = vrot.lane.b32.xlu0 %v658, 80
      %v2486 = vpop.permute.xlu0 %2485
      %2487 = vrot.lane.b32.xlu0 %v659, 80
      %v2488 = vpop.permute.xlu0 %2487
      %2489 = vrot.lane.b32.xlu0 %v660, 80
      %v2490 = vpop.permute.xlu0 %2489
      %2491 = vrot.lane.b32.xlu0 %v661, 80
      %v2492 = vpop.permute.xlu0 %2491
      %2493 = vrot.lane.b32.xlu0 %v662, 80
      %v2494 = vpop.permute.xlu0 %2493
      %2495 = vrot.lane.b32.xlu0 %v663, 80
      %v2496 = vpop.permute.xlu0 %2495
      %2497 = vrot.lane.b32.xlu0 %v664, 80
      %v2498 = vpop.permute.xlu0 %2497
      %2499 = vrot.lane.b32.xlu0 %v665, 80
      %v2500 = vpop.permute.xlu0 %2499
      %2501 = vrot.lane.b32.xlu0 %v666, 80
      %v2502 = vpop.permute.xlu0 %2501
      %2503 = vrot.lane.b32.xlu0 %v667, 80
      %v2504 = vpop.permute.xlu0 %2503
      %2505 = vrot.lane.b32.xlu0 %v668, 80
      %v2506 = vpop.permute.xlu0 %2505
      %2507 = vrot.lane.b32.xlu0 %v669, 80
      %v2508 = vpop.permute.xlu0 %2507
      %v2525 = vsel %vm1630, %v487, %v1902
      %v2526 = vsel %vm1630, %v488, %v1904
      %v2527 = vsel %vm1630, %v489, %v1906
      %v2528 = vsel %vm1630, %v490, %v1908
      %v2529 = vsel %vm1630, %v491, %v1910
      %v2530 = vsel %vm1630, %v492, %v1912
      %v2531 = vsel %vm1630, %v493, %v1914
      %v2532 = vsel %vm1630, %v494, %v1916
      %v2533 = vsel %vm1630, %v495, %v1918
      %v2534 = vsel %vm1630, %v496, %v1920
      %v2535 = vsel %vm1630, %v497, %v1922
      %v2536 = vsel %vm1630, %v498, %v1924
      %v2537 = vsel %vm1630, %v499, %v1926
      %v2538 = vsel %vm1630, %v500, %v1928
      %v2539 = vsel %vm1630, %v501, %v1930
      %v2540 = vsel %vm1630, %v502, %v1932
      %v2541 = vsel %vm1647, %v2525, %v1966
      %v2542 = vsel %vm1647, %v2526, %v1968
      %v2543 = vsel %vm1647, %v2527, %v1970
      %v2544 = vsel %vm1647, %v2528, %v1972
      %v2545 = vsel %vm1647, %v2529, %v1974
      %v2546 = vsel %vm1647, %v2530, %v1976
      %v2547 = vsel %vm1647, %v2531, %v1978
      %v2548 = vsel %vm1647, %v2532, %v1980
      %v2549 = vsel %vm1647, %v2533, %v1982
      %v2550 = vsel %vm1647, %v2534, %v1984
      %v2551 = vsel %vm1647, %v2535, %v1986
      %v2552 = vsel %vm1647, %v2536, %v1988
      %v2553 = vsel %vm1647, %v2537, %v1990
      %v2554 = vsel %vm1647, %v2538, %v1992
      %v2555 = vsel %vm1647, %v2539, %v1994
      %v2556 = vsel %vm1647, %v2540, %v1996
      %v2557 = vsel %vm1664, %v2541, %v2030
      %v2558 = vsel %vm1664, %v2542, %v2032
      %v2559 = vsel %vm1664, %v2543, %v2034
      %v2560 = vsel %vm1664, %v2544, %v2036
      %v2561 = vsel %vm1664, %v2545, %v2038
      %v2562 = vsel %vm1664, %v2546, %v2040
      %v2563 = vsel %vm1664, %v2547, %v2042
      %v2564 = vsel %vm1664, %v2548, %v2044
      %v2565 = vsel %vm1664, %v2549, %v2046
      %v2566 = vsel %vm1664, %v2550, %v2048
      %v2567 = vsel %vm1664, %v2551, %v2050
      %v2568 = vsel %vm1664, %v2552, %v2052
      %v2569 = vsel %vm1664, %v2553, %v2054
      %v2570 = vsel %vm1664, %v2554, %v2056
      %v2571 = vsel %vm1664, %v2555, %v2058
      %v2572 = vsel %vm1664, %v2556, %v2060
      %v2573 = vsel %vm1681, %v2557, %v2094
      %v2574 = vsel %vm1681, %v2558, %v2096
      %v2575 = vsel %vm1681, %v2559, %v2098
      %v2576 = vsel %vm1681, %v2560, %v2100
      %v2577 = vsel %vm1681, %v2561, %v2102
      %v2578 = vsel %vm1681, %v2562, %v2104
      %v2579 = vsel %vm1681, %v2563, %v2106
      %v2580 = vsel %vm1681, %v2564, %v2108
      %v2581 = vsel %vm1681, %v2565, %v2110
      %v2582 = vsel %vm1681, %v2566, %v2112
      %v2583 = vsel %vm1681, %v2567, %v2114
      %v2584 = vsel %vm1681, %v2568, %v2116
      %v2585 = vsel %vm1681, %v2569, %v2118
      %v2586 = vsel %vm1681, %v2570, %v2120
      %v2587 = vsel %vm1681, %v2571, %v2122
      %v2588 = vsel %vm1681, %v2572, %v2124
      %v2589 = vsel %vm1698, %v2573, %v2158
      %v2590 = vsel %vm1698, %v2574, %v2160
      %v2591 = vsel %vm1698, %v2575, %v2162
      %v2592 = vsel %vm1698, %v2576, %v2164
      %v2593 = vsel %vm1698, %v2577, %v2166
      %v2594 = vsel %vm1698, %v2578, %v2168
      %v2595 = vsel %vm1698, %v2579, %v2170
      %v2596 = vsel %vm1698, %v2580, %v2172
      %v2597 = vsel %vm1698, %v2581, %v2174
      %v2598 = vsel %vm1698, %v2582, %v2176
      %v2599 = vsel %vm1698, %v2583, %v2178
      %v2600 = vsel %vm1698, %v2584, %v2180
      %v2601 = vsel %vm1698, %v2585, %v2182
      %v2602 = vsel %vm1698, %v2586, %v2184
      %v2603 = vsel %vm1698, %v2587, %v2186
      %v2604 = vsel %vm1698, %v2588, %v2188
      %v2605 = vsel %vm1715, %v2589, %v2222
      %v2606 = vsel %vm1715, %v2590, %v2224
      %v2607 = vsel %vm1715, %v2591, %v2226
      %v2608 = vsel %vm1715, %v2592, %v2228
      %v2609 = vsel %vm1715, %v2593, %v2230
      %v2610 = vsel %vm1715, %v2594, %v2232
      %v2611 = vsel %vm1715, %v2595, %v2234
      %v2612 = vsel %vm1715, %v2596, %v2236
      %v2613 = vsel %vm1715, %v2597, %v2238
      %v2614 = vsel %vm1715, %v2598, %v2240
      %v2615 = vsel %vm1715, %v2599, %v2242
      %v2616 = vsel %vm1715, %v2600, %v2244
      %v2617 = vsel %vm1715, %v2601, %v2246
      %v2618 = vsel %vm1715, %v2602, %v2248
      %v2619 = vsel %vm1715, %v2603, %v2250
      %v2620 = vsel %vm1715, %v2604, %v2252
      %v2621 = vsel %vm1732, %v2605, %v2286
      %v2622 = vsel %vm1732, %v2606, %v2288
      %v2623 = vsel %vm1732, %v2607, %v2290
      %v2624 = vsel %vm1732, %v2608, %v2292
      %v2625 = vsel %vm1732, %v2609, %v2294
      %v2626 = vsel %vm1732, %v2610, %v2296
      %v2627 = vsel %vm1732, %v2611, %v2298
      %v2628 = vsel %vm1732, %v2612, %v2300
      %v2629 = vsel %vm1732, %v2613, %v2302
      %v2630 = vsel %vm1732, %v2614, %v2304
      %v2631 = vsel %vm1732, %v2615, %v2306
      %v2632 = vsel %vm1732, %v2616, %v2308
      %v2633 = vsel %vm1732, %v2617, %v2310
      %v2634 = vsel %vm1732, %v2618, %v2312
      %v2635 = vsel %vm1732, %v2619, %v2314
      %v2636 = vsel %vm1732, %v2620, %v2316
      %v2637 = vsel %vm1749, %v2621, %v2350
      %v2638 = vsel %vm1749, %v2622, %v2352
      %v2639 = vsel %vm1749, %v2623, %v2354
      %v2640 = vsel %vm1749, %v2624, %v2356
      %v2641 = vsel %vm1749, %v2625, %v2358
      %v2642 = vsel %vm1749, %v2626, %v2360
      %v2643 = vsel %vm1749, %v2627, %v2362
      %v2644 = vsel %vm1749, %v2628, %v2364
      %v2645 = vsel %vm1749, %v2629, %v2366
      %v2646 = vsel %vm1749, %v2630, %v2368
      %v2647 = vsel %vm1749, %v2631, %v2370
      %v2648 = vsel %vm1749, %v2632, %v2372
      %v2649 = vsel %vm1749, %v2633, %v2374
      %v2650 = vsel %vm1749, %v2634, %v2376
      %v2651 = vsel %vm1749, %v2635, %v2378
      %v2652 = vsel %vm1749, %v2636, %v2380
      %v2653 = vsel %vm1766, %v2637, %v2414
      %v2654 = vsel %vm1766, %v2638, %v2416
      %v2655 = vsel %vm1766, %v2639, %v2418
      %v2656 = vsel %vm1766, %v2640, %v2420
      %v2657 = vsel %vm1766, %v2641, %v2422
      %v2658 = vsel %vm1766, %v2642, %v2424
      %v2659 = vsel %vm1766, %v2643, %v2426
      %v2660 = vsel %vm1766, %v2644, %v2428
      %v2661 = vsel %vm1766, %v2645, %v2430
      %v2662 = vsel %vm1766, %v2646, %v2432
      %v2663 = vsel %vm1766, %v2647, %v2434
      %v2664 = vsel %vm1766, %v2648, %v2436
      %v2665 = vsel %vm1766, %v2649, %v2438
      %v2666 = vsel %vm1766, %v2650, %v2440
      %v2667 = vsel %vm1766, %v2651, %v2442
      %v2668 = vsel %vm1766, %v2652, %v2444
      %v2669 = vsel %vm1783, %v2653, %v2478
      %v2670 = vsel %vm1783, %v2654, %v2480
      %v2671 = vsel %vm1783, %v2655, %v2482
      %v2672 = vsel %vm1783, %v2656, %v2484
      %v2673 = vsel %vm1783, %v2657, %v2486
      %v2674 = vsel %vm1783, %v2658, %v2488
      %v2675 = vsel %vm1783, %v2659, %v2490
      %v2676 = vsel %vm1783, %v2660, %v2492
      %v2677 = vsel %vm1783, %v2661, %v2494
      %v2678 = vsel %vm1783, %v2662, %v2496
      %v2679 = vsel %vm1783, %v2663, %v2498
      %v2680 = vsel %vm1783, %v2664, %v2500
      %v2681 = vsel %vm1783, %v2665, %v2502
      %v2682 = vsel %vm1783, %v2666, %v2504
      %v2683 = vsel %vm1783, %v2667, %v2506
      %v2684 = vsel %vm1783, %v2668, %v2508
      %v2685 = vld [vmem:[%s1] sm:$0xff]
      %v2686 = vld [vmem:[%s1 + $0x8] sm:$0xff]
      %v2687 = vld [vmem:[%s1 + $0x10] sm:$0xff]
      %v2688 = vld [vmem:[%s1 + $0x18] sm:$0xff]
      %v2689 = vld [vmem:[%s1 + $0x20] sm:$0xff]
      %v2690 = vld [vmem:[%s1 + $0x28] sm:$0xff]
      %v2691 = vld [vmem:[%s1 + $0x30] sm:$0xff]
      %v2692 = vld [vmem:[%s1 + $0x38] sm:$0xff]
      %v2693 = vld [vmem:[%s1 + $0x40] sm:$0xff]
      %v2694 = vld [vmem:[%s1 + $0x48] sm:$0xff]
      %v2695 = vld [vmem:[%s1 + $0x50] sm:$0xff]
      %v2696 = vld [vmem:[%s1 + $0x58] sm:$0xff]
      %v2697 = vld [vmem:[%s1 + $0x60] sm:$0xff]
      %v2698 = vld [vmem:[%s1 + $0x68] sm:$0xff]
      %v2699 = vld [vmem:[%s1 + $0x70] sm:$0xff]
      %v2700 = vld [vmem:[%s1 + $0x78] sm:$0xff]
      %v2701 = vld [vmem:[%s1 + $0x80] sm:$0xff]
      %v2702 = vld [vmem:[%s1 + $0x88] sm:$0xff]
      %v2703 = vld [vmem:[%s1 + $0x90] sm:$0xff]
      %v2704 = vld [vmem:[%s1 + $0x98] sm:$0xff]
      %v2705 = vld [vmem:[%s1 + $0xa0] sm:$0xff]
      %v2706 = vld [vmem:[%s1 + $0xa8] sm:$0xff]
      %v2707 = vld [vmem:[%s1 + $0xb0] sm:$0xff]
      %v2708 = vld [vmem:[%s1 + $0xb8] sm:$0xff]
      %v2709 = vld [vmem:[%s1 + $0xc0] sm:$0xff]
      %v2710 = vld [vmem:[%s1 + $0xc8] sm:$0xff]
      %v2711 = vld [vmem:[%s1 + $0xd0] sm:$0xff]
      %v2713 = vsel %vm1800, %v2669, 0
      %v2716 = vsel %vm1800, %v2670, 0
      %v2719 = vsel %vm1800, %v2671, 0
      %v2722 = vsel %vm1800, %v2672, 0
      %v2725 = vsel %vm1800, %v2673, 0
      %v2728 = vsel %vm1800, %v2674, 0
      %v2731 = vsel %vm1800, %v2675, 0
      %v2734 = vsel %vm1800, %v2676, 0
      %v2737 = vsel %vm1800, %v2677, 0
      %v2740 = vsel %vm1800, %v2678, 0
      %v2743 = vsel %vm1800, %v2679, 0
      %v2746 = vsel %vm1800, %v2680, 0
      %v2749 = vsel %vm1800, %v2681, 0
      %v2752 = vsel %vm1800, %v2682, 0
      %v2755 = vsel %vm1800, %v2683, 0
      %v2758 = vsel %vm1800, %v2684, 0
      %2760 = vmatprep.subr.mxu0 0.0
      %2761 = vmatpush1.msra.mxu0 %v2685
      %2762 = vmatprep.subr.mxu0 0.0
      %2763 = vmatpush1.msra.mxu0 %v2686
      %2764 = vmatprep.subr.mxu0 0.0
      %2765 = vmatpush1.msra.mxu0 %v2687
      %2766 = vmatprep.subr.mxu0 0.0
      %2767 = vmatpush1.msra.mxu0 %v2688
      %2768 = vmatprep.subr.mxu0 0.0
      %2769 = vmatpush1.msra.mxu0 %v2689
      %2770 = vmatprep.subr.mxu0 0.0
      %2771 = vmatpush1.msra.mxu0 %v2690
      %2772 = vmatprep.subr.mxu0 0.0
      %2773 = vmatpush1.msra.mxu0 %v2691
      %2774 = vmatprep.subr.mxu0 0.0
      %2775 = vmatpush1.msra.mxu0 %v2692
      %2776 = vmatprep.subr.mxu0 0.0
      %2777 = vmatpush1.msra.mxu0 %v2693
      %2778 = vmatprep.subr.mxu0 0.0
      %2779 = vmatpush1.msra.mxu0 %v2694
      %2780 = vmatprep.subr.mxu0 0.0
      %2781 = vmatpush1.msra.mxu0 %v2695
      %2782 = vmatprep.subr.mxu0 0.0
      %2783 = vmatpush1.msra.mxu0 %v2696
      %2784 = vmatprep.subr.mxu0 0.0
      %2785 = vmatpush1.msra.mxu0 %v2697
      %2786 = vmatprep.subr.mxu0 0.0
      %2787 = vmatpush1.msra.mxu0 %v2698
      %2788 = vmatprep.subr.mxu0 0.0
      %2789 = vmatpush1.msra.mxu0 %v2699
      %2790 = vmatprep.subr.mxu0 0.0
      %2791 = vmatpush1.msra.mxu0 %v2700
      %2792 = vmatprep.subr.mxu0 0.0
      %2793 = vmatpush1.msra.mxu0 %v2701
      %2794 = vmatprep.subr.mxu0 0.0
      %2795 = vmatpush1.msra.mxu0 %v2702
      %2796 = vmatprep.subr.mxu0 0.0
      %2797 = vmatpush1.msra.mxu0 %v2703
      %2798 = vmatprep.subr.mxu0 0.0
      %2799 = vmatpush1.msra.mxu0 %v2704
      %2800 = vmatprep.subr.mxu0 0.0
      %2801 = vmatpush1.msra.mxu0 %v2705
      %2802 = vmatprep.subr.mxu0 0.0
      %2803 = vmatpush1.msra.mxu0 %v2706
      %2804 = vmatprep.subr.mxu0 0.0
      %2805 = vmatpush1.msra.mxu0 %v2707
      %2806 = vmatprep.subr.mxu0 0.0
      %2807 = vmatpush1.msra.mxu0 %v2708
      %2808 = vmatprep.subr.mxu0 0.0
      %2809 = vmatpush1.msra.mxu0 %v2709
      %2810 = vmatprep.subr.mxu0 0.0
      %2811 = vmatpush1.msra.mxu0 %v2710
      %2812 = vmatprep.subr.mxu0 0.0
      %2813 = vmatpush1.msra.mxu0 %v2711
      %2814 = vmatprep.subr.mxu0 0.0
      %2815 = vmatpush1.msra.mxu0 0.0
      %2816 = vmatprep.subr.mxu0 0.0
      %2817 = vmatpush1.msra.mxu0 0.0
      %2818 = vmatprep.subr.mxu0 0.0
      %2819 = vmatpush1.msra.mxu0 0.0
      %2820 = vmatprep.subr.mxu0 0.0
      %2821 = vmatpush1.msra.mxu0 0.0
      %2822 = vmatprep.subr.mxu0 0.0
      %2823 = vmatpush1.msra.mxu0 0.0
      %2824 = vmatprep.mubr.f32.mxu0 %v2713
      %2825 = vmatmul.mubr.f32.gmra.mrb[0].mxu0 %v1869
      %v2826 = vpop.f32.mrb[0].mxu0
      %v2827 = vadd.f32 0.0, %v2826
      %v2828 = vpop.f32.mrb[0].mxu0
      %2829 = vmatprep.mubr.f32.mxu0 %v2716
      %2830 = vmatmul.mubr.f32.gmra.mrb[0].mxu0 %v1870
      %v2831 = vpop.f32.mrb[0].mxu0
      %v2832 = vadd.f32 0.0, %v2831
      %v2833 = vpop.f32.mrb[0].mxu0
      %2834 = vmatprep.mubr.f32.mxu0 %v2719
      %2835 = vmatmul.mubr.f32.gmra.mrb[0].mxu0 %v1871
      %v2836 = vpop.f32.mrb[0].mxu0
      %v2837 = vadd.f32 0.0, %v2836
      %v2838 = vpop.f32.mrb[0].mxu0
      %2839 = vmatprep.mubr.f32.mxu0 %v2722
      %2840 = vmatmul.mubr.f32.gmra.mrb[0].mxu0 %v1872
      %v2841 = vpop.f32.mrb[0].mxu0
      %v2842 = vadd.f32 0.0, %v2841
      %v2843 = vpop.f32.mrb[0].mxu0
      %2844 = vmatprep.mubr.f32.mxu0 %v2725
      %2845 = vmatmul.mubr.f32.gmra.mrb[0].mxu0 %v1873
      %v2846 = vpop.f32.mrb[0].mxu0
      %v2847 = vadd.f32 0.0, %v2846
      %v2848 = vpop.f32.mrb[0].mxu0
      %2849 = vmatprep.mubr.f32.mxu0 %v2728
      %2850 = vmatmul.mubr.f32.gmra.mrb[0].mxu0 %v1874
      %v2851 = vpop.f32.mrb[0].mxu0
      %v2852 = vadd.f32 0.0, %v2851
      %v2853 = vpop.f32.mrb[0].mxu0
      %2854 = vmatprep.mubr.f32.mxu0 %v2731
      %2855 = vmatmul.mubr.f32.gmra.mrb[0].mxu0 %v1875
      %v2856 = vpop.f32.mrb[0].mxu0
      %v2857 = vadd.f32 0.0, %v2856
      %v2858 = vpop.f32.mrb[0].mxu0
      %2859 = vmatprep.mubr.f32.mxu0 %v2734
      %2860 = vmatmul.mubr.f32.gmra.mrb[0].mxu0 %v1876
      %v2861 = vpop.f32.mrb[0].mxu0
      %v2862 = vadd.f32 0.0, %v2861
      %v2863 = vpop.f32.mrb[0].mxu0
      %2864 = vmatprep.mubr.f32.mxu0 %v2737
      %2865 = vmatmul.mubr.f32.gmra.mrb[0].mxu0 %v1877
      %v2866 = vpop.f32.mrb[0].mxu0
      %v2867 = vadd.f32 0.0, %v2866
      %v2868 = vpop.f32.mrb[0].mxu0
      %2869 = vmatprep.mubr.f32.mxu0 %v2740
      %2870 = vmatmul.mubr.f32.gmra.mrb[0].mxu0 %v1878
      %v2871 = vpop.f32.mrb[0].mxu0
      %v2872 = vadd.f32 0.0, %v2871
      %v2873 = vpop.f32.mrb[0].mxu0
      %2874 = vmatprep.mubr.f32.mxu0 %v2743
      %2875 = vmatmul.mubr.f32.gmra.mrb[0].mxu0 %v1879
      %v2876 = vpop.f32.mrb[0].mxu0
      %v2877 = vadd.f32 0.0, %v2876
      %v2878 = vpop.f32.mrb[0].mxu0
      %2879 = vmatprep.mubr.f32.mxu0 %v2746
      %2880 = vmatmul.mubr.f32.gmra.mrb[0].mxu0 %v1880
      %v2881 = vpop.f32.mrb[0].mxu0
      %v2882 = vadd.f32 0.0, %v2881
      %v2883 = vpop.f32.mrb[0].mxu0
      %2884 = vmatprep.mubr.f32.mxu0 %v2749
      %2885 = vmatmul.mubr.f32.gmra.mrb[0].mxu0 %v1881
      %v2886 = vpop.f32.mrb[0].mxu0
      %v2887 = vadd.f32 0.0, %v2886
      %v2888 = vpop.f32.mrb[0].mxu0
      %2889 = vmatprep.mubr.f32.mxu0 %v2752
      %2890 = vmatmul.mubr.f32.gmra.mrb[0].mxu0 %v1882
      %v2891 = vpop.f32.mrb[0].mxu0
      %v2892 = vadd.f32 0.0, %v2891
      %v2893 = vpop.f32.mrb[0].mxu0
      %2894 = vmatprep.mubr.f32.mxu0 %v2755
      %2895 = vmatmul.mubr.f32.gmra.mrb[0].mxu0 %v1883
      %v2896 = vpop.f32.mrb[0].mxu0
      %v2897 = vadd.f32 0.0, %v2896
      %v2898 = vpop.f32.mrb[0].mxu0
      %2899 = vmatprep.mubr.f32.mxu0 %v2758
      %2900 = vmatmul.mubr.f32.gmra.mrb[0].mxu0 %v1884
      %v2901 = vpop.f32.mrb[0].mxu0
      %v2902 = vadd.f32 0.0, %v2901
      %v2903 = vpop.f32.mrb[0].mxu0
      %2904 = vdwg.mxu0
      %2905 = vst.msk [vmem:[%s207] sm:$0xff] %vm1630, %v2827
      %2906 = vst.msk [vmem:[%s207 + $0x8] sm:$0xff] %vm1630, %v2832
      %2907 = vst.msk [vmem:[%s207 + $0x10] sm:$0xff] %vm1630, %v2837
      %2908 = vst.msk [vmem:[%s207 + $0x18] sm:$0xff] %vm1630, %v2842
      %2909 = vst.msk [vmem:[%s207 + $0x20] sm:$0xff] %vm1630, %v2847
      %2910 = vst.msk [vmem:[%s207 + $0x28] sm:$0xff] %vm1630, %v2852
      %2911 = vst.msk [vmem:[%s207 + $0x30] sm:$0xff] %vm1630, %v2857
      %2912 = vst.msk [vmem:[%s207 + $0x38] sm:$0xff] %vm1630, %v2862
      %2913 = vst.msk [vmem:[%s207 + $0x40] sm:$0xff] %vm1630, %v2867
      %2914 = vst.msk [vmem:[%s207 + $0x48] sm:$0xff] %vm1630, %v2872
      %2915 = vst.msk [vmem:[%s207 + $0x50] sm:$0xff] %vm1630, %v2877
      %2916 = vst.msk [vmem:[%s207 + $0x58] sm:$0xff] %vm1630, %v2882
      %2917 = vst.msk [vmem:[%s207 + $0x60] sm:$0xff] %vm1630, %v2887
      %2918 = vst.msk [vmem:[%s207 + $0x68] sm:$0xff] %vm1630, %v2892
      %2919 = vst.msk [vmem:[%s207 + $0x70] sm:$0xff] %vm1630, %v2897
      %2920 = vst.msk [vmem:[%s207 + $0x78] sm:$0xff] %vm1630, %v2902
      %v2921 = vsel %vm1630, %v2827, 0.0
      %v2922 = vsel %vm1630, %v2832, 0.0
      %v2923 = vadd.f32 %v2921, %v2922
      %v2924 = vsel %vm1630, %v2837, 0.0
      %v2925 = vadd.f32 %v2923, %v2924
      %v2926 = vsel %vm1630, %v2842, 0.0
      %v2927 = vadd.f32 %v2925, %v2926
      %v2928 = vsel %vm1630, %v2847, 0.0
      %v2929 = vadd.f32 %v2927, %v2928
      %v2930 = vsel %vm1630, %v2852, 0.0
      %v2931 = vadd.f32 %v2929, %v2930
      %v2932 = vsel %vm1630, %v2857, 0.0
      %v2933 = vadd.f32 %v2931, %v2932
      %v2934 = vsel %vm1630, %v2862, 0.0
      %v2935 = vadd.f32 %v2933, %v2934
      %v2936 = vsel %vm1630, %v2867, 0.0
      %v2937 = vadd.f32 %v2935, %v2936
      %v2938 = vsel %vm1630, %v2872, 0.0
      %v2939 = vadd.f32 %v2937, %v2938
      %v2940 = vsel %vm1630, %v2877, 0.0
      %v2941 = vadd.f32 %v2939, %v2940
      %v2942 = vsel %vm1630, %v2882, 0.0
      %v2943 = vadd.f32 %v2941, %v2942
      %v2944 = vsel %vm1630, %v2887, 0.0
      %v2945 = vadd.f32 %v2943, %v2944
      %v2946 = vsel %vm1630, %v2892, 0.0
      %v2947 = vadd.f32 %v2945, %v2946
      %v2948 = vsel %vm1630, %v2897, 0.0
      %v2949 = vadd.f32 %v2947, %v2948
      %v2950 = vsel %vm1630, %v2902, 0.0
      %v2951 = vadd.f32 %v2949, %v2950
      %v2952 = vrot.slane %v2951, 4
      %v2953 = vadd.f32 %v2951, %v2952
      %v2954 = vrot.slane %v2953, 2
      %v2955 = vadd.f32 %v2953, %v2954
      %v2956 = vrot.slane %v2955, 1
      %v2957 = vadd.f32 %v2955, %v2956
      %v2958 = vmul.f32 %v2827, %v2827
      %v2959 = vmul.f32 %v2832, %v2832
      %v2960 = vmul.f32 %v2837, %v2837
      %v2961 = vmul.f32 %v2842, %v2842
      %v2962 = vmul.f32 %v2847, %v2847
      %v2963 = vmul.f32 %v2852, %v2852
      %v2964 = vmul.f32 %v2857, %v2857
      %v2965 = vmul.f32 %v2862, %v2862
      %v2966 = vmul.f32 %v2867, %v2867
      %v2967 = vmul.f32 %v2872, %v2872
      %v2968 = vmul.f32 %v2877, %v2877
      %v2969 = vmul.f32 %v2882, %v2882
      %v2970 = vmul.f32 %v2887, %v2887
      %v2971 = vmul.f32 %v2892, %v2892
      %v2972 = vmul.f32 %v2897, %v2897
      %v2973 = vmul.f32 %v2902, %v2902
      %v2974 = vsel %vm1630, %v2958, 0.0
      %v2975 = vsel %vm1630, %v2959, 0.0
      %v2976 = vadd.f32 %v2974, %v2975
      %v2977 = vsel %vm1630, %v2960, 0.0
      %v2978 = vadd.f32 %v2976, %v2977
      %v2979 = vsel %vm1630, %v2961, 0.0
      %v2980 = vadd.f32 %v2978, %v2979
      %v2981 = vsel %vm1630, %v2962, 0.0
      %v2982 = vadd.f32 %v2980, %v2981
      %v2983 = vsel %vm1630, %v2963, 0.0
      %v2984 = vadd.f32 %v2982, %v2983
      %v2985 = vsel %vm1630, %v2964, 0.0
      %v2986 = vadd.f32 %v2984, %v2985
      %v2987 = vsel %vm1630, %v2965, 0.0
      %v2988 = vadd.f32 %v2986, %v2987
      %v2989 = vsel %vm1630, %v2966, 0.0
      %v2990 = vadd.f32 %v2988, %v2989
      %v2991 = vsel %vm1630, %v2967, 0.0
      %v2992 = vadd.f32 %v2990, %v2991
      %v2993 = vsel %vm1630, %v2968, 0.0
      %v2994 = vadd.f32 %v2992, %v2993
      %v2995 = vsel %vm1630, %v2969, 0.0
      %v2996 = vadd.f32 %v2994, %v2995
      %v2997 = vsel %vm1630, %v2970, 0.0
      %v2998 = vadd.f32 %v2996, %v2997
      %v2999 = vsel %vm1630, %v2971, 0.0
      %v3000 = vadd.f32 %v2998, %v2999
      %v3001 = vsel %vm1630, %v2972, 0.0
      %v3002 = vadd.f32 %v3000, %v3001
      %v3003 = vsel %vm1630, %v2973, 0.0
      %v3004 = vadd.f32 %v3002, %v3003
      %v3005 = vrot.slane %v3004, 4
      %v3006 = vadd.f32 %v3004, %v3005
      %v3007 = vrot.slane %v3006, 2
      %v3008 = vadd.f32 %v3006, %v3007
      %v3009 = vrot.slane %v3008, 1
      %v3010 = vadd.f32 %v3008, %v3009
      %vm3011 = vcmask 1040384
      %v3012 = vsel %vm3011, %v2957, %v3010
      %vm3013 = vcmask 58368
      %3014 = vst.msk [vmem:[%s216] sm:$0x3] %vm3013, %v3012
      %s3015 = smul.u32 2, %s20
      %p3016 = scmp.lt.s32.totalorder %s19, 1
      %s3017 = scalar_select %p3016, %s19, 1
      %p3018 = scmp.lt.s32.totalorder %s3015, 3
      %s3019 = scalar_select %p3018, %s3015, 3
      %s3020 = smul.addr %s3019, 8
      %s3021 = smul.addr %s3017, 32
      %s3022 = sadd.s32 %s3020, %s3021
      %s3023 = smul.addr %s3022, 8
      %s3024 = scalar_lea.vmem %s2, %s3023
      %p3025 = scmp.lt.s32.totalorder %s19, 1
      %s3026 = scalar_select %p3025, %s19, 1
      %p3027 = scmp.lt.s32.totalorder %s20, 1
      %s3028 = scalar_select %p3027, %s20, 1
      %s3029 = smul.addr %s3026, 2
      %s3030 = sadd.s32 %s3028, %s3029
      %s3031 = smul.addr %s3030, 2
      %s3032 = scalar_lea.vmem %s3, %s3031
      // Predicated region
      $region29: #{res_layer.17} parent=27 // pred_check
        %p3033 = pneg %p94
      $region30: #{res_layer.17} parent=27 // pred_check_branch
        %3035 = sbr.rel (%p3033) target = $region32
      $region31: #{res_layer.17} parent=27 // pred_region
        %s3036 = smul.u32 2, %s20
      $region32: #{res_layer.17} parent=27 // pred_fallthru
        _
      // Predicated region
      $region33: #{res_layer.17} parent=27 // pred_check
        %p3037 = pneg %p122
      $region34: #{res_layer.17} parent=27 // pred_check_branch
        %3039 = sbr.rel (%p3037) target = $region36
      $region35: #{res_layer.17} parent=27 // pred_region
        _
      $region36: #{res_layer.17} parent=27 // pred_fallthru
        _
    $region28: #{res_layer.17} parent=5 // pred_fallthru
      _
    %p3040 = scmp.le.s32.totalorder 2, %s10
    // Predicated region
    $region37: #{res_layer.17} parent=5 // pred_check
      %p3041 = pneg %p3040
    $region38: #{res_layer.17} parent=5 // pred_check_branch
      %3043 = sbr.rel (%p3041) target = $region40
    $region39: #{res_layer.17} parent=5 // pred_region
      %s3044 = ssub.s32 %s10, 2
      // Predicated region
      $region41: #{res_layer.17} parent=39 // pred_check
        %p3045 = pneg %p100
      $region42: #{res_layer.17} parent=39 // pred_check_branch
        %3047 = sbr.rel (%p3045) target = $region44
      $region43: #{res_layer.17} parent=39 // pred_region
        %s3048 = smul.u32 2, %s22
        %p3049 = scmp.lt.s32.totalorder %s21, 1
        %s3050 = scalar_select %p3049, %s21, 1
        %p3051 = scmp.lt.s32.totalorder %s3048, 3
        %s3052 = scalar_select %p3051, %s3048, 3
        %s3053 = smul.addr %s3052, 8
        %s3054 = smul.addr %s3050, 32
        %s3055 = sadd.s32 %s3053, %s3054
        %s3056 = smul.addr %s3055, 8
        %s3057 = scalar_lea.vmem %s2, %s3056
      $region44: #{res_layer.17} parent=39 // pred_fallthru
        _
      // Predicated region
      $region45: #{res_layer.17} parent=39 // pred_check
        %p3058 = pneg %p128
      $region46: #{res_layer.17} parent=39 // pred_check_branch
        %3060 = sbr.rel (%p3058) target = $region48
      $region47: #{res_layer.17} parent=39 // pred_region
        %p3061 = scmp.lt.s32.totalorder %s21, 1
        %s3062 = scalar_select %p3061, %s21, 1
        %p3063 = scmp.lt.s32.totalorder %s22, 1
        %s3064 = scalar_select %p3063, %s22, 1
        %s3065 = smul.addr %s3062, 2
        %s3066 = sadd.s32 %s3064, %s3065
        %s3067 = smul.addr %s3066, 2
        %s3068 = scalar_lea.vmem %s3, %s3067
      $region48: #{res_layer.17} parent=39 // pred_fallthru
        _
    $region40: #{res_layer.17} parent=5 // pred_fallthru
      _
  $region6: #{res_layer.17} parent=0 // loop_footer
    %s14 = sadd.s32 1, %s10
  $region7: #{res_layer.17} parent=0 // loop_footer_branch
    %9 = sbr.rel target = $region3
  $region8: #{res_layer.17} parent=0 // loop_exit
    _

</llo_original>
